<compile_context>
chip_gen: v7x
topology: tpu7x:2x2x1
jax: 0.10.0
libtpu: 0.0.40
codegen_flags: <defaults>
</compile_context>

<pallas_src>
import jax
import jax.numpy as jnp
from jax import lax
from jax.experimental import pallas as pl
from jax.experimental.pallas import tpu as pltpu
import numpy as np

EPS = 1e-5


def _cat_embedding_kernel(x_ref,
                          wir_ref, wiz_ref, win_ref,
                          whr_ref, whz_ref, whn_ref,
                          br_ref, bz_ref, bn_ref, bhn_ref,
                          g2_ref, b2_ref,
                          y_ref, h_scratch):
    t_blk = pl.program_id(1)

    @pl.when(t_blk == 0)
    def _():
        h_scratch[...] = jnp.zeros_like(h_scratch)

    tt, bb, e = x_ref.shape
    h_dim = h_scratch.shape[-1]
    cdt = wir_ref.dtype                      # matmul operand dtype (f32 or bf16)

    # ---------- LayerNorm 1 over the whole time block (affine folded away) ----------
    xf = x_ref[...].reshape(tt * bb, e)                      # (TT*B, E)
    mu = jnp.mean(xf, axis=-1, keepdims=True)
    xc = xf - mu
    var = jnp.mean(xc * xc, axis=-1, keepdims=True)
    xn = (xc * lax.rsqrt(var + EPS)).astype(cdt)             # gamma/beta live in W/b

    # ---------- hoisted input projection: big MXU matmuls (M = TT*B) ----------
    gi_r = (jnp.dot(xn, wir_ref[...], preferred_element_type=jnp.float32)
            + br_ref[...]).reshape(tt, bb, h_dim)            # includes b_ir+b_hr+b1@Wir
    gi_z = (jnp.dot(xn, wiz_ref[...], preferred_element_type=jnp.float32)
            + bz_ref[...]).reshape(tt, bb, h_dim)            # includes b_iz+b_hz+b1@Wiz
    gi_n = (jnp.dot(xn, win_ref[...], preferred_element_type=jnp.float32)
            + bn_ref[...]).reshape(tt, bb, h_dim)            # includes b_in+b1@Win

    # hoisted loads / broadcasts (kept out of the serial loop)
    whr = whr_ref[...]
    whz = whz_ref[...]
    whn = whn_ref[...]
    bhn = jnp.broadcast_to(bhn_ref[...], (bb, h_dim))

    # ---------- serial GRU recurrence over TT steps (fully unrolled) ----------
    h = h_scratch[...]                                       # (B, H) f32
    hs = []
    for s in range(tt):
        h_c = h.astype(cdt)
        r = jax.nn.sigmoid(gi_r[s] + jnp.dot(h_c, whr,
                                             preferred_element_type=jnp.float32))
        z = jax.nn.sigmoid(gi_z[s] + jnp.dot(h_c, whz,
                                             preferred_element_type=jnp.float32))
        n = jnp.tanh(gi_n[s] + r * (jnp.dot(h_c, whn,
                                            preferred_element_type=jnp.float32) + bhn))
        h = (1.0 - z) * n + z * h
        hs.append(h)
    h_scratch[...] = h                                       # carry to next time block

    # ---------- LayerNorm 2 on the whole block, single block store ----------
    hb = jnp.stack(hs, axis=0)                               # (TT, B, H)
    mu2 = jnp.mean(hb, axis=-1, keepdims=True)
    hc2 = hb - mu2
    var2 = jnp.mean(hc2 * hc2, axis=-1, keepdims=True)
    y_ref[...] = (hc2 * lax.rsqrt(var2 + EPS) * g2_ref[...]
                  + b2_ref[...]).astype(y_ref.dtype)


def cat_embedding(x, params, *, time_block=16, matmul_dtype=jnp.float32):
    """x: (T, B, E) float32 -> (T, B, E//2) float32."""
    T, B, E = x.shape
    H = E // 2

    # ----- time blocking: TT = largest divisor of T not exceeding time_block -----
    tt = max(1, min(time_block, T))
    while T % tt:
        tt -= 1
    nt = T // tt

    # ----- pad batch to a multiple of 8 sublanes -----
    B_pad = ((B + 7) // 8) * 8
    if B_pad != B:
        x = jnp.pad(x, ((0, 0), (0, B_pad - B), (0, 0)))

    # ----- optional batch-parallel grid axis (2nd TensorCore on v7x) -----
    nb = 2 if (B_pad >= 16 and B_pad % 16 == 0) else 1
    Bb = B_pad // nb

    # ----- per-gate weights/biases (PyTorch gate ordering r, z, n) -----
    w_ih, w_hh = params["w_ih"], params["w_hh"]              # (3H,E), (3H,H)
    b_ih, b_hh = params["b_ih"], params["b_hh"]              # (3H,), (3H,)
    g1 = params["ln1_g"].astype(jnp.float32)                 # (E,)
    b1 = params["ln1_b"].astype(jnp.float32)                 # (E,)

    wir0 = w_ih[:H].T.astype(jnp.float32)                    # (E, H)
    wiz0 = w_ih[H:2 * H].T.astype(jnp.float32)
    win0 = w_ih[2 * H:].T.astype(jnp.float32)

    # Fold LN1 gamma into the input-side weights, LN1 beta into the gate biases.
    wir = (g1[:, None] * wir0).astype(matmul_dtype)
    wiz = (g1[:, None] * wiz0).astype(matmul_dtype)
    win = (g1[:, None] * win0).astype(matmul_dtype)
    whr = w_hh[:H].T.astype(matmul_dtype)                    # (H, H)
    whz = w_hh[H:2 * H].T.astype(matmul_dtype)
    whn = w_hh[2 * H:].T.astype(matmul_dtype)
    br = (b_ih[:H] + b_hh[:H] + b1 @ wir0).reshape(1, H).astype(jnp.float32)
    bz = (b_ih[H:2 * H] + b_hh[H:2 * H] + b1 @ wiz0).reshape(1, H).astype(jnp.float32)
    bn = (b_ih[2 * H:] + b1 @ win0).reshape(1, H).astype(jnp.float32)
    bhn = b_hh[2 * H:].reshape(1, H).astype(jnp.float32)     # stays inside r-gate product
    g2 = params["ln2_g"].reshape(1, H).astype(jnp.float32)
    b2 = params["ln2_b"].reshape(1, H).astype(jnp.float32)

    consts = (wir, wiz, win, whr, whz, whn, br, bz, bn, bhn, g2, b2)

    def full(a):
        return pl.BlockSpec(a.shape, lambda b, t: (0,) * a.ndim)

    flops = 2 * T * B_pad * (E + H) * 3 * H
    transcendentals = T * B_pad * (3 * H + 2)
    bytes_accessed = (4 * T * B_pad * (E + H)
                      + sum(int(np.prod(c.shape)) * c.dtype.itemsize for c in consts))

    y = pl.pallas_call(
        _cat_embedding_kernel,
        out_shape=jax.ShapeDtypeStruct((T, B_pad, H), jnp.float32),
        grid_spec=pltpu.PrefetchScalarGridSpec(
            num_scalar_prefetch=0,
            grid=(nb, nt),
            in_specs=[pl.BlockSpec((tt, Bb, E), lambda b, t: (t, b, 0))]
                     + [full(c) for c in consts],
            out_specs=pl.BlockSpec((tt, Bb, H), lambda b, t: (t, b, 0)),
            scratch_shapes=[pltpu.VMEM((Bb, H), jnp.float32)],   # carried hidden state
        ),
        compiler_params=pltpu.CompilerParams(
            # batch blocks are independent -> parallel; time recurrence -> arbitrary
            dimension_semantics=("parallel", "arbitrary"),
            vmem_limit_bytes=32 * 1024 * 1024,
        ),
        cost_estimate=pl.CostEstimate(
            flops=flops,
            transcendentals=transcendentals,
            bytes_accessed=bytes_accessed,
        ),
    )(x, *consts)

    return y[:, :B, :]


# ---------------- pure-JAX reference (for verification) ----------------
def _layernorm(v, g, b):
    mu = v.mean(-1, keepdims=True)
    var = ((v - mu) ** 2).mean(-1, keepdims=True)
    return (v - mu) / jnp.sqrt(var + EPS) * g + b


def cat_embedding_ref(x, params):
    T, B, E = x.shape
    H = E // 2
    xn = _layernorm(x, params["ln1_g"], params["ln1_b"])

    def step(h, xt):
        gi = xt @ params["w_ih"].T + params["b_ih"]
        gh = h @ params["w_hh"].T + params["b_hh"]
        i_r, i_z, i_n = gi[:, :H], gi[:, H:2 * H], gi[:, 2 * H:]
        h_r, h_z, h_n = gh[:, :H], gh[:, H:2 * H], gh[:, 2 * H:]
        r = jax.nn.sigmoid(i_r + h_r)
        z = jax.nn.sigmoid(i_z + h_z)
        n = jnp.tanh(i_n + r * h_n)
        h_t = (1.0 - z) * n + z * h
        return h_t, h_t

    h0 = jnp.zeros((B, H), jnp.float32)
    _, hs = lax.scan(step, h0, xn)
    return _layernorm(hs, params["ln2_g"], params["ln2_b"])


def init_params(key, embed_dim):
    H = embed_dim // 2
    k = jax.random.split(key, 8)
    s = 1.0 / np.sqrt(H)

    def u(kk, shape):
        return jax.random.uniform(kk, shape, jnp.float32, -s, s)

    return {
        # non-trivial LN affines so the wrapper-side gamma/beta fold is verified
        "ln1_g": 1.0 + 0.1 * jax.random.normal(k[4], (embed_dim,), jnp.float32),
        "ln1_b": 0.1 * jax.random.normal(k[5], (embed_dim,), jnp.float32),
        "w_ih": u(k[0], (3 * H, embed_dim)),
        "w_hh": u(k[1], (3 * H, H)),
        "b_ih": u(k[2], (3 * H,)),
        "b_hh": u(k[3], (3 * H,)),
        "ln2_g": 1.0 + 0.1 * jax.random.normal(k[6], (H,), jnp.float32),
        "ln2_b": 0.1 * jax.random.normal(k[7], (H,), jnp.float32),
    }


def _check(key, T, B, E, **kw):
    kx, kp = jax.random.split(key)
    x = jax.random.normal(kx, (T, B, E), jnp.float32)
    params = init_params(kp, E)

    y = jax.block_until_ready(cat_embedding(x, params, **kw))
    y_ref = jax.block_until_ready(cat_embedding_ref(x, params))
    np.testing.assert_allclose(np.asarray(y), np.asarray(y_ref),
                               rtol=1e-4, atol=1e-4)


if __name__ == "__main__":
    root = jax.random.PRNGKey(0)
    k1, k2 = jax.random.split(root)

    # Case 1: seq=16, batch=4 (padded to 8 sublanes), embed_dim=32 (hidden=16).
    # time_block=8 -> two time blocks: exercises the hidden state carried in
    # VMEM scratch across grid steps.
    _check(k1, T=16, B=4, E=32, time_block=8)

    # Case 2: seq=12, batch=16, embed_dim=64 (hidden=32). Default time block
    # covers the whole sequence; exercises the batch-parallel grid axis
    # (B_pad=16 -> 2 batch blocks).
    _check(k2, T=12, B=16, E=64)

    print("KERNEL_OK")
</pallas_src>

<mosaic_0001>
module attributes {stable_mosaic.version = 11 : i64} {
  func.func @_cat_embedding_kernel(%arg0: i32, %arg1: i32, %arg2: memref<8x8x32xf32, #tpu.memory_space<vmem>>, %arg3: memref<32x16xf32, #tpu.memory_space<vmem>>, %arg4: memref<32x16xf32, #tpu.memory_space<vmem>>, %arg5: memref<32x16xf32, #tpu.memory_space<vmem>>, %arg6: memref<16x16xf32, #tpu.memory_space<vmem>>, %arg7: memref<16x16xf32, #tpu.memory_space<vmem>>, %arg8: memref<16x16xf32, #tpu.memory_space<vmem>>, %arg9: memref<1x16xf32, #tpu.memory_space<vmem>>, %arg10: memref<1x16xf32, #tpu.memory_space<vmem>>, %arg11: memref<1x16xf32, #tpu.memory_space<vmem>>, %arg12: memref<1x16xf32, #tpu.memory_space<vmem>>, %arg13: memref<1x16xf32, #tpu.memory_space<vmem>>, %arg14: memref<1x16xf32, #tpu.memory_space<vmem>>, %arg15: memref<8x8x16xf32, #tpu.memory_space<vmem>>, %arg16: memref<8x16xf32, #tpu.memory_space<vmem>>) attributes {dimension_semantics = [#tpu.dimension_semantics<parallel>, #tpu.dimension_semantics<arbitrary>], iteration_bounds = array<i64: 1, 2>, scalar_prefetch = 0 : i64, scratch_operands = 1 : i64, tpu.core_type = #tpu.core_type<tc>, window_params = [{transform_indices = @transform_0, window_bounds = array<i64: 8, 8, 32>}, {pipeline_mode = #tpu.pipeline_mode<synchronous>, transform_indices = @transform_1, window_bounds = array<i64: 32, 16>}, {pipeline_mode = #tpu.pipeline_mode<synchronous>, transform_indices = @transform_2, window_bounds = array<i64: 32, 16>}, {pipeline_mode = #tpu.pipeline_mode<synchronous>, transform_indices = @transform_3, window_bounds = array<i64: 32, 16>}, {pipeline_mode = #tpu.pipeline_mode<synchronous>, transform_indices = @transform_4, window_bounds = array<i64: 16, 16>}, {pipeline_mode = #tpu.pipeline_mode<synchronous>, transform_indices = @transform_5, window_bounds = array<i64: 16, 16>}, {pipeline_mode = #tpu.pipeline_mode<synchronous>, transform_indices = @transform_6, window_bounds = array<i64: 16, 16>}, {pipeline_mode = #tpu.pipeline_mode<synchronous>, transform_indices = @transform_7, window_bounds = array<i64: 1, 16>}, {pipeline_mode = #tpu.pipeline_mode<synchronous>, transform_indices = @transform_8, window_bounds = array<i64: 1, 16>}, {pipeline_mode = #tpu.pipeline_mode<synchronous>, transform_indices = @transform_9, window_bounds = array<i64: 1, 16>}, {pipeline_mode = #tpu.pipeline_mode<synchronous>, transform_indices = @transform_10, window_bounds = array<i64: 1, 16>}, {pipeline_mode = #tpu.pipeline_mode<synchronous>, transform_indices = @transform_11, window_bounds = array<i64: 1, 16>}, {pipeline_mode = #tpu.pipeline_mode<synchronous>, transform_indices = @transform_12, window_bounds = array<i64: 1, 16>}, {transform_indices = @transform_13, window_bounds = array<i64: 8, 8, 16>}]} {
    %c0_i32 = arith.constant 0 : i32
    %0 = arith.cmpi eq, %arg1, %c0_i32 : i32
    %1 = arith.extui %0 : i1 to i32
    %c0_i32_0 = arith.constant 0 : i32
    %2 = arith.cmpi ne, %1, %c0_i32_0 : i32
    scf.if %2 {
      %cst_94 = arith.constant 0.000000e+00 : f32
      %321 = vector.broadcast %cst_94 : f32 to vector<8x16xf32>
      %c0_95 = arith.constant 0 : index
      %c0_96 = arith.constant 0 : index
      %322 = vector.load %arg16[%c0_95, %c0_96] : memref<8x16xf32, #tpu.memory_space<vmem>>, vector<8x16xf32>
      tpu.vector_store %arg16[%c0_95, %c0_96], %321 {strides = array<i32>} : memref<8x16xf32, #tpu.memory_space<vmem>>, vector<8x16xf32>,
    } else {
    }
    %c0 = arith.constant 0 : index
    %c0_1 = arith.constant 0 : index
    %c0_2 = arith.constant 0 : index
    %3 = vector.load %arg2[%c0, %c0_1, %c0_2] : memref<8x8x32xf32, #tpu.memory_space<vmem>>, vector<8x8x32xf32>
    %4 = vector.shape_cast %3 : vector<8x8x32xf32> to vector<64x32xf32>
    %cst = arith.constant dense<0.000000e+00> : vector<64xf32>
    %5 = vector.multi_reduction <add>, %4, %cst [1] : vector<64x32xf32> to vector<64xf32>
    %6 = vector.shape_cast %5 : vector<64xf32> to vector<64x1xf32>
    %cst_3 = arith.constant 3.200000e+01 : f32
    %7 = vector.broadcast %cst_3 : f32 to vector<64x1xf32>
    %8 = arith.divf %6, %7 : vector<64x1xf32>
    %9 = vector.broadcast %8 : vector<64x1xf32> to vector<64x32xf32>
    %10 = arith.subf %4, %9 : vector<64x32xf32>
    %11 = arith.mulf %10, %10 : vector<64x32xf32>
    %cst_4 = arith.constant dense<0.000000e+00> : vector<64xf32>
    %12 = vector.multi_reduction <add>, %11, %cst_4 [1] : vector<64x32xf32> to vector<64xf32>
    %13 = vector.shape_cast %12 : vector<64xf32> to vector<64x1xf32>
    %cst_5 = arith.constant 3.200000e+01 : f32
    %14 = vector.broadcast %cst_5 : f32 to vector<64x1xf32>
    %15 = arith.divf %13, %14 : vector<64x1xf32>
    %cst_6 = arith.constant 9.99999974E-6 : f32
    %16 = vector.broadcast %cst_6 : f32 to vector<64x1xf32>
    %17 = arith.addf %15, %16 : vector<64x1xf32>
    %18 = math.rsqrt %17 : vector<64x1xf32>
    %19 = vector.broadcast %18 : vector<64x1xf32> to vector<64x32xf32>
    %20 = arith.mulf %10, %19 : vector<64x32xf32>
    %c0_7 = arith.constant 0 : index
    %c0_8 = arith.constant 0 : index
    %21 = vector.load %arg3[%c0_7, %c0_8] : memref<32x16xf32, #tpu.memory_space<vmem>>, vector<32x16xf32>
    %cst_9 = arith.constant dense<0.000000e+00> : vector<64x16xf32>
    %22 = tpu.matmul %20, %21, %cst_9 {dimension_numbers = #tpu.dot_dimension_numbers<[1], [0], [0], [1], [0, 0, 1, 1], [], []>} : vector<64x32xf32>, vector<32x16xf32>, vector<64x16xf32> -> vector<64x16xf32>
    %c0_10 = arith.constant 0 : index
    %c0_11 = arith.constant 0 : index
    %23 = vector.load %arg9[%c0_10, %c0_11] : memref<1x16xf32, #tpu.memory_space<vmem>>, vector<1x16xf32>
    %24 = vector.broadcast %23 : vector<1x16xf32> to vector<64x16xf32>
    %25 = arith.addf %22, %24 : vector<64x16xf32>
    %26 = vector.shape_cast %25 : vector<64x16xf32> to vector<8x8x16xf32>
    %c0_12 = arith.constant 0 : index
    %c0_13 = arith.constant 0 : index
    %27 = vector.load %arg4[%c0_12, %c0_13] : memref<32x16xf32, #tpu.memory_space<vmem>>, vector<32x16xf32>
    %cst_14 = arith.constant dense<0.000000e+00> : vector<64x16xf32>
    %28 = tpu.matmul %20, %27, %cst_14 {dimension_numbers = #tpu.dot_dimension_numbers<[1], [0], [0], [1], [0, 0, 1, 1], [], []>} : vector<64x32xf32>, vector<32x16xf32>, vector<64x16xf32> -> vector<64x16xf32>
    %c0_15 = arith.constant 0 : index
    %c0_16 = arith.constant 0 : index
    %29 = vector.load %arg10[%c0_15, %c0_16] : memref<1x16xf32, #tpu.memory_space<vmem>>, vector<1x16xf32>
    %30 = vector.broadcast %29 : vector<1x16xf32> to vector<64x16xf32>
    %31 = arith.addf %28, %30 : vector<64x16xf32>
    %32 = vector.shape_cast %31 : vector<64x16xf32> to vector<8x8x16xf32>
    %c0_17 = arith.constant 0 : index
    %c0_18 = arith.constant 0 : index
    %33 = vector.load %arg5[%c0_17, %c0_18] : memref<32x16xf32, #tpu.memory_space<vmem>>, vector<32x16xf32>
    %cst_19 = arith.constant dense<0.000000e+00> : vector<64x16xf32>
    %34 = tpu.matmul %20, %33, %cst_19 {dimension_numbers = #tpu.dot_dimension_numbers<[1], [0], [0], [1], [0, 0, 1, 1], [], []>} : vector<64x32xf32>, vector<32x16xf32>, vector<64x16xf32> -> vector<64x16xf32>
    %c0_20 = arith.constant 0 : index
    %c0_21 = arith.constant 0 : index
    %35 = vector.load %arg11[%c0_20, %c0_21] : memref<1x16xf32, #tpu.memory_space<vmem>>, vector<1x16xf32>
    %36 = vector.broadcast %35 : vector<1x16xf32> to vector<64x16xf32>
    %37 = arith.addf %34, %36 : vector<64x16xf32>
    %38 = vector.shape_cast %37 : vector<64x16xf32> to vector<8x8x16xf32>
    %c0_22 = arith.constant 0 : index
    %c0_23 = arith.constant 0 : index
    %39 = vector.load %arg6[%c0_22, %c0_23] : memref<16x16xf32, #tpu.memory_space<vmem>>, vector<16x16xf32>
    %c0_24 = arith.constant 0 : index
    %c0_25 = arith.constant 0 : index
    %40 = vector.load %arg7[%c0_24, %c0_25] : memref<16x16xf32, #tpu.memory_space<vmem>>, vector<16x16xf32>
    %c0_26 = arith.constant 0 : index
    %c0_27 = arith.constant 0 : index
    %41 = vector.load %arg8[%c0_26, %c0_27] : memref<16x16xf32, #tpu.memory_space<vmem>>, vector<16x16xf32>
    %c0_28 = arith.constant 0 : index
    %c0_29 = arith.constant 0 : index
    %42 = vector.load %arg12[%c0_28, %c0_29] : memref<1x16xf32, #tpu.memory_space<vmem>>, vector<1x16xf32>
    %43 = vector.shape_cast %42 : vector<1x16xf32> to vector<1x16xf32>
    %44 = vector.broadcast %43 : vector<1x16xf32> to vector<8x16xf32>
    %c0_30 = arith.constant 0 : index
    %c0_31 = arith.constant 0 : index
    %45 = vector.load %arg16[%c0_30, %c0_31] : memref<8x16xf32, #tpu.memory_space<vmem>>, vector<8x16xf32>
    %46 = vector.extract_strided_slice %26 {offsets = [0, 0, 0], sizes = [1, 8, 16], strides = [1, 1, 1]} : vector<8x8x16xf32> to vector<1x8x16xf32>
    %47 = vector.shape_cast %46 : vector<1x8x16xf32> to vector<8x16xf32>
    %cst_32 = arith.constant dense<0.000000e+00> : vector<8x16xf32>
    %48 = tpu.matmul %45, %39, %cst_32 {dimension_numbers = #tpu.dot_dimension_numbers<[1], [0], [0], [1], [0, 0, 1, 1], [], []>} : vector<8x16xf32>, vector<16x16xf32>, vector<8x16xf32> -> vector<8x16xf32>
    %49 = arith.addf %47, %48 : vector<8x16xf32>
    %50 = arith.negf %49 : vector<8x16xf32>
    %51 = math.exp %50 : vector<8x16xf32>
    %cst_33 = arith.constant 1.000000e+00 : f32
    %52 = vector.broadcast %cst_33 : f32 to vector<8x16xf32>
    %53 = arith.addf %52, %51 : vector<8x16xf32>
    %54 = arith.divf %52, %53 : vector<8x16xf32>
    %55 = vector.extract_strided_slice %32 {offsets = [0, 0, 0], sizes = [1, 8, 16], strides = [1, 1, 1]} : vector<8x8x16xf32> to vector<1x8x16xf32>
    %56 = vector.shape_cast %55 : vector<1x8x16xf32> to vector<8x16xf32>
    %cst_34 = arith.constant dense<0.000000e+00> : vector<8x16xf32>
    %57 = tpu.matmul %45, %40, %cst_34 {dimension_numbers = #tpu.dot_dimension_numbers<[1], [0], [0], [1], [0, 0, 1, 1], [], []>} : vector<8x16xf32>, vector<16x16xf32>, vector<8x16xf32> -> vector<8x16xf32>
    %58 = arith.addf %56, %57 : vector<8x16xf32>
    %59 = arith.negf %58 : vector<8x16xf32>
    %60 = math.exp %59 : vector<8x16xf32>
    %cst_35 = arith.constant 1.000000e+00 : f32
    %61 = vector.broadcast %cst_35 : f32 to vector<8x16xf32>
    %62 = arith.addf %61, %60 : vector<8x16xf32>
    %63 = arith.divf %61, %62 : vector<8x16xf32>
    %64 = vector.extract_strided_slice %38 {offsets = [0, 0, 0], sizes = [1, 8, 16], strides = [1, 1, 1]} : vector<8x8x16xf32> to vector<1x8x16xf32>
    %65 = vector.shape_cast %64 : vector<1x8x16xf32> to vector<8x16xf32>
    %cst_36 = arith.constant dense<0.000000e+00> : vector<8x16xf32>
    %66 = tpu.matmul %45, %41, %cst_36 {dimension_numbers = #tpu.dot_dimension_numbers<[1], [0], [0], [1], [0, 0, 1, 1], [], []>} : vector<8x16xf32>, vector<16x16xf32>, vector<8x16xf32> -> vector<8x16xf32>
    %67 = arith.addf %66, %44 : vector<8x16xf32>
    %68 = arith.mulf %54, %67 : vector<8x16xf32>
    %69 = arith.addf %65, %68 : vector<8x16xf32>
    %70 = math.tanh %69 : vector<8x16xf32>
    %cst_37 = arith.constant 1.000000e+00 : f32
    %71 = vector.broadcast %cst_37 : f32 to vector<8x16xf32>
    %72 = arith.subf %71, %63 : vector<8x16xf32>
    %73 = arith.mulf %72, %70 : vector<8x16xf32>
    %74 = arith.mulf %63, %45 : vector<8x16xf32>
    %75 = arith.addf %73, %74 : vector<8x16xf32>
    %76 = vector.extract_strided_slice %26 {offsets = [1, 0, 0], sizes = [1, 8, 16], strides = [1, 1, 1]} : vector<8x8x16xf32> to vector<1x8x16xf32>
    %77 = vector.shape_cast %76 : vector<1x8x16xf32> to vector<8x16xf32>
    %cst_38 = arith.constant dense<0.000000e+00> : vector<8x16xf32>
    %78 = tpu.matmul %75, %39, %cst_38 {dimension_numbers = #tpu.dot_dimension_numbers<[1], [0], [0], [1], [0, 0, 1, 1], [], []>} : vector<8x16xf32>, vector<16x16xf32>, vector<8x16xf32> -> vector<8x16xf32>
    %79 = arith.addf %77, %78 : vector<8x16xf32>
    %80 = arith.negf %79 : vector<8x16xf32>
    %81 = math.exp %80 : vector<8x16xf32>
    %cst_39 = arith.constant 1.000000e+00 : f32
    %82 = vector.broadcast %cst_39 : f32 to vector<8x16xf32>
    %83 = arith.addf %82, %81 : vector<8x16xf32>
    %84 = arith.divf %82, %83 : vector<8x16xf32>
    %85 = vector.extract_strided_slice %32 {offsets = [1, 0, 0], sizes = [1, 8, 16], strides = [1, 1, 1]} : vector<8x8x16xf32> to vector<1x8x16xf32>
    %86 = vector.shape_cast %85 : vector<1x8x16xf32> to vector<8x16xf32>
    %cst_40 = arith.constant dense<0.000000e+00> : vector<8x16xf32>
    %87 = tpu.matmul %75, %40, %cst_40 {dimension_numbers = #tpu.dot_dimension_numbers<[1], [0], [0], [1], [0, 0, 1, 1], [], []>} : vector<8x16xf32>, vector<16x16xf32>, vector<8x16xf32> -> vector<8x16xf32>
    %88 = arith.addf %86, %87 : vector<8x16xf32>
    %89 = arith.negf %88 : vector<8x16xf32>
    %90 = math.exp %89 : vector<8x16xf32>
    %cst_41 = arith.constant 1.000000e+00 : f32
    %91 = vector.broadcast %cst_41 : f32 to vector<8x16xf32>
    %92 = arith.addf %91, %90 : vector<8x16xf32>
    %93 = arith.divf %91, %92 : vector<8x16xf32>
    %94 = vector.extract_strided_slice %38 {offsets = [1, 0, 0], sizes = [1, 8, 16], strides = [1, 1, 1]} : vector<8x8x16xf32> to vector<1x8x16xf32>
    %95 = vector.shape_cast %94 : vector<1x8x16xf32> to vector<8x16xf32>
    %cst_42 = arith.constant dense<0.000000e+00> : vector<8x16xf32>
    %96 = tpu.matmul %75, %41, %cst_42 {dimension_numbers = #tpu.dot_dimension_numbers<[1], [0], [0], [1], [0, 0, 1, 1], [], []>} : vector<8x16xf32>, vector<16x16xf32>, vector<8x16xf32> -> vector<8x16xf32>
    %97 = arith.addf %96, %44 : vector<8x16xf32>
    %98 = arith.mulf %84, %97 : vector<8x16xf32>
    %99 = arith.addf %95, %98 : vector<8x16xf32>
    %100 = math.tanh %99 : vector<8x16xf32>
    %cst_43 = arith.constant 1.000000e+00 : f32
    %101 = vector.broadcast %cst_43 : f32 to vector<8x16xf32>
    %102 = arith.subf %101, %93 : vector<8x16xf32>
    %103 = arith.mulf %102, %100 : vector<8x16xf32>
    %104 = arith.mulf %93, %75 : vector<8x16xf32>
    %105 = arith.addf %103, %104 : vector<8x16xf32>
    %106 = vector.extract_strided_slice %26 {offsets = [2, 0, 0], sizes = [1, 8, 16], strides = [1, 1, 1]} : vector<8x8x16xf32> to vector<1x8x16xf32>
    %107 = vector.shape_cast %106 : vector<1x8x16xf32> to vector<8x16xf32>
    %cst_44 = arith.constant dense<0.000000e+00> : vector<8x16xf32>
    %108 = tpu.matmul %105, %39, %cst_44 {dimension_numbers = #tpu.dot_dimension_numbers<[1], [0], [0], [1], [0, 0, 1, 1], [], []>} : vector<8x16xf32>, vector<16x16xf32>, vector<8x16xf32> -> vector<8x16xf32>
    %109 = arith.addf %107, %108 : vector<8x16xf32>
    %110 = arith.negf %109 : vector<8x16xf32>
    %111 = math.exp %110 : vector<8x16xf32>
    %cst_45 = arith.constant 1.000000e+00 : f32
    %112 = vector.broadcast %cst_45 : f32 to vector<8x16xf32>
    %113 = arith.addf %112, %111 : vector<8x16xf32>
    %114 = arith.divf %112, %113 : vector<8x16xf32>
    %115 = vector.extract_strided_slice %32 {offsets = [2, 0, 0], sizes = [1, 8, 16], strides = [1, 1, 1]} : vector<8x8x16xf32> to vector<1x8x16xf32>
    %116 = vector.shape_cast %115 : vector<1x8x16xf32> to vector<8x16xf32>
    %cst_46 = arith.constant dense<0.000000e+00> : vector<8x16xf32>
    %117 = tpu.matmul %105, %40, %cst_46 {dimension_numbers = #tpu.dot_dimension_numbers<[1], [0], [0], [1], [0, 0, 1, 1], [], []>} : vector<8x16xf32>, vector<16x16xf32>, vector<8x16xf32> -> vector<8x16xf32>
    %118 = arith.addf %116, %117 : vector<8x16xf32>
    %119 = arith.negf %118 : vector<8x16xf32>
    %120 = math.exp %119 : vector<8x16xf32>
    %cst_47 = arith.constant 1.000000e+00 : f32
    %121 = vector.broadcast %cst_47 : f32 to vector<8x16xf32>
    %122 = arith.addf %121, %120 : vector<8x16xf32>
    %123 = arith.divf %121, %122 : vector<8x16xf32>
    %124 = vector.extract_strided_slice %38 {offsets = [2, 0, 0], sizes = [1, 8, 16], strides = [1, 1, 1]} : vector<8x8x16xf32> to vector<1x8x16xf32>
    %125 = vector.shape_cast %124 : vector<1x8x16xf32> to vector<8x16xf32>
    %cst_48 = arith.constant dense<0.000000e+00> : vector<8x16xf32>
    %126 = tpu.matmul %105, %41, %cst_48 {dimension_numbers = #tpu.dot_dimension_numbers<[1], [0], [0], [1], [0, 0, 1, 1], [], []>} : vector<8x16xf32>, vector<16x16xf32>, vector<8x16xf32> -> vector<8x16xf32>
    %127 = arith.addf %126, %44 : vector<8x16xf32>
    %128 = arith.mulf %114, %127 : vector<8x16xf32>
    %129 = arith.addf %125, %128 : vector<8x16xf32>
    %130 = math.tanh %129 : vector<8x16xf32>
    %cst_49 = arith.constant 1.000000e+00 : f32
    %131 = vector.broadcast %cst_49 : f32 to vector<8x16xf32>
    %132 = arith.subf %131, %123 : vector<8x16xf32>
    %133 = arith.mulf %132, %130 : vector<8x16xf32>
    %134 = arith.mulf %123, %105 : vector<8x16xf32>
    %135 = arith.addf %133, %134 : vector<8x16xf32>
    %136 = vector.extract_strided_slice %26 {offsets = [3, 0, 0], sizes = [1, 8, 16], strides = [1, 1, 1]} : vector<8x8x16xf32> to vector<1x8x16xf32>
    %137 = vector.shape_cast %136 : vector<1x8x16xf32> to vector<8x16xf32>
    %cst_50 = arith.constant dense<0.000000e+00> : vector<8x16xf32>
    %138 = tpu.matmul %135, %39, %cst_50 {dimension_numbers = #tpu.dot_dimension_numbers<[1], [0], [0], [1], [0, 0, 1, 1], [], []>} : vector<8x16xf32>, vector<16x16xf32>, vector<8x16xf32> -> vector<8x16xf32>
    %139 = arith.addf %137, %138 : vector<8x16xf32>
    %140 = arith.negf %139 : vector<8x16xf32>
    %141 = math.exp %140 : vector<8x16xf32>
    %cst_51 = arith.constant 1.000000e+00 : f32
    %142 = vector.broadcast %cst_51 : f32 to vector<8x16xf32>
    %143 = arith.addf %142, %141 : vector<8x16xf32>
    %144 = arith.divf %142, %143 : vector<8x16xf32>
    %145 = vector.extract_strided_slice %32 {offsets = [3, 0, 0], sizes = [1, 8, 16], strides = [1, 1, 1]} : vector<8x8x16xf32> to vector<1x8x16xf32>
    %146 = vector.shape_cast %145 : vector<1x8x16xf32> to vector<8x16xf32>
    %cst_52 = arith.constant dense<0.000000e+00> : vector<8x16xf32>
    %147 = tpu.matmul %135, %40, %cst_52 {dimension_numbers = #tpu.dot_dimension_numbers<[1], [0], [0], [1], [0, 0, 1, 1], [], []>} : vector<8x16xf32>, vector<16x16xf32>, vector<8x16xf32> -> vector<8x16xf32>
    %148 = arith.addf %146, %147 : vector<8x16xf32>
    %149 = arith.negf %148 : vector<8x16xf32>
    %150 = math.exp %149 : vector<8x16xf32>
    %cst_53 = arith.constant 1.000000e+00 : f32
    %151 = vector.broadcast %cst_53 : f32 to vector<8x16xf32>
    %152 = arith.addf %151, %150 : vector<8x16xf32>
    %153 = arith.divf %151, %152 : vector<8x16xf32>
    %154 = vector.extract_strided_slice %38 {offsets = [3, 0, 0], sizes = [1, 8, 16], strides = [1, 1, 1]} : vector<8x8x16xf32> to vector<1x8x16xf32>
    %155 = vector.shape_cast %154 : vector<1x8x16xf32> to vector<8x16xf32>
    %cst_54 = arith.constant dense<0.000000e+00> : vector<8x16xf32>
    %156 = tpu.matmul %135, %41, %cst_54 {dimension_numbers = #tpu.dot_dimension_numbers<[1], [0], [0], [1], [0, 0, 1, 1], [], []>} : vector<8x16xf32>, vector<16x16xf32>, vector<8x16xf32> -> vector<8x16xf32>
    %157 = arith.addf %156, %44 : vector<8x16xf32>
    %158 = arith.mulf %144, %157 : vector<8x16xf32>
    %159 = arith.addf %155, %158 : vector<8x16xf32>
    %160 = math.tanh %159 : vector<8x16xf32>
    %cst_55 = arith.constant 1.000000e+00 : f32
    %161 = vector.broadcast %cst_55 : f32 to vector<8x16xf32>
    %162 = arith.subf %161, %153 : vector<8x16xf32>
    %163 = arith.mulf %162, %160 : vector<8x16xf32>
    %164 = arith.mulf %153, %135 : vector<8x16xf32>
    %165 = arith.addf %163, %164 : vector<8x16xf32>
    %166 = vector.extract_strided_slice %26 {offsets = [4, 0, 0], sizes = [1, 8, 16], strides = [1, 1, 1]} : vector<8x8x16xf32> to vector<1x8x16xf32>
    %167 = vector.shape_cast %166 : vector<1x8x16xf32> to vector<8x16xf32>
    %cst_56 = arith.constant dense<0.000000e+00> : vector<8x16xf32>
    %168 = tpu.matmul %165, %39, %cst_56 {dimension_numbers = #tpu.dot_dimension_numbers<[1], [0], [0], [1], [0, 0, 1, 1], [], []>} : vector<8x16xf32>, vector<16x16xf32>, vector<8x16xf32> -> vector<8x16xf32>
    %169 = arith.addf %167, %168 : vector<8x16xf32>
    %170 = arith.negf %169 : vector<8x16xf32>
    %171 = math.exp %170 : vector<8x16xf32>
    %cst_57 = arith.constant 1.000000e+00 : f32
    %172 = vector.broadcast %cst_57 : f32 to vector<8x16xf32>
    %173 = arith.addf %172, %171 : vector<8x16xf32>
    %174 = arith.divf %172, %173 : vector<8x16xf32>
    %175 = vector.extract_strided_slice %32 {offsets = [4, 0, 0], sizes = [1, 8, 16], strides = [1, 1, 1]} : vector<8x8x16xf32> to vector<1x8x16xf32>
    %176 = vector.shape_cast %175 : vector<1x8x16xf32> to vector<8x16xf32>
    %cst_58 = arith.constant dense<0.000000e+00> : vector<8x16xf32>
    %177 = tpu.matmul %165, %40, %cst_58 {dimension_numbers = #tpu.dot_dimension_numbers<[1], [0], [0], [1], [0, 0, 1, 1], [], []>} : vector<8x16xf32>, vector<16x16xf32>, vector<8x16xf32> -> vector<8x16xf32>
    %178 = arith.addf %176, %177 : vector<8x16xf32>
    %179 = arith.negf %178 : vector<8x16xf32>
    %180 = math.exp %179 : vector<8x16xf32>
    %cst_59 = arith.constant 1.000000e+00 : f32
    %181 = vector.broadcast %cst_59 : f32 to vector<8x16xf32>
    %182 = arith.addf %181, %180 : vector<8x16xf32>
    %183 = arith.divf %181, %182 : vector<8x16xf32>
    %184 = vector.extract_strided_slice %38 {offsets = [4, 0, 0], sizes = [1, 8, 16], strides = [1, 1, 1]} : vector<8x8x16xf32> to vector<1x8x16xf32>
    %185 = vector.shape_cast %184 : vector<1x8x16xf32> to vector<8x16xf32>
    %cst_60 = arith.constant dense<0.000000e+00> : vector<8x16xf32>
    %186 = tpu.matmul %165, %41, %cst_60 {dimension_numbers = #tpu.dot_dimension_numbers<[1], [0], [0], [1], [0, 0, 1, 1], [], []>} : vector<8x16xf32>, vector<16x16xf32>, vector<8x16xf32> -> vector<8x16xf32>
    %187 = arith.addf %186, %44 : vector<8x16xf32>
    %188 = arith.mulf %174, %187 : vector<8x16xf32>
    %189 = arith.addf %185, %188 : vector<8x16xf32>
    %190 = math.tanh %189 : vector<8x16xf32>
    %cst_61 = arith.constant 1.000000e+00 : f32
    %191 = vector.broadcast %cst_61 : f32 to vector<8x16xf32>
    %192 = arith.subf %191, %183 : vector<8x16xf32>
    %193 = arith.mulf %192, %190 : vector<8x16xf32>
    %194 = arith.mulf %183, %165 : vector<8x16xf32>
    %195 = arith.addf %193, %194 : vector<8x16xf32>
    %196 = vector.extract_strided_slice %26 {offsets = [5, 0, 0], sizes = [1, 8, 16], strides = [1, 1, 1]} : vector<8x8x16xf32> to vector<1x8x16xf32>
    %197 = vector.shape_cast %196 : vector<1x8x16xf32> to vector<8x16xf32>
    %cst_62 = arith.constant dense<0.000000e+00> : vector<8x16xf32>
    %198 = tpu.matmul %195, %39, %cst_62 {dimension_numbers = #tpu.dot_dimension_numbers<[1], [0], [0], [1], [0, 0, 1, 1], [], []>} : vector<8x16xf32>, vector<16x16xf32>, vector<8x16xf32> -> vector<8x16xf32>
    %199 = arith.addf %197, %198 : vector<8x16xf32>
    %200 = arith.negf %199 : vector<8x16xf32>
    %201 = math.exp %200 : vector<8x16xf32>
    %cst_63 = arith.constant 1.000000e+00 : f32
    %202 = vector.broadcast %cst_63 : f32 to vector<8x16xf32>
    %203 = arith.addf %202, %201 : vector<8x16xf32>
    %204 = arith.divf %202, %203 : vector<8x16xf32>
    %205 = vector.extract_strided_slice %32 {offsets = [5, 0, 0], sizes = [1, 8, 16], strides = [1, 1, 1]} : vector<8x8x16xf32> to vector<1x8x16xf32>
    %206 = vector.shape_cast %205 : vector<1x8x16xf32> to vector<8x16xf32>
    %cst_64 = arith.constant dense<0.000000e+00> : vector<8x16xf32>
    %207 = tpu.matmul %195, %40, %cst_64 {dimension_numbers = #tpu.dot_dimension_numbers<[1], [0], [0], [1], [0, 0, 1, 1], [], []>} : vector<8x16xf32>, vector<16x16xf32>, vector<8x16xf32> -> vector<8x16xf32>
    %208 = arith.addf %206, %207 : vector<8x16xf32>
    %209 = arith.negf %208 : vector<8x16xf32>
    %210 = math.exp %209 : vector<8x16xf32>
    %cst_65 = arith.constant 1.000000e+00 : f32
    %211 = vector.broadcast %cst_65 : f32 to vector<8x16xf32>
    %212 = arith.addf %211, %210 : vector<8x16xf32>
    %213 = arith.divf %211, %212 : vector<8x16xf32>
    %214 = vector.extract_strided_slice %38 {offsets = [5, 0, 0], sizes = [1, 8, 16], strides = [1, 1, 1]} : vector<8x8x16xf32> to vector<1x8x16xf32>
    %215 = vector.shape_cast %214 : vector<1x8x16xf32> to vector<8x16xf32>
    %cst_66 = arith.constant dense<0.000000e+00> : vector<8x16xf32>
    %216 = tpu.matmul %195, %41, %cst_66 {dimension_numbers = #tpu.dot_dimension_numbers<[1], [0], [0], [1], [0, 0, 1, 1], [], []>} : vector<8x16xf32>, vector<16x16xf32>, vector<8x16xf32> -> vector<8x16xf32>
    %217 = arith.addf %216, %44 : vector<8x16xf32>
    %218 = arith.mulf %204, %217 : vector<8x16xf32>
    %219 = arith.addf %215, %218 : vector<8x16xf32>
    %220 = math.tanh %219 : vector<8x16xf32>
    %cst_67 = arith.constant 1.000000e+00 : f32
    %221 = vector.broadcast %cst_67 : f32 to vector<8x16xf32>
    %222 = arith.subf %221, %213 : vector<8x16xf32>
    %223 = arith.mulf %222, %220 : vector<8x16xf32>
    %224 = arith.mulf %213, %195 : vector<8x16xf32>
    %225 = arith.addf %223, %224 : vector<8x16xf32>
    %226 = vector.extract_strided_slice %26 {offsets = [6, 0, 0], sizes = [1, 8, 16], strides = [1, 1, 1]} : vector<8x8x16xf32> to vector<1x8x16xf32>
    %227 = vector.shape_cast %226 : vector<1x8x16xf32> to vector<8x16xf32>
    %cst_68 = arith.constant dense<0.000000e+00> : vector<8x16xf32>
    %228 = tpu.matmul %225, %39, %cst_68 {dimension_numbers = #tpu.dot_dimension_numbers<[1], [0], [0], [1], [0, 0, 1, 1], [], []>} : vector<8x16xf32>, vector<16x16xf32>, vector<8x16xf32> -> vector<8x16xf32>
    %229 = arith.addf %227, %228 : vector<8x16xf32>
    %230 = arith.negf %229 : vector<8x16xf32>
    %231 = math.exp %230 : vector<8x16xf32>
    %cst_69 = arith.constant 1.000000e+00 : f32
    %232 = vector.broadcast %cst_69 : f32 to vector<8x16xf32>
    %233 = arith.addf %232, %231 : vector<8x16xf32>
    %234 = arith.divf %232, %233 : vector<8x16xf32>
    %235 = vector.extract_strided_slice %32 {offsets = [6, 0, 0], sizes = [1, 8, 16], strides = [1, 1, 1]} : vector<8x8x16xf32> to vector<1x8x16xf32>
    %236 = vector.shape_cast %235 : vector<1x8x16xf32> to vector<8x16xf32>
    %cst_70 = arith.constant dense<0.000000e+00> : vector<8x16xf32>
    %237 = tpu.matmul %225, %40, %cst_70 {dimension_numbers = #tpu.dot_dimension_numbers<[1], [0], [0], [1], [0, 0, 1, 1], [], []>} : vector<8x16xf32>, vector<16x16xf32>, vector<8x16xf32> -> vector<8x16xf32>
    %238 = arith.addf %236, %237 : vector<8x16xf32>
    %239 = arith.negf %238 : vector<8x16xf32>
    %240 = math.exp %239 : vector<8x16xf32>
    %cst_71 = arith.constant 1.000000e+00 : f32
    %241 = vector.broadcast %cst_71 : f32 to vector<8x16xf32>
    %242 = arith.addf %241, %240 : vector<8x16xf32>
    %243 = arith.divf %241, %242 : vector<8x16xf32>
    %244 = vector.extract_strided_slice %38 {offsets = [6, 0, 0], sizes = [1, 8, 16], strides = [1, 1, 1]} : vector<8x8x16xf32> to vector<1x8x16xf32>
    %245 = vector.shape_cast %244 : vector<1x8x16xf32> to vector<8x16xf32>
    %cst_72 = arith.constant dense<0.000000e+00> : vector<8x16xf32>
    %246 = tpu.matmul %225, %41, %cst_72 {dimension_numbers = #tpu.dot_dimension_numbers<[1], [0], [0], [1], [0, 0, 1, 1], [], []>} : vector<8x16xf32>, vector<16x16xf32>, vector<8x16xf32> -> vector<8x16xf32>
    %247 = arith.addf %246, %44 : vector<8x16xf32>
    %248 = arith.mulf %234, %247 : vector<8x16xf32>
    %249 = arith.addf %245, %248 : vector<8x16xf32>
    %250 = math.tanh %249 : vector<8x16xf32>
    %cst_73 = arith.constant 1.000000e+00 : f32
    %251 = vector.broadcast %cst_73 : f32 to vector<8x16xf32>
    %252 = arith.subf %251, %243 : vector<8x16xf32>
    %253 = arith.mulf %252, %250 : vector<8x16xf32>
    %254 = arith.mulf %243, %225 : vector<8x16xf32>
    %255 = arith.addf %253, %254 : vector<8x16xf32>
    %256 = vector.extract_strided_slice %26 {offsets = [7, 0, 0], sizes = [1, 8, 16], strides = [1, 1, 1]} : vector<8x8x16xf32> to vector<1x8x16xf32>
    %257 = vector.shape_cast %256 : vector<1x8x16xf32> to vector<8x16xf32>
    %cst_74 = arith.constant dense<0.000000e+00> : vector<8x16xf32>
    %258 = tpu.matmul %255, %39, %cst_74 {dimension_numbers = #tpu.dot_dimension_numbers<[1], [0], [0], [1], [0, 0, 1, 1], [], []>} : vector<8x16xf32>, vector<16x16xf32>, vector<8x16xf32> -> vector<8x16xf32>
    %259 = arith.addf %257, %258 : vector<8x16xf32>
    %260 = arith.negf %259 : vector<8x16xf32>
    %261 = math.exp %260 : vector<8x16xf32>
    %cst_75 = arith.constant 1.000000e+00 : f32
    %262 = vector.broadcast %cst_75 : f32 to vector<8x16xf32>
    %263 = arith.addf %262, %261 : vector<8x16xf32>
    %264 = arith.divf %262, %263 : vector<8x16xf32>
    %265 = vector.extract_strided_slice %32 {offsets = [7, 0, 0], sizes = [1, 8, 16], strides = [1, 1, 1]} : vector<8x8x16xf32> to vector<1x8x16xf32>
    %266 = vector.shape_cast %265 : vector<1x8x16xf32> to vector<8x16xf32>
    %cst_76 = arith.constant dense<0.000000e+00> : vector<8x16xf32>
    %267 = tpu.matmul %255, %40, %cst_76 {dimension_numbers = #tpu.dot_dimension_numbers<[1], [0], [0], [1], [0, 0, 1, 1], [], []>} : vector<8x16xf32>, vector<16x16xf32>, vector<8x16xf32> -> vector<8x16xf32>
    %268 = arith.addf %266, %267 : vector<8x16xf32>
    %269 = arith.negf %268 : vector<8x16xf32>
    %270 = math.exp %269 : vector<8x16xf32>
    %cst_77 = arith.constant 1.000000e+00 : f32
    %271 = vector.broadcast %cst_77 : f32 to vector<8x16xf32>
    %272 = arith.addf %271, %270 : vector<8x16xf32>
    %273 = arith.divf %271, %272 : vector<8x16xf32>
    %274 = vector.extract_strided_slice %38 {offsets = [7, 0, 0], sizes = [1, 8, 16], strides = [1, 1, 1]} : vector<8x8x16xf32> to vector<1x8x16xf32>
    %275 = vector.shape_cast %274 : vector<1x8x16xf32> to vector<8x16xf32>
    %cst_78 = arith.constant dense<0.000000e+00> : vector<8x16xf32>
    %276 = tpu.matmul %255, %41, %cst_78 {dimension_numbers = #tpu.dot_dimension_numbers<[1], [0], [0], [1], [0, 0, 1, 1], [], []>} : vector<8x16xf32>, vector<16x16xf32>, vector<8x16xf32> -> vector<8x16xf32>
    %277 = arith.addf %276, %44 : vector<8x16xf32>
    %278 = arith.mulf %264, %277 : vector<8x16xf32>
    %279 = arith.addf %275, %278 : vector<8x16xf32>
    %280 = math.tanh %279 : vector<8x16xf32>
    %cst_79 = arith.constant 1.000000e+00 : f32
    %281 = vector.broadcast %cst_79 : f32 to vector<8x16xf32>
    %282 = arith.subf %281, %273 : vector<8x16xf32>
    %283 = arith.mulf %282, %280 : vector<8x16xf32>
    %284 = arith.mulf %273, %255 : vector<8x16xf32>
    %285 = arith.addf %283, %284 : vector<8x16xf32>
    %c0_80 = arith.constant 0 : index
    %c0_81 = arith.constant 0 : index
    %286 = vector.load %arg16[%c0_80, %c0_81] : memref<8x16xf32, #tpu.memory_space<vmem>>, vector<8x16xf32>
    tpu.vector_store %arg16[%c0_80, %c0_81], %285 {strides = array<i32>} : memref<8x16xf32, #tpu.memory_space<vmem>>, vector<8x16xf32>,
    %287 = vector.shape_cast %75 : vector<8x16xf32> to vector<1x8x16xf32>
    %288 = vector.shape_cast %105 : vector<8x16xf32> to vector<1x8x16xf32>
    %289 = vector.shape_cast %135 : vector<8x16xf32> to vector<1x8x16xf32>
    %290 = vector.shape_cast %165 : vector<8x16xf32> to vector<1x8x16xf32>
    %291 = vector.shape_cast %195 : vector<8x16xf32> to vector<1x8x16xf32>
    %292 = vector.shape_cast %225 : vector<8x16xf32> to vector<1x8x16xf32>
    %293 = vector.shape_cast %255 : vector<8x16xf32> to vector<1x8x16xf32>
    %294 = vector.shape_cast %285 : vector<8x16xf32> to vector<1x8x16xf32>
    %295 = tpu.concatenate %287, %288, %289, %290, %291, %292, %293, %294 in 0 : vector<1x8x16xf32>, vector<1x8x16xf32>, vector<1x8x16xf32>, vector<1x8x16xf32>, vector<1x8x16xf32>, vector<1x8x16xf32>, vector<1x8x16xf32>, vector<1x8x16xf32> -> vector<8x8x16xf32>
    %cst_82 = arith.constant dense<0.000000e+00> : vector<8x8xf32>
    %296 = vector.multi_reduction <add>, %295, %cst_82 [2] : vector<8x8x16xf32> to vector<8x8xf32>
    %297 = vector.shape_cast %296 : vector<8x8xf32> to vector<8x8x1xf32>
    %cst_83 = arith.constant 1.600000e+01 : f32
    %298 = vector.broadcast %cst_83 : f32 to vector<8x8x1xf32>
    %299 = arith.divf %297, %298 : vector<8x8x1xf32>
    %300 = vector.broadcast %299 : vector<8x8x1xf32> to vector<8x8x16xf32>
    %301 = arith.subf %295, %300 : vector<8x8x16xf32>
    %302 = arith.mulf %301, %301 : vector<8x8x16xf32>
    %cst_84 = arith.constant dense<0.000000e+00> : vector<8x8xf32>
    %303 = vector.multi_reduction <add>, %302, %cst_84 [2] : vector<8x8x16xf32> to vector<8x8xf32>
    %304 = vector.shape_cast %303 : vector<8x8xf32> to vector<8x8x1xf32>
    %cst_85 = arith.constant 1.600000e+01 : f32
    %305 = vector.broadcast %cst_85 : f32 to vector<8x8x1xf32>
    %306 = arith.divf %304, %305 : vector<8x8x1xf32>
    %cst_86 = arith.constant 9.99999974E-6 : f32
    %307 = vector.broadcast %cst_86 : f32 to vector<8x8x1xf32>
    %308 = arith.addf %306, %307 : vector<8x8x1xf32>
    %309 = math.rsqrt %308 : vector<8x8x1xf32>
    %310 = vector.broadcast %309 : vector<8x8x1xf32> to vector<8x8x16xf32>
    %311 = arith.mulf %301, %310 : vector<8x8x16xf32>
    %c0_87 = arith.constant 0 : index
    %c0_88 = arith.constant 0 : index
    %312 = vector.load %arg13[%c0_87, %c0_88] : memref<1x16xf32, #tpu.memory_space<vmem>>, vector<1x16xf32>
    %313 = vector.shape_cast %312 : vector<1x16xf32> to vector<1x1x16xf32>
    %314 = vector.broadcast %313 : vector<1x1x16xf32> to vector<8x8x16xf32>
    %315 = arith.mulf %311, %314 : vector<8x8x16xf32>
    %c0_89 = arith.constant 0 : index
    %c0_90 = arith.constant 0 : index
    %316 = vector.load %arg14[%c0_89, %c0_90] : memref<1x16xf32, #tpu.memory_space<vmem>>, vector<1x16xf32>
    %317 = vector.shape_cast %316 : vector<1x16xf32> to vector<1x1x16xf32>
    %318 = vector.broadcast %317 : vector<1x1x16xf32> to vector<8x8x16xf32>
    %319 = arith.addf %315, %318 : vector<8x8x16xf32>
    %c0_91 = arith.constant 0 : index
    %c0_92 = arith.constant 0 : index
    %c0_93 = arith.constant 0 : index
    %320 = vector.load %arg15[%c0_91, %c0_92, %c0_93] : memref<8x8x16xf32, #tpu.memory_space<vmem>>, vector<8x8x16xf32>
    tpu.vector_store %arg15[%c0_91, %c0_92, %c0_93], %319 {strides = array<i32>} : memref<8x8x16xf32, #tpu.memory_space<vmem>>, vector<8x8x16xf32>,
    return
  }
  func.func @transform_0(%arg0: i32, %arg1: i32) -> (i32, i32, i32) {
    %c0_i32 = arith.constant 0 : i32
    %c0_i32_0 = arith.constant 0 : i32
    return %arg1, %arg0, %c0_i32 : i32, i32, i32
  }
  func.func @transform_1(%arg0: i32, %arg1: i32) -> (i32, i32) {
    %c0_i32 = arith.constant 0 : i32
    %c0_i32_0 = arith.constant 0 : i32
    %c0_i32_1 = arith.constant 0 : i32
    return %c0_i32, %c0_i32_0 : i32, i32
  }
  func.func @transform_2(%arg0: i32, %arg1: i32) -> (i32, i32) {
    %c0_i32 = arith.constant 0 : i32
    %c0_i32_0 = arith.constant 0 : i32
    %c0_i32_1 = arith.constant 0 : i32
    return %c0_i32, %c0_i32_0 : i32, i32
  }
  func.func @transform_3(%arg0: i32, %arg1: i32) -> (i32, i32) {
    %c0_i32 = arith.constant 0 : i32
    %c0_i32_0 = arith.constant 0 : i32
    %c0_i32_1 = arith.constant 0 : i32
    return %c0_i32, %c0_i32_0 : i32, i32
  }
  func.func @transform_4(%arg0: i32, %arg1: i32) -> (i32, i32) {
    %c0_i32 = arith.constant 0 : i32
    %c0_i32_0 = arith.constant 0 : i32
    %c0_i32_1 = arith.constant 0 : i32
    return %c0_i32, %c0_i32_0 : i32, i32
  }
  func.func @transform_5(%arg0: i32, %arg1: i32) -> (i32, i32) {
    %c0_i32 = arith.constant 0 : i32
    %c0_i32_0 = arith.constant 0 : i32
    %c0_i32_1 = arith.constant 0 : i32
    return %c0_i32, %c0_i32_0 : i32, i32
  }
  func.func @transform_6(%arg0: i32, %arg1: i32) -> (i32, i32) {
    %c0_i32 = arith.constant 0 : i32
    %c0_i32_0 = arith.constant 0 : i32
    %c0_i32_1 = arith.constant 0 : i32
    return %c0_i32, %c0_i32_0 : i32, i32
  }
  func.func @transform_7(%arg0: i32, %arg1: i32) -> (i32, i32) {
    %c0_i32 = arith.constant 0 : i32
    %c0_i32_0 = arith.constant 0 : i32
    %c0_i32_1 = arith.constant 0 : i32
    return %c0_i32, %c0_i32_0 : i32, i32
  }
  func.func @transform_8(%arg0: i32, %arg1: i32) -> (i32, i32) {
    %c0_i32 = arith.constant 0 : i32
    %c0_i32_0 = arith.constant 0 : i32
    %c0_i32_1 = arith.constant 0 : i32
    return %c0_i32, %c0_i32_0 : i32, i32
  }
  func.func @transform_9(%arg0: i32, %arg1: i32) -> (i32, i32) {
    %c0_i32 = arith.constant 0 : i32
    %c0_i32_0 = arith.constant 0 : i32
    %c0_i32_1 = arith.constant 0 : i32
    return %c0_i32, %c0_i32_0 : i32, i32
  }
  func.func @transform_10(%arg0: i32, %arg1: i32) -> (i32, i32) {
    %c0_i32 = arith.constant 0 : i32
    %c0_i32_0 = arith.constant 0 : i32
    %c0_i32_1 = arith.constant 0 : i32
    return %c0_i32, %c0_i32_0 : i32, i32
  }
  func.func @transform_11(%arg0: i32, %arg1: i32) -> (i32, i32) {
    %c0_i32 = arith.constant 0 : i32
    %c0_i32_0 = arith.constant 0 : i32
    %c0_i32_1 = arith.constant 0 : i32
    return %c0_i32, %c0_i32_0 : i32, i32
  }
  func.func @transform_12(%arg0: i32, %arg1: i32) -> (i32, i32) {
    %c0_i32 = arith.constant 0 : i32
    %c0_i32_0 = arith.constant 0 : i32
    %c0_i32_1 = arith.constant 0 : i32
    return %c0_i32, %c0_i32_0 : i32, i32
  }
  func.func @transform_13(%arg0: i32, %arg1: i32) -> (i32, i32, i32) {
    %c0_i32 = arith.constant 0 : i32
    %c0_i32_0 = arith.constant 0 : i32
    return %arg1, %arg0, %c0_i32 : i32, i32, i32
  }
}

</mosaic_0001>

<llo_original>
// kernel: tpu_custom_call.1
$region0: #{tpu_custom_call.1}
  #allocation0 [shape = 'u32[]', space=smem, size = 0x4, offset = 0x4, fixed_abs, tag = 'smem constant byte address 0x4 - core index']
  #allocation1 [shape = 'u32[144,128]{1,0:T(1,128)}', space=vmem, size = 0x12000, scoped, tag = 'internal scratch']
  #allocation2 [shape = 'f32[8,16]{1,0:T(8,128)}', space=vmem, size = 0x1000, scoped, tag = 'scratch operand']
  %s0 = inlined_call_operand.vmem [shape: f32[16,8,32], index: 0, kind: input, shape index: {}]
  %s1 = inlined_call_operand.vmem [shape: f32[32,16], index: 1, kind: input, shape index: {}]
  %s2 = inlined_call_operand.vmem [shape: f32[32,16], index: 2, kind: input, shape index: {}]
  %s3 = inlined_call_operand.vmem [shape: f32[32,16], index: 3, kind: input, shape index: {}]
  %s4 = inlined_call_operand.hbm [shape: f32[16,16], index: 4, kind: input, shape index: {}]
  %s5 = inlined_call_operand.vmem [shape: f32[16,16], index: 5, kind: input, shape index: {}]
  %s6 = inlined_call_operand.hbm [shape: f32[16,16], index: 6, kind: input, shape index: {}]
  %s7 = inlined_call_operand.vmem [shape: f32[1,16], index: 7, kind: input, shape index: {}]
  %s8 = inlined_call_operand.vmem [shape: f32[1,16], index: 8, kind: input, shape index: {}]
  %s9 = inlined_call_operand.vmem [shape: f32[1,16], index: 9, kind: input, shape index: {}]
  %s10 = inlined_call_operand.vmem [shape: f32[1,16], index: 10, kind: input, shape index: {}]
  %s11 = inlined_call_operand.vmem [shape: f32[1,16], index: 11, kind: input, shape index: {}]
  %s12 = inlined_call_operand.vmem [shape: f32[1,16], index: 12, kind: input, shape index: {}]
  %s13 = inlined_call_operand.hbm [shape: f32[16,8,16], index: 13, kind: output, shape index: {}]
  %s14 = sld [smem:[#allocation0]]
  $region97: #{tpu_custom_call.1} parent=0
    _
  %s16 = ssub.s32 1, %s14
  %s17 = scalar_select 0, %s16, %s14
  $region1: #{tpu_custom_call.1} parent=0
    #allocation3 [shape = 'u8[8192]{0}', space=vmem, size = 0x2000, scoped, tag = 'input window, operand 4, single buffered']
    #allocation4 [shape = 's32[2]{0}', space=sflag, size = 0x8, scoped, tag = 'scoped memory for tpu_custom_call.1']
    #allocation5 [shape = 's32[2]{0}', space=sflag, size = 0x8, scoped, tag = 'scoped memory for tpu_custom_call.1']
    #allocation6 [shape = 'u8[8192]{0}', space=vmem, size = 0x2000, scoped, tag = 'input window, operand 6, single buffered']
    #allocation7 [shape = 's32[1]{0}', space=sflag, size = 0x4, scoped, tag = 'scoped memory for tpu_custom_call.1']
    #allocation8 [shape = 'u8[65536]{0}', space=vmem, size = 0x10000, scoped, tag = 'output window, operand 0']
    %18 = vsyncpa [#allocation4], 0
    %19 = vsyncpa [#allocation7], 0
    %20 = vsyncpa [#allocation5], 0
    %s21 = scalar_lea.sflag [#allocation5], 1
    %22 = vsyncpa %s21, 0
    loop: start=0, step=1, limit=4
    $region2: #{tpu_custom_call.1} parent=1 // loop_pre_header
      _
    $region3: #{tpu_custom_call.1} parent=1 // loop_header
      %s24 = sphi 0, %s28
      %p25 = scmp.ge.s32.totalorder %s24, 4
      %s31 = sphi 0, %s43
      %s32 = sphi 0, %s39
      %s33 = sphi 0, %s31
      %s34 = sphi 0, %s32
      %s35 = sphi 0, %s33
      %s36 = sphi 0, %s34
      %s48 = sphi 0, %s50
      %s51 = sphi 0, %s48
      %s52 = sphi 0, %s51
      %s68 = sphi 0, %s52
      %s72 = sphi 0, %s72
      %s74 = sphi 0, %s72
      %s75 = sphi 0, %s74
      %s89 = sphi 0, %s75
      %s93 = sphi 0, %s93
      %s95 = sphi 0, %s93
      %s96 = sphi 0, %s95
      %s110 = sphi 0, %s96
      %s114 = sphi 0, %s114
      %s116 = sphi 0, %s114
      %s117 = sphi 0, %s116
      %s131 = sphi 0, %s117
      %s135 = sphi 0, %s135
      %s137 = sphi 0, %s135
      %s138 = sphi 0, %s137
      %s152 = sphi 0, %s138
      %s156 = sphi 0, %s156
      %s158 = sphi 0, %s156
      %s159 = sphi 0, %s158
      %s173 = sphi 0, %s159
      %s177 = sphi 0, %s177
      %s179 = sphi 0, %s177
      %s180 = sphi 0, %s179
      %s194 = sphi 0, %s180
      %s198 = sphi 0, %s198
      %s200 = sphi 0, %s198
      %s201 = sphi 0, %s200
      %s215 = sphi 0, %s201
      %s219 = sphi 0, %s219
      %s221 = sphi 0, %s219
      %s222 = sphi 0, %s221
      %s236 = sphi 0, %s222
      %s240 = sphi 0, %s240
      %s242 = sphi 0, %s240
      %s243 = sphi 0, %s242
      %s257 = sphi 0, %s243
      %s261 = sphi 0, %s261
      %s263 = sphi 0, %s261
      %s264 = sphi 0, %s263
      %s278 = sphi 0, %s264
      %s282 = sphi 0, %s282
      %s284 = sphi 0, %s282
      %s285 = sphi 0, %s284
      %s299 = sphi 0, %s285
      %s303 = sphi 0, %s303
      %s305 = sphi 0, %s303
      %s306 = sphi 0, %s305
      %s320 = sphi 0, %s306
      %s328 = sphi 0, %s330
      %s331 = sphi 0, %s328
      %s332 = sphi 0, %s331
      %s348 = sphi 0, %s332
    $region4: #{tpu_custom_call.1} parent=1 // loop_header_branch
      %27 = sbr.rel (%p25) target = $region8
    $region5: #{tpu_custom_call.1} parent=1 // loop_body
      %s29 = ssub.s32 %s24, 1
      %s30 = ssub.s32 %s24, 2
      %s37 = sadd.s32 1, %s32
      %p38 = scmp.ge.s32.totalorder %s37, 2
      %s39 = scalar_select %p38, 0, %s37
      %s40 = sadd.s32 1, %s31
      %s41 = scalar_select %p38, %s40, %s31
      %p42 = scmp.ge.s32.totalorder %s41, 1
      %s43 = scalar_select %p42, 0, %s41
      %s44 = ssub.s32 %s32, %s39
      %s45 = ssub.s32 %s31, %s43
      %s46 = sor.u32 %s44, %s45
      %p47 = scmp.eq.s32.totalorder %s46, 0
      %s49 = sadd.s32 %s48, 1
      %s50 = scalar_select %p47, %s48, %s49
      %p53 = pneg %p47
      %p54 = scmp.eq.s32.totalorder %s24, 1
      %p55 = por %p53, %p54
      %p56 = scmp.ne.s32.totalorder %s48, %s51
      %p57 = scmp.eq.s32.totalorder %s24, 0
      %p58 = por %p56, %p57
      %p59 = scmp.ne.s32.totalorder %s48, %s51
      %p60 = scmp.eq.s32.totalorder %s29, 1
      %p61 = por %p59, %p60
      %p62 = scmp.ne.s32.totalorder %s51, %s52
      %p63 = scmp.eq.s32.totalorder %s29, 0
      %p64 = por %p62, %p63
      %p65 = scmp.ne.s32.totalorder %s51, %s52
      %p66 = scmp.eq.s32.totalorder %s30, 1
      %p67 = por %p65, %p66
      %p69 = scmp.ne.s32.totalorder %s52, %s68
      %p70 = scmp.eq.s32.totalorder %s30, 0
      %p71 = por %p69, %p70
      %s73 = sadd.s32 %s72, 1
      %p76 = scmp.eq.s32.totalorder %s24, 1
      %p77 = scmp.ne.s32.totalorder %s72, %s74
      %p78 = scmp.eq.s32.totalorder %s24, 0
      %p79 = por %p77, %p78
      %p80 = scmp.ne.s32.totalorder %s72, %s74
      %p81 = scmp.eq.s32.totalorder %s29, 1
      %p82 = por %p80, %p81
      %p83 = scmp.ne.s32.totalorder %s74, %s75
      %p84 = scmp.eq.s32.totalorder %s29, 0
      %p85 = por %p83, %p84
      %p86 = scmp.ne.s32.totalorder %s74, %s75
      %p87 = scmp.eq.s32.totalorder %s30, 1
      %p88 = por %p86, %p87
      %p90 = scmp.ne.s32.totalorder %s75, %s89
      %p91 = scmp.eq.s32.totalorder %s30, 0
      %p92 = por %p90, %p91
      %s94 = sadd.s32 %s93, 1
      %p97 = scmp.eq.s32.totalorder %s24, 1
      %p98 = scmp.ne.s32.totalorder %s93, %s95
      %p99 = scmp.eq.s32.totalorder %s24, 0
      %p100 = por %p98, %p99
      %p101 = scmp.ne.s32.totalorder %s93, %s95
      %p102 = scmp.eq.s32.totalorder %s29, 1
      %p103 = por %p101, %p102
      %p104 = scmp.ne.s32.totalorder %s95, %s96
      %p105 = scmp.eq.s32.totalorder %s29, 0
      %p106 = por %p104, %p105
      %p107 = scmp.ne.s32.totalorder %s95, %s96
      %p108 = scmp.eq.s32.totalorder %s30, 1
      %p109 = por %p107, %p108
      %p111 = scmp.ne.s32.totalorder %s96, %s110
      %p112 = scmp.eq.s32.totalorder %s30, 0
      %p113 = por %p111, %p112
      %s115 = sadd.s32 %s114, 1
      %p118 = scmp.eq.s32.totalorder %s24, 1
      %p119 = scmp.ne.s32.totalorder %s114, %s116
      %p120 = scmp.eq.s32.totalorder %s24, 0
      %p121 = por %p119, %p120
      %p122 = scmp.ne.s32.totalorder %s114, %s116
      %p123 = scmp.eq.s32.totalorder %s29, 1
      %p124 = por %p122, %p123
      %p125 = scmp.ne.s32.totalorder %s116, %s117
      %p126 = scmp.eq.s32.totalorder %s29, 0
      %p127 = por %p125, %p126
      %p128 = scmp.ne.s32.totalorder %s116, %s117
      %p129 = scmp.eq.s32.totalorder %s30, 1
      %p130 = por %p128, %p129
      %p132 = scmp.ne.s32.totalorder %s117, %s131
      %p133 = scmp.eq.s32.totalorder %s30, 0
      %p134 = por %p132, %p133
      %s136 = sadd.s32 %s135, 1
      %p139 = scmp.eq.s32.totalorder %s24, 1
      %p140 = scmp.ne.s32.totalorder %s135, %s137
      %p141 = scmp.eq.s32.totalorder %s24, 0
      %p142 = por %p140, %p141
      %p143 = scmp.ne.s32.totalorder %s135, %s137
      %p144 = scmp.eq.s32.totalorder %s29, 1
      %p145 = por %p143, %p144
      %p146 = scmp.ne.s32.totalorder %s137, %s138
      %p147 = scmp.eq.s32.totalorder %s29, 0
      %p148 = por %p146, %p147
      %p149 = scmp.ne.s32.totalorder %s137, %s138
      %p150 = scmp.eq.s32.totalorder %s30, 1
      %p151 = por %p149, %p150
      %p153 = scmp.ne.s32.totalorder %s138, %s152
      %p154 = scmp.eq.s32.totalorder %s30, 0
      %p155 = por %p153, %p154
      %s157 = sadd.s32 %s156, 1
      %p160 = scmp.eq.s32.totalorder %s24, 1
      %p161 = scmp.ne.s32.totalorder %s156, %s158
      %p162 = scmp.eq.s32.totalorder %s24, 0
      %p163 = por %p161, %p162
      %p164 = scmp.ne.s32.totalorder %s156, %s158
      %p165 = scmp.eq.s32.totalorder %s29, 1
      %p166 = por %p164, %p165
      %p167 = scmp.ne.s32.totalorder %s158, %s159
      %p168 = scmp.eq.s32.totalorder %s29, 0
      %p169 = por %p167, %p168
      %p170 = scmp.ne.s32.totalorder %s158, %s159
      %p171 = scmp.eq.s32.totalorder %s30, 1
      %p172 = por %p170, %p171
      %p174 = scmp.ne.s32.totalorder %s159, %s173
      %p175 = scmp.eq.s32.totalorder %s30, 0
      %p176 = por %p174, %p175
      %s178 = sadd.s32 %s177, 1
      %p181 = scmp.eq.s32.totalorder %s24, 1
      %p182 = scmp.ne.s32.totalorder %s177, %s179
      %p183 = scmp.eq.s32.totalorder %s24, 0
      %p184 = por %p182, %p183
      %p185 = scmp.ne.s32.totalorder %s177, %s179
      %p186 = scmp.eq.s32.totalorder %s29, 1
      %p187 = por %p185, %p186
      %p188 = scmp.ne.s32.totalorder %s179, %s180
      %p189 = scmp.eq.s32.totalorder %s29, 0
      %p190 = por %p188, %p189
      %p191 = scmp.ne.s32.totalorder %s179, %s180
      %p192 = scmp.eq.s32.totalorder %s30, 1
      %p193 = por %p191, %p192
      %p195 = scmp.ne.s32.totalorder %s180, %s194
      %p196 = scmp.eq.s32.totalorder %s30, 0
      %p197 = por %p195, %p196
      %s199 = sadd.s32 %s198, 1
      %p202 = scmp.eq.s32.totalorder %s24, 1
      %p203 = scmp.ne.s32.totalorder %s198, %s200
      %p204 = scmp.eq.s32.totalorder %s24, 0
      %p205 = por %p203, %p204
      %p206 = scmp.ne.s32.totalorder %s198, %s200
      %p207 = scmp.eq.s32.totalorder %s29, 1
      %p208 = por %p206, %p207
      %p209 = scmp.ne.s32.totalorder %s200, %s201
      %p210 = scmp.eq.s32.totalorder %s29, 0
      %p211 = por %p209, %p210
      %p212 = scmp.ne.s32.totalorder %s200, %s201
      %p213 = scmp.eq.s32.totalorder %s30, 1
      %p214 = por %p212, %p213
      %p216 = scmp.ne.s32.totalorder %s201, %s215
      %p217 = scmp.eq.s32.totalorder %s30, 0
      %p218 = por %p216, %p217
      %s220 = sadd.s32 %s219, 1
      %p223 = scmp.eq.s32.totalorder %s24, 1
      %p224 = scmp.ne.s32.totalorder %s219, %s221
      %p225 = scmp.eq.s32.totalorder %s24, 0
      %p226 = por %p224, %p225
      %p227 = scmp.ne.s32.totalorder %s219, %s221
      %p228 = scmp.eq.s32.totalorder %s29, 1
      %p229 = por %p227, %p228
      %p230 = scmp.ne.s32.totalorder %s221, %s222
      %p231 = scmp.eq.s32.totalorder %s29, 0
      %p232 = por %p230, %p231
      %p233 = scmp.ne.s32.totalorder %s221, %s222
      %p234 = scmp.eq.s32.totalorder %s30, 1
      %p235 = por %p233, %p234
      %p237 = scmp.ne.s32.totalorder %s222, %s236
      %p238 = scmp.eq.s32.totalorder %s30, 0
      %p239 = por %p237, %p238
      %s241 = sadd.s32 %s240, 1
      %p244 = scmp.eq.s32.totalorder %s24, 1
      %p245 = scmp.ne.s32.totalorder %s240, %s242
      %p246 = scmp.eq.s32.totalorder %s24, 0
      %p247 = por %p245, %p246
      %p248 = scmp.ne.s32.totalorder %s240, %s242
      %p249 = scmp.eq.s32.totalorder %s29, 1
      %p250 = por %p248, %p249
      %p251 = scmp.ne.s32.totalorder %s242, %s243
      %p252 = scmp.eq.s32.totalorder %s29, 0
      %p253 = por %p251, %p252
      %p254 = scmp.ne.s32.totalorder %s242, %s243
      %p255 = scmp.eq.s32.totalorder %s30, 1
      %p256 = por %p254, %p255
      %p258 = scmp.ne.s32.totalorder %s243, %s257
      %p259 = scmp.eq.s32.totalorder %s30, 0
      %p260 = por %p258, %p259
      %s262 = sadd.s32 %s261, 1
      %p265 = scmp.eq.s32.totalorder %s24, 1
      %p266 = scmp.ne.s32.totalorder %s261, %s263
      %p267 = scmp.eq.s32.totalorder %s24, 0
      %p268 = por %p266, %p267
      %p269 = scmp.ne.s32.totalorder %s261, %s263
      %p270 = scmp.eq.s32.totalorder %s29, 1
      %p271 = por %p269, %p270
      %p272 = scmp.ne.s32.totalorder %s263, %s264
      %p273 = scmp.eq.s32.totalorder %s29, 0
      %p274 = por %p272, %p273
      %p275 = scmp.ne.s32.totalorder %s263, %s264
      %p276 = scmp.eq.s32.totalorder %s30, 1
      %p277 = por %p275, %p276
      %p279 = scmp.ne.s32.totalorder %s264, %s278
      %p280 = scmp.eq.s32.totalorder %s30, 0
      %p281 = por %p279, %p280
      %s283 = sadd.s32 %s282, 1
      %p286 = scmp.eq.s32.totalorder %s24, 1
      %p287 = scmp.ne.s32.totalorder %s282, %s284
      %p288 = scmp.eq.s32.totalorder %s24, 0
      %p289 = por %p287, %p288
      %p290 = scmp.ne.s32.totalorder %s282, %s284
      %p291 = scmp.eq.s32.totalorder %s29, 1
      %p292 = por %p290, %p291
      %p293 = scmp.ne.s32.totalorder %s284, %s285
      %p294 = scmp.eq.s32.totalorder %s29, 0
      %p295 = por %p293, %p294
      %p296 = scmp.ne.s32.totalorder %s284, %s285
      %p297 = scmp.eq.s32.totalorder %s30, 1
      %p298 = por %p296, %p297
      %p300 = scmp.ne.s32.totalorder %s285, %s299
      %p301 = scmp.eq.s32.totalorder %s30, 0
      %p302 = por %p300, %p301
      %s304 = sadd.s32 %s303, 1
      %p307 = scmp.eq.s32.totalorder %s24, 1
      %p308 = scmp.ne.s32.totalorder %s303, %s305
      %p309 = scmp.eq.s32.totalorder %s24, 0
      %p310 = por %p308, %p309
      %p311 = scmp.ne.s32.totalorder %s303, %s305
      %p312 = scmp.eq.s32.totalorder %s29, 1
      %p313 = por %p311, %p312
      %p314 = scmp.ne.s32.totalorder %s305, %s306
      %p315 = scmp.eq.s32.totalorder %s29, 0
      %p316 = por %p314, %p315
      %p317 = scmp.ne.s32.totalorder %s305, %s306
      %p318 = scmp.eq.s32.totalorder %s30, 1
      %p319 = por %p317, %p318
      %p321 = scmp.ne.s32.totalorder %s306, %s320
      %p322 = scmp.eq.s32.totalorder %s30, 0
      %p323 = por %p321, %p322
      %s324 = ssub.s32 %s32, %s39
      %s325 = ssub.s32 %s31, %s43
      %s326 = sor.u32 %s324, %s325
      %p327 = scmp.eq.s32.totalorder %s326, 0
      %s329 = sadd.s32 %s328, 1
      %s330 = scalar_select %p327, %s328, %s329
      %p333 = pneg %p327
      %p334 = scmp.eq.s32.totalorder %s24, 1
      %p335 = por %p333, %p334
      %p336 = scmp.ne.s32.totalorder %s328, %s331
      %p337 = scmp.eq.s32.totalorder %s24, 0
      %p338 = por %p336, %p337
      %p339 = scmp.ne.s32.totalorder %s328, %s331
      %p340 = scmp.eq.s32.totalorder %s29, 1
      %p341 = por %p339, %p340
      %p342 = scmp.ne.s32.totalorder %s331, %s332
      %p343 = scmp.eq.s32.totalorder %s29, 0
      %p344 = por %p342, %p343
      %p345 = scmp.ne.s32.totalorder %s331, %s332
      %p346 = scmp.eq.s32.totalorder %s30, 1
      %p347 = por %p345, %p346
      %p349 = scmp.ne.s32.totalorder %s332, %s348
      %p350 = scmp.eq.s32.totalorder %s30, 0
      %p351 = por %p349, %p350
      %p352 = scmp.le.s32.totalorder 1, %s24
      %p353 = scmp.lt.s32.totalorder %s24, 3
      %p354 = pnand %p352, %p353
      %p355 = pneg %p354
      // Predicated region
      $region9: #{tpu_custom_call.1} parent=5 // pred_check
        _
      $region10: #{tpu_custom_call.1} parent=5 // pred_check_branch
        %357 = sbr.rel (%p354) target = $region12
      $region11: #{tpu_custom_call.1} parent=5 // pred_region
        %s358 = ssub.s32 %s24, 1
        // Predicated region
        $region13: #{tpu_custom_call.1} parent=11 // pred_check
          %p359 = pneg %p85
        $region14: #{tpu_custom_call.1} parent=11 // pred_check_branch
          %361 = sbr.rel (%p359) target = $region16
        $region15: #{tpu_custom_call.1} parent=11 // pred_region
          _
        $region16: #{tpu_custom_call.1} parent=11 // pred_fallthru
          _
        // Predicated region
        $region17: #{tpu_custom_call.1} parent=11 // pred_check
          %p362 = pneg %p106
        $region18: #{tpu_custom_call.1} parent=11 // pred_check_branch
          %364 = sbr.rel (%p362) target = $region20
        $region19: #{tpu_custom_call.1} parent=11 // pred_region
          _
        $region20: #{tpu_custom_call.1} parent=11 // pred_fallthru
          _
        // Predicated region
        $region21: #{tpu_custom_call.1} parent=11 // pred_check
          %p365 = pneg %p127
        $region22: #{tpu_custom_call.1} parent=11 // pred_check_branch
          %367 = sbr.rel (%p365) target = $region24
        $region23: #{tpu_custom_call.1} parent=11 // pred_region
          _
        $region24: #{tpu_custom_call.1} parent=11 // pred_fallthru
          _
        // Predicated region
        $region25: #{tpu_custom_call.1} parent=11 // pred_check
          %p368 = pneg %p148
        $region26: #{tpu_custom_call.1} parent=11 // pred_check_branch
          %370 = sbr.rel (%p368) target = $region28
        $region27: #{tpu_custom_call.1} parent=11 // pred_region
          %s372 = ssub.s32 256, 256
          %373 = vsyncadd [#allocation4], %s372
          %s374 = sshll.u32 [#allocation3], 4
          %s375 = int_to_ptr.vmem [resolvable:$true] %s374
          %380 = dma.hbm_to_vmem [thread:$0]  %s4, 256, %s375, [#allocation4], 128, 128, 8
        $region28: #{tpu_custom_call.1} parent=11 // pred_fallthru
          _
        // Predicated region
        $region29: #{tpu_custom_call.1} parent=11 // pred_check
          %p381 = pneg %p169
        $region30: #{tpu_custom_call.1} parent=11 // pred_check_branch
          %383 = sbr.rel (%p381) target = $region32
        $region31: #{tpu_custom_call.1} parent=11 // pred_region
          _
        $region32: #{tpu_custom_call.1} parent=11 // pred_fallthru
          _
        // Predicated region
        $region33: #{tpu_custom_call.1} parent=11 // pred_check
          %p384 = pneg %p190
        $region34: #{tpu_custom_call.1} parent=11 // pred_check_branch
          %386 = sbr.rel (%p384) target = $region36
        $region35: #{tpu_custom_call.1} parent=11 // pred_region
          %s388 = ssub.s32 256, 256
          %389 = vsyncadd [#allocation7], %s388
          %s390 = sshll.u32 [#allocation6], 4
          %s391 = int_to_ptr.vmem [resolvable:$true] %s390
          %396 = dma.hbm_to_vmem [thread:$0]  %s6, 256, %s391, [#allocation7], 128, 128, 8
        $region36: #{tpu_custom_call.1} parent=11 // pred_fallthru
          _
        // Predicated region
        $region37: #{tpu_custom_call.1} parent=11 // pred_check
          %p397 = pneg %p211
        $region38: #{tpu_custom_call.1} parent=11 // pred_check_branch
          %399 = sbr.rel (%p397) target = $region40
        $region39: #{tpu_custom_call.1} parent=11 // pred_region
          _
        $region40: #{tpu_custom_call.1} parent=11 // pred_fallthru
          _
        // Predicated region
        $region41: #{tpu_custom_call.1} parent=11 // pred_check
          %p400 = pneg %p232
        $region42: #{tpu_custom_call.1} parent=11 // pred_check_branch
          %402 = sbr.rel (%p400) target = $region44
        $region43: #{tpu_custom_call.1} parent=11 // pred_region
          _
        $region44: #{tpu_custom_call.1} parent=11 // pred_fallthru
          _
        // Predicated region
        $region45: #{tpu_custom_call.1} parent=11 // pred_check
          %p403 = pneg %p253
        $region46: #{tpu_custom_call.1} parent=11 // pred_check_branch
          %405 = sbr.rel (%p403) target = $region48
        $region47: #{tpu_custom_call.1} parent=11 // pred_region
          _
        $region48: #{tpu_custom_call.1} parent=11 // pred_fallthru
          _
        // Predicated region
        $region49: #{tpu_custom_call.1} parent=11 // pred_check
          %p406 = pneg %p274
        $region50: #{tpu_custom_call.1} parent=11 // pred_check_branch
          %408 = sbr.rel (%p406) target = $region52
        $region51: #{tpu_custom_call.1} parent=11 // pred_region
          _
        $region52: #{tpu_custom_call.1} parent=11 // pred_fallthru
          _
        // Predicated region
        $region53: #{tpu_custom_call.1} parent=11 // pred_check
          %p409 = pneg %p295
        $region54: #{tpu_custom_call.1} parent=11 // pred_check_branch
          %411 = sbr.rel (%p409) target = $region56
        $region55: #{tpu_custom_call.1} parent=11 // pred_region
          _
        $region56: #{tpu_custom_call.1} parent=11 // pred_fallthru
          _
        // Predicated region
        $region57: #{tpu_custom_call.1} parent=11 // pred_check
          %p412 = pneg %p316
        $region58: #{tpu_custom_call.1} parent=11 // pred_check_branch
          %414 = sbr.rel (%p412) target = $region60
        $region59: #{tpu_custom_call.1} parent=11 // pred_region
          _
        $region60: #{tpu_custom_call.1} parent=11 // pred_fallthru
          _
      $region12: #{tpu_custom_call.1} parent=5 // pred_fallthru
        _
      %p415 = scmp.lt.s32.totalorder %s24, 2
      // Predicated region
      $region61: #{tpu_custom_call.1} parent=5 // pred_check
        %p416 = pneg %p415
      $region62: #{tpu_custom_call.1} parent=5 // pred_check_branch
        %418 = sbr.rel (%p416) target = $region64
      $region63: #{tpu_custom_call.1} parent=5 // pred_region
        // Predicated region
        $region65: #{tpu_custom_call.1} parent=63 // pred_check
          %p419 = pneg %p58
        $region66: #{tpu_custom_call.1} parent=63 // pred_check_branch
          %421 = sbr.rel (%p419) target = $region68
        $region67: #{tpu_custom_call.1} parent=63 // pred_region
          %s422 = smul.u32 8, %s32
          %p423 = scmp.lt.s32.totalorder %s422, 15
          %s424 = scalar_select %p423, %s422, 15
          %p425 = scmp.lt.s32.totalorder %s31, 0
          %s426 = scalar_select %p425, %s31, 0
          %s427 = sadd.s32 %s426, %s424
          %s428 = smul.addr %s427, 8
          %s429 = scalar_lea.vmem %s0, %s428
          %s430 = smul.u32 8, %s32
        $region68: #{tpu_custom_call.1} parent=63 // pred_fallthru
          _
      $region64: #{tpu_custom_call.1} parent=5 // pred_fallthru
        _
      %p431 = scmp.le.s32.totalorder 1, %s24
      %p432 = scmp.lt.s32.totalorder %s24, 3
      %p433 = pnand %p431, %p432
      %p434 = pneg %p433
      // Predicated region
      $region69: #{tpu_custom_call.1} parent=5 // pred_check
        _
      $region70: #{tpu_custom_call.1} parent=5 // pred_check_branch
        %436 = sbr.rel (%p433) target = $region72
      $region71: #{tpu_custom_call.1} parent=5 // pred_region
        %s437 = ssub.s32 %s24, 1
        // Predicated region
        $region73: #{tpu_custom_call.1} parent=71 // pred_check
          %p438 = pneg %p148
        $region74: #{tpu_custom_call.1} parent=71 // pred_check_branch
          %440 = sbr.rel (%p438) target = $region76
        $region75: #{tpu_custom_call.1} parent=71 // pred_region
          %441 = dma.done [#allocation4], 256
        $region76: #{tpu_custom_call.1} parent=71 // pred_fallthru
          _
        // Predicated region
        $region77: #{tpu_custom_call.1} parent=71 // pred_check
          %p442 = pneg %p190
        $region78: #{tpu_custom_call.1} parent=71 // pred_check_branch
          %444 = sbr.rel (%p442) target = $region80
        $region79: #{tpu_custom_call.1} parent=71 // pred_region
          %445 = dma.done [#allocation7], 256
        $region80: #{tpu_custom_call.1} parent=71 // pred_fallthru
          _
        %s446 = smul.u32 8, %s34
        %p447 = scmp.lt.s32.totalorder %s446, 15
        %s448 = scalar_select %p447, %s446, 15
        %p449 = scmp.lt.s32.totalorder %s33, 0
        %s450 = scalar_select %p449, %s33, 0
        %s451 = sadd.s32 %s450, %s448
        %s452 = smul.addr %s451, 8
        %s453 = scalar_lea.vmem %s0, %s452
        %p454 = pneg %p64
        %p455 = pneg %p61
        %p456 = pneg %p85
        %p457 = pneg %p82
        %p458 = pneg %p106
        %p459 = pneg %p103
        %p460 = pneg %p127
        %p461 = pneg %p124
        %p462 = pneg %p148
        %p463 = pneg %p145
        %p464 = pneg %p169
        %p465 = pneg %p166
        %p466 = pneg %p190
        %p467 = pneg %p187
        %p468 = pneg %p211
        %p469 = pneg %p208
        %p470 = pneg %p232
        %p471 = pneg %p229
        %p472 = pneg %p253
        %p473 = pneg %p250
        %p474 = pneg %p274
        %p475 = pneg %p271
        %p476 = pneg %p295
        %p477 = pneg %p292
        %p478 = pneg %p316
        %p479 = pneg %p313
        %p480 = pneg %p344
        %p481 = pneg %p341
        %s482 = sand.u32 %s331, 1
        %s483 = scalar_lea.sflag [#allocation5], %s482
        %s484 = sand.u32 %s331, 1
        %s485 = smul.addr %s484, 64
        %s486 = scalar_lea.vmem [#allocation8], %s485
        %s487 = smul.u32 8, %s34
        %p488 = scmp.lt.s32.totalorder %s487, 15
        %s489 = scalar_select %p488, %s487, 15
        %p490 = scmp.lt.s32.totalorder %s33, 0
        %s491 = scalar_select %p490, %s33, 0
        %s492 = sadd.s32 %s491, %s489
        %s493 = smul.addr %s492, 8
        %s494 = scalar_lea.vmem %s0, %s493
        %s495 = smul.u32 8, %s34
        %s496 = smul.u32 8, %s34
        %p497 = scmp.eq.s32.totalorder %s34, 0
        // Predicated region
        $region81: #{tpu_custom_call.1} parent=71 // pred_check
          %p498 = pneg %p497
        $region82: #{tpu_custom_call.1} parent=71 // pred_check_branch
          %500 = sbr.rel (%p498) target = $region84
        $region83: #{tpu_custom_call.1} parent=71 // pred_region
          %vm501 = vcmask 130048
          %502 = vst.msk [vmem:[#allocation2] sm:$0xff] %vm501, 0.0
        $region84: #{tpu_custom_call.1} parent=71 // pred_fallthru
          _
        %v503 = vld [vmem:[%s494] sm:$0xff]
        %v504 = vld [vmem:[%s494 + $0x8] sm:$0xff]
        %v505 = vld [vmem:[%s494 + $0x10] sm:$0xff]
        %v506 = vld [vmem:[%s494 + $0x18] sm:$0xff]
        %v507 = vld [vmem:[%s494 + $0x20] sm:$0xff]
        %v508 = vld [vmem:[%s494 + $0x28] sm:$0xff]
        %v509 = vld [vmem:[%s494 + $0x30] sm:$0xff]
        %v510 = vld [vmem:[%s494 + $0x38] sm:$0xff]
        %vm511 = vcmask 261120
        %v512 = vsel %vm511, %v503, 0.0
        %513 = vadd.xlane.f32.xlu0 %v512
        %v514 = vpop.xlane.xlu0 %513
        %v515 = vsel %vm511, %v504, 0.0
        %516 = vadd.xlane.f32.xlu0 %v515
        %v517 = vpop.xlane.xlu0 %516
        %v518 = vsel %vm511, %v505, 0.0
        %519 = vadd.xlane.f32.xlu0 %v518
        %v520 = vpop.xlane.xlu0 %519
        %v521 = vsel %vm511, %v506, 0.0
        %522 = vadd.xlane.f32.xlu0 %v521
        %v523 = vpop.xlane.xlu0 %522
        %v524 = vsel %vm511, %v507, 0.0
        %525 = vadd.xlane.f32.xlu0 %v524
        %v526 = vpop.xlane.xlu0 %525
        %v527 = vsel %vm511, %v508, 0.0
        %528 = vadd.xlane.f32.xlu0 %v527
        %v529 = vpop.xlane.xlu0 %528
        %v530 = vsel %vm511, %v509, 0.0
        %531 = vadd.xlane.f32.xlu0 %v530
        %v532 = vpop.xlane.xlu0 %531
        %v533 = vsel %vm511, %v510, 0.0
        %534 = vadd.xlane.f32.xlu0 %v533
        %v535 = vpop.xlane.xlu0 %534
        %v536 = vrcp.pop 32.0
        %v537 = vmul.f32 %v514, %v536
        %v538 = vmul.f32 %v517, %v536
        %v539 = vmul.f32 %v520, %v536
        %v540 = vmul.f32 %v523, %v536
        %v541 = vmul.f32 %v526, %v536
        %v542 = vmul.f32 %v529, %v536
        %v543 = vmul.f32 %v532, %v536
        %v544 = vmul.f32 %v535, %v536
        %v545 = vsub.f32 %v503, %v537
        %v546 = vsub.f32 %v504, %v538
        %v547 = vsub.f32 %v505, %v539
        %v548 = vsub.f32 %v506, %v540
        %v549 = vsub.f32 %v507, %v541
        %v550 = vsub.f32 %v508, %v542
        %v551 = vsub.f32 %v509, %v543
        %v552 = vsub.f32 %v510, %v544
        %v553 = vmul.f32 %v545, %v545
        %v554 = vmul.f32 %v546, %v546
        %v555 = vmul.f32 %v547, %v547
        %v556 = vmul.f32 %v548, %v548
        %v557 = vmul.f32 %v549, %v549
        %v558 = vmul.f32 %v550, %v550
        %v559 = vmul.f32 %v551, %v551
        %v560 = vmul.f32 %v552, %v552
        %v561 = vsel %vm511, %v553, 0.0
        %562 = vadd.xlane.f32.xlu0 %v561
        %v563 = vpop.xlane.xlu0 %562
        %v564 = vsel %vm511, %v554, 0.0
        %565 = vadd.xlane.f32.xlu0 %v564
        %v566 = vpop.xlane.xlu0 %565
        %v567 = vsel %vm511, %v555, 0.0
        %568 = vadd.xlane.f32.xlu0 %v567
        %v569 = vpop.xlane.xlu0 %568
        %v570 = vsel %vm511, %v556, 0.0
        %571 = vadd.xlane.f32.xlu0 %v570
        %v572 = vpop.xlane.xlu0 %571
        %v573 = vsel %vm511, %v557, 0.0
        %574 = vadd.xlane.f32.xlu0 %v573
        %v575 = vpop.xlane.xlu0 %574
        %v576 = vsel %vm511, %v558, 0.0
        %577 = vadd.xlane.f32.xlu0 %v576
        %v578 = vpop.xlane.xlu0 %577
        %v579 = vsel %vm511, %v559, 0.0
        %580 = vadd.xlane.f32.xlu0 %v579
        %v581 = vpop.xlane.xlu0 %580
        %v582 = vsel %vm511, %v560, 0.0
        %583 = vadd.xlane.f32.xlu0 %v582
        %v584 = vpop.xlane.xlu0 %583
        %v585 = vmul.f32 %v563, %v536
        %v586 = vmul.f32 %v566, %v536
        %v587 = vmul.f32 %v569, %v536
        %v588 = vmul.f32 %v572, %v536
        %v589 = vmul.f32 %v575, %v536
        %v590 = vmul.f32 %v578, %v536
        %v591 = vmul.f32 %v581, %v536
        %v592 = vmul.f32 %v584, %v536
        %v593 = vadd.f32 %v585, 1e-05
        %v594 = vadd.f32 %v586, 1e-05
        %v595 = vadd.f32 %v587, 1e-05
        %v596 = vadd.f32 %v588, 1e-05
        %v597 = vadd.f32 %v589, 1e-05
        %v598 = vadd.f32 %v590, 1e-05
        %v599 = vadd.f32 %v591, 1e-05
        %v600 = vadd.f32 %v592, 1e-05
        %v601 = vrsqrt.pop %v593
        %v602 = vrsqrt.pop %v594
        %v603 = vrsqrt.pop %v595
        %v604 = vrsqrt.pop %v596
        %v605 = vrsqrt.pop %v597
        %v606 = vrsqrt.pop %v598
        %v607 = vrsqrt.pop %v599
        %v608 = vrsqrt.pop %v600
        %v609 = vmul.f32 %v545, %v601
        %v610 = vmul.f32 %v546, %v602
        %v611 = vmul.f32 %v547, %v603
        %v612 = vmul.f32 %v548, %v604
        %v613 = vmul.f32 %v549, %v605
        %v614 = vmul.f32 %v550, %v606
        %v615 = vmul.f32 %v551, %v607
        %v616 = vmul.f32 %v552, %v608
        %v617 = vld [vmem:[%s1] sm:$0xff]
        %v618 = vld [vmem:[%s1 + $0x8] sm:$0xff]
        %v619 = vld [vmem:[%s1 + $0x10] sm:$0xff]
        %v620 = vld [vmem:[%s1 + $0x18] sm:$0xff]
        %v621 = vld [vmem:[%s7] sm:$0x1]
        %v623 = vlaneseq
        %v624 = vshrl.u32 %v623, 7
        %v625 = vsub.s32 0, %v624
        %v626 = vrot.slane %v621, %v625
        %v629 = vsel %vm511, %v609, 0
        %v632 = vsel %vm511, %v610, 0
        %v635 = vsel %vm511, %v611, 0
        %v638 = vsel %vm511, %v612, 0
        %v641 = vsel %vm511, %v613, 0
        %v644 = vsel %vm511, %v614, 0
        %v647 = vsel %vm511, %v615, 0
        %v650 = vsel %vm511, %v616, 0
        %652 = vmatprep.subr.mxu0 0.0
        %653 = vmatpush1.msra.mxu0 %v617
        %654 = vmatprep.subr.mxu0 0.0
        %655 = vmatpush1.msra.mxu0 %v618
        %656 = vmatprep.subr.mxu0 0.0
        %657 = vmatpush1.msra.mxu0 %v619
        %658 = vmatprep.subr.mxu0 0.0
        %659 = vmatpush1.msra.mxu0 %v620
        %660 = vmatprep.subr.mxu0 0.0
        %661 = vmatpush1.msra.mxu0 0.0
        %662 = vmatprep.subr.mxu0 0.0
        %663 = vmatpush1.msra.mxu0 0.0
        %664 = vmatprep.subr.mxu0 0.0
        %665 = vmatpush1.msra.mxu0 0.0
        %666 = vmatprep.subr.mxu0 0.0
        %667 = vmatpush1.msra.mxu0 0.0
        %668 = vmatprep.subr.mxu0 0.0
        %669 = vmatpush1.msra.mxu0 0.0
        %670 = vmatprep.subr.mxu0 0.0
        %671 = vmatpush1.msra.mxu0 0.0
        %672 = vmatprep.subr.mxu0 0.0
        %673 = vmatpush1.msra.mxu0 0.0
        %674 = vmatprep.subr.mxu0 0.0
        %675 = vmatpush1.msra.mxu0 0.0
        %676 = vmatprep.subr.mxu0 0.0
        %677 = vmatpush1.msra.mxu0 0.0
        %678 = vmatprep.subr.mxu0 0.0
        %679 = vmatpush1.msra.mxu0 0.0
        %680 = vmatprep.subr.mxu0 0.0
        %681 = vmatpush1.msra.mxu0 0.0
        %682 = vmatprep.subr.mxu0 0.0
        %683 = vmatpush1.msra.mxu0 0.0
        %684 = vmatprep.subr.mxu0 0.0
        %685 = vmatpush1.msra.mxu0 0.0
        %686 = vmatprep.subr.mxu0 0.0
        %687 = vmatpush1.msra.mxu0 0.0
        %688 = vmatprep.subr.mxu0 0.0
        %689 = vmatpush1.msra.mxu0 0.0
        %690 = vmatprep.subr.mxu0 0.0
        %691 = vmatpush1.msra.mxu0 0.0
        %692 = vmatprep.subr.mxu0 0.0
        %693 = vmatpush1.msra.mxu0 0.0
        %694 = vmatprep.subr.mxu0 0.0
        %695 = vmatpush1.msra.mxu0 0.0
        %696 = vmatprep.subr.mxu0 0.0
        %697 = vmatpush1.msra.mxu0 0.0
        %698 = vmatprep.subr.mxu0 0.0
        %699 = vmatpush1.msra.mxu0 0.0
        %700 = vmatprep.subr.mxu0 0.0
        %701 = vmatpush1.msra.mxu0 0.0
        %702 = vmatprep.subr.mxu0 0.0
        %703 = vmatpush1.msra.mxu0 0.0
        %704 = vmatprep.subr.mxu0 0.0
        %705 = vmatpush1.msra.mxu0 0.0
        %706 = vmatprep.subr.mxu0 0.0
        %707 = vmatpush1.msra.mxu0 0.0
        %708 = vmatprep.subr.mxu0 0.0
        %709 = vmatpush1.msra.mxu0 0.0
        %710 = vmatprep.subr.mxu0 0.0
        %711 = vmatpush1.msra.mxu0 0.0
        %712 = vmatprep.subr.mxu0 0.0
        %713 = vmatpush1.msra.mxu0 0.0
        %714 = vmatprep.subr.mxu0 0.0
        %715 = vmatpush1.msra.mxu0 0.0
        %716 = vmatprep.mubr.f32.mxu0 0.0
        %717 = vmatmul.mubr.f32.gmra.mrb[0].mxu0 %v629
        %v718 = vpop.f32.mrb[0].mxu0
        %v719 = vadd.f32 %v626, %v718
        %v720 = vpop.f32.mrb[0].mxu0
        %721 = vmatprep.mubr.f32.mxu0 0.0
        %722 = vmatmul.mubr.f32.gmra.mrb[0].mxu0 %v632
        %v723 = vpop.f32.mrb[0].mxu0
        %v724 = vadd.f32 %v626, %v723
        %v725 = vpop.f32.mrb[0].mxu0
        %726 = vmatprep.mubr.f32.mxu0 0.0
        %727 = vmatmul.mubr.f32.gmra.mrb[0].mxu0 %v635
        %v728 = vpop.f32.mrb[0].mxu0
        %v729 = vadd.f32 %v626, %v728
        %v730 = vpop.f32.mrb[0].mxu0
        %731 = vmatprep.mubr.f32.mxu0 0.0
        %732 = vmatmul.mubr.f32.gmra.mrb[0].mxu0 %v638
        %v733 = vpop.f32.mrb[0].mxu0
        %v734 = vadd.f32 %v626, %v733
        %v735 = vpop.f32.mrb[0].mxu0
        %736 = vmatprep.mubr.f32.mxu0 0.0
        %737 = vmatmul.mubr.f32.gmra.mrb[0].mxu0 %v641
        %v738 = vpop.f32.mrb[0].mxu0
        %v739 = vadd.f32 %v626, %v738
        %v740 = vpop.f32.mrb[0].mxu0
        %741 = vmatprep.mubr.f32.mxu0 0.0
        %742 = vmatmul.mubr.f32.gmra.mrb[0].mxu0 %v644
        %v743 = vpop.f32.mrb[0].mxu0
        %v744 = vadd.f32 %v626, %v743
        %v745 = vpop.f32.mrb[0].mxu0
        %746 = vmatprep.mubr.f32.mxu0 0.0
        %747 = vmatmul.mubr.f32.gmra.mrb[0].mxu0 %v647
        %v748 = vpop.f32.mrb[0].mxu0
        %v749 = vadd.f32 %v626, %v748
        %v750 = vpop.f32.mrb[0].mxu0
        %751 = vmatprep.mubr.f32.mxu0 0.0
        %752 = vmatmul.mubr.f32.gmra.mrb[0].mxu0 %v650
        %v753 = vpop.f32.mrb[0].mxu0
        %v754 = vadd.f32 %v626, %v753
        %v755 = vpop.f32.mrb[0].mxu0
        %756 = vdwg.mxu0
        %v757 = vld [vmem:[%s2] sm:$0xff]
        %v758 = vld [vmem:[%s2 + $0x8] sm:$0xff]
        %v759 = vld [vmem:[%s2 + $0x10] sm:$0xff]
        %v760 = vld [vmem:[%s2 + $0x18] sm:$0xff]
        %v761 = vld [vmem:[%s8] sm:$0x1]
        %v763 = vlaneseq
        %v764 = vshrl.u32 %v763, 7
        %v765 = vsub.s32 0, %v764
        %v766 = vrot.slane %v761, %v765
        %768 = vmatprep.subr.mxu0 0.0
        %769 = vmatpush1.msra.mxu0 %v757
        %770 = vmatprep.subr.mxu0 0.0
        %771 = vmatpush1.msra.mxu0 %v758
        %772 = vmatprep.subr.mxu0 0.0
        %773 = vmatpush1.msra.mxu0 %v759
        %774 = vmatprep.subr.mxu0 0.0
        %775 = vmatpush1.msra.mxu0 %v760
        %776 = vmatprep.subr.mxu0 0.0
        %777 = vmatpush1.msra.mxu0 0.0
        %778 = vmatprep.subr.mxu0 0.0
        %779 = vmatpush1.msra.mxu0 0.0
        %780 = vmatprep.subr.mxu0 0.0
        %781 = vmatpush1.msra.mxu0 0.0
        %782 = vmatprep.subr.mxu0 0.0
        %783 = vmatpush1.msra.mxu0 0.0
        %784 = vmatprep.subr.mxu0 0.0
        %785 = vmatpush1.msra.mxu0 0.0
        %786 = vmatprep.subr.mxu0 0.0
        %787 = vmatpush1.msra.mxu0 0.0
        %788 = vmatprep.subr.mxu0 0.0
        %789 = vmatpush1.msra.mxu0 0.0
        %790 = vmatprep.subr.mxu0 0.0
        %791 = vmatpush1.msra.mxu0 0.0
        %792 = vmatprep.subr.mxu0 0.0
        %793 = vmatpush1.msra.mxu0 0.0
        %794 = vmatprep.subr.mxu0 0.0
        %795 = vmatpush1.msra.mxu0 0.0
        %796 = vmatprep.subr.mxu0 0.0
        %797 = vmatpush1.msra.mxu0 0.0
        %798 = vmatprep.subr.mxu0 0.0
        %799 = vmatpush1.msra.mxu0 0.0
        %800 = vmatprep.subr.mxu0 0.0
        %801 = vmatpush1.msra.mxu0 0.0
        %802 = vmatprep.subr.mxu0 0.0
        %803 = vmatpush1.msra.mxu0 0.0
        %804 = vmatprep.subr.mxu0 0.0
        %805 = vmatpush1.msra.mxu0 0.0
        %806 = vmatprep.subr.mxu0 0.0
        %807 = vmatpush1.msra.mxu0 0.0
        %808 = vmatprep.subr.mxu0 0.0
        %809 = vmatpush1.msra.mxu0 0.0
        %810 = vmatprep.subr.mxu0 0.0
        %811 = vmatpush1.msra.mxu0 0.0
        %812 = vmatprep.subr.mxu0 0.0
        %813 = vmatpush1.msra.mxu0 0.0
        %814 = vmatprep.subr.mxu0 0.0
        %815 = vmatpush1.msra.mxu0 0.0
        %816 = vmatprep.subr.mxu0 0.0
        %817 = vmatpush1.msra.mxu0 0.0
        %818 = vmatprep.subr.mxu0 0.0
        %819 = vmatpush1.msra.mxu0 0.0
        %820 = vmatprep.subr.mxu0 0.0
        %821 = vmatpush1.msra.mxu0 0.0
        %822 = vmatprep.subr.mxu0 0.0
        %823 = vmatpush1.msra.mxu0 0.0
        %824 = vmatprep.subr.mxu0 0.0
        %825 = vmatpush1.msra.mxu0 0.0
        %826 = vmatprep.subr.mxu0 0.0
        %827 = vmatpush1.msra.mxu0 0.0
        %828 = vmatprep.subr.mxu0 0.0
        %829 = vmatpush1.msra.mxu0 0.0
        %830 = vmatprep.subr.mxu0 0.0
        %831 = vmatpush1.msra.mxu0 0.0
        %832 = vmatprep.mubr.f32.mxu0 0.0
        %833 = vmatmul.mubr.f32.gmra.mrb[0].mxu0 %v629
        %v834 = vpop.f32.mrb[0].mxu0
        %v835 = vadd.f32 %v766, %v834
        %v836 = vpop.f32.mrb[0].mxu0
        %837 = vmatprep.mubr.f32.mxu0 0.0
        %838 = vmatmul.mubr.f32.gmra.mrb[0].mxu0 %v632
        %v839 = vpop.f32.mrb[0].mxu0
        %v840 = vadd.f32 %v766, %v839
        %v841 = vpop.f32.mrb[0].mxu0
        %842 = vmatprep.mubr.f32.mxu0 0.0
        %843 = vmatmul.mubr.f32.gmra.mrb[0].mxu0 %v635
        %v844 = vpop.f32.mrb[0].mxu0
        %v845 = vadd.f32 %v766, %v844
        %v846 = vpop.f32.mrb[0].mxu0
        %847 = vmatprep.mubr.f32.mxu0 0.0
        %848 = vmatmul.mubr.f32.gmra.mrb[0].mxu0 %v638
        %v849 = vpop.f32.mrb[0].mxu0
        %v850 = vadd.f32 %v766, %v849
        %v851 = vpop.f32.mrb[0].mxu0
        %852 = vmatprep.mubr.f32.mxu0 0.0
        %853 = vmatmul.mubr.f32.gmra.mrb[0].mxu0 %v641
        %v854 = vpop.f32.mrb[0].mxu0
        %v855 = vadd.f32 %v766, %v854
        %v856 = vpop.f32.mrb[0].mxu0
        %857 = vmatprep.mubr.f32.mxu0 0.0
        %858 = vmatmul.mubr.f32.gmra.mrb[0].mxu0 %v644
        %v859 = vpop.f32.mrb[0].mxu0
        %v860 = vadd.f32 %v766, %v859
        %v861 = vpop.f32.mrb[0].mxu0
        %862 = vmatprep.mubr.f32.mxu0 0.0
        %863 = vmatmul.mubr.f32.gmra.mrb[0].mxu0 %v647
        %v864 = vpop.f32.mrb[0].mxu0
        %v865 = vadd.f32 %v766, %v864
        %v866 = vpop.f32.mrb[0].mxu0
        %867 = vmatprep.mubr.f32.mxu0 0.0
        %868 = vmatmul.mubr.f32.gmra.mrb[0].mxu0 %v650
        %v869 = vpop.f32.mrb[0].mxu0
        %v870 = vadd.f32 %v766, %v869
        %v871 = vpop.f32.mrb[0].mxu0
        %872 = vdwg.mxu0
        %v873 = vld [vmem:[%s3] sm:$0xff]
        %v874 = vld [vmem:[%s3 + $0x8] sm:$0xff]
        %v875 = vld [vmem:[%s3 + $0x10] sm:$0xff]
        %v876 = vld [vmem:[%s3 + $0x18] sm:$0xff]
        %v877 = vld [vmem:[%s9] sm:$0x1]
        %v879 = vlaneseq
        %v880 = vshrl.u32 %v879, 7
        %v881 = vsub.s32 0, %v880
        %v882 = vrot.slane %v877, %v881
        %884 = vmatprep.subr.mxu0 0.0
        %885 = vmatpush1.msra.mxu0 %v873
        %886 = vmatprep.subr.mxu0 0.0
        %887 = vmatpush1.msra.mxu0 %v874
        %888 = vmatprep.subr.mxu0 0.0
        %889 = vmatpush1.msra.mxu0 %v875
        %890 = vmatprep.subr.mxu0 0.0
        %891 = vmatpush1.msra.mxu0 %v876
        %892 = vmatprep.subr.mxu0 0.0
        %893 = vmatpush1.msra.mxu0 0.0
        %894 = vmatprep.subr.mxu0 0.0
        %895 = vmatpush1.msra.mxu0 0.0
        %896 = vmatprep.subr.mxu0 0.0
        %897 = vmatpush1.msra.mxu0 0.0
        %898 = vmatprep.subr.mxu0 0.0
        %899 = vmatpush1.msra.mxu0 0.0
        %900 = vmatprep.subr.mxu0 0.0
        %901 = vmatpush1.msra.mxu0 0.0
        %902 = vmatprep.subr.mxu0 0.0
        %903 = vmatpush1.msra.mxu0 0.0
        %904 = vmatprep.subr.mxu0 0.0
        %905 = vmatpush1.msra.mxu0 0.0
        %906 = vmatprep.subr.mxu0 0.0
        %907 = vmatpush1.msra.mxu0 0.0
        %908 = vmatprep.subr.mxu0 0.0
        %909 = vmatpush1.msra.mxu0 0.0
        %910 = vmatprep.subr.mxu0 0.0
        %911 = vmatpush1.msra.mxu0 0.0
        %912 = vmatprep.subr.mxu0 0.0
        %913 = vmatpush1.msra.mxu0 0.0
        %914 = vmatprep.subr.mxu0 0.0
        %915 = vmatpush1.msra.mxu0 0.0
        %916 = vmatprep.subr.mxu0 0.0
        %917 = vmatpush1.msra.mxu0 0.0
        %918 = vmatprep.subr.mxu0 0.0
        %919 = vmatpush1.msra.mxu0 0.0
        %920 = vmatprep.subr.mxu0 0.0
        %921 = vmatpush1.msra.mxu0 0.0
        %922 = vmatprep.subr.mxu0 0.0
        %923 = vmatpush1.msra.mxu0 0.0
        %924 = vmatprep.subr.mxu0 0.0
        %925 = vmatpush1.msra.mxu0 0.0
        %926 = vmatprep.subr.mxu0 0.0
        %927 = vmatpush1.msra.mxu0 0.0
        %928 = vmatprep.subr.mxu0 0.0
        %929 = vmatpush1.msra.mxu0 0.0
        %930 = vmatprep.subr.mxu0 0.0
        %931 = vmatpush1.msra.mxu0 0.0
        %932 = vmatprep.subr.mxu0 0.0
        %933 = vmatpush1.msra.mxu0 0.0
        %934 = vmatprep.subr.mxu0 0.0
        %935 = vmatpush1.msra.mxu0 0.0
        %936 = vmatprep.subr.mxu0 0.0
        %937 = vmatpush1.msra.mxu0 0.0
        %938 = vmatprep.subr.mxu0 0.0
        %939 = vmatpush1.msra.mxu0 0.0
        %940 = vmatprep.subr.mxu0 0.0
        %941 = vmatpush1.msra.mxu0 0.0
        %942 = vmatprep.subr.mxu0 0.0
        %943 = vmatpush1.msra.mxu0 0.0
        %944 = vmatprep.subr.mxu0 0.0
        %945 = vmatpush1.msra.mxu0 0.0
        %946 = vmatprep.subr.mxu0 0.0
        %947 = vmatpush1.msra.mxu0 0.0
        %948 = vmatprep.mubr.f32.mxu0 0.0
        %949 = vmatmul.mubr.f32.gmra.mrb[0].mxu0 %v629
        %v950 = vpop.f32.mrb[0].mxu0
        %v951 = vadd.f32 %v882, %v950
        %v952 = vpop.f32.mrb[0].mxu0
        %953 = vmatprep.mubr.f32.mxu0 0.0
        %954 = vmatmul.mubr.f32.gmra.mrb[0].mxu0 %v632
        %v955 = vpop.f32.mrb[0].mxu0
        %v956 = vadd.f32 %v882, %v955
        %v957 = vpop.f32.mrb[0].mxu0
        %958 = vmatprep.mubr.f32.mxu0 0.0
        %959 = vmatmul.mubr.f32.gmra.mrb[0].mxu0 %v635
        %v960 = vpop.f32.mrb[0].mxu0
        %v961 = vadd.f32 %v882, %v960
        %v962 = vpop.f32.mrb[0].mxu0
        %963 = vmatprep.mubr.f32.mxu0 0.0
        %964 = vmatmul.mubr.f32.gmra.mrb[0].mxu0 %v638
        %v965 = vpop.f32.mrb[0].mxu0
        %v966 = vadd.f32 %v882, %v965
        %v967 = vpop.f32.mrb[0].mxu0
        %968 = vmatprep.mubr.f32.mxu0 0.0
        %969 = vmatmul.mubr.f32.gmra.mrb[0].mxu0 %v641
        %v970 = vpop.f32.mrb[0].mxu0
        %v971 = vadd.f32 %v882, %v970
        %v972 = vpop.f32.mrb[0].mxu0
        %973 = vmatprep.mubr.f32.mxu0 0.0
        %974 = vmatmul.mubr.f32.gmra.mrb[0].mxu0 %v644
        %v975 = vpop.f32.mrb[0].mxu0
        %v976 = vadd.f32 %v882, %v975
        %v977 = vpop.f32.mrb[0].mxu0
        %978 = vmatprep.mubr.f32.mxu0 0.0
        %979 = vmatmul.mubr.f32.gmra.mrb[0].mxu0 %v647
        %v980 = vpop.f32.mrb[0].mxu0
        %v981 = vadd.f32 %v882, %v980
        %v982 = vpop.f32.mrb[0].mxu0
        %983 = vmatprep.mubr.f32.mxu0 0.0
        %984 = vmatmul.mubr.f32.gmra.mrb[0].mxu0 %v650
        %v985 = vpop.f32.mrb[0].mxu0
        %v986 = vadd.f32 %v882, %v985
        %v987 = vpop.f32.mrb[0].mxu0
        %988 = vdwg.mxu0
        %v989 = vld [vmem:[#allocation3] sm:$0xff]
        %v990 = vld [vmem:[#allocation3 + $0x8] sm:$0xff]
        %v991 = vld [vmem:[%s5] sm:$0xff]
        %v992 = vld [vmem:[%s5 + $0x8] sm:$0xff]
        %v993 = vld [vmem:[#allocation6] sm:$0xff]
        %v994 = vld [vmem:[#allocation6 + $0x8] sm:$0xff]
        %v995 = vld [vmem:[%s10] sm:$0x1]
        %v997 = vlaneseq
        %v998 = vshrl.u32 %v997, 7
        %v999 = vsub.s32 0, %v998
        %v1000 = vrot.slane %v995, %v999
        %v1002 = vld [vmem:[#allocation2] sm:$0xff]
        %vm1003 = vcmask 130048
        %v1005 = vsel %vm1003, %v1002, 0
        %1007 = vmatprep.subr.mxu0 0.0
        %1008 = vmatpush1.msra.mxu0 %v989
        %1009 = vmatprep.subr.mxu0 0.0
        %1010 = vmatpush1.msra.mxu0 %v990
        %1011 = vmatprep.subr.mxu0 0.0
        %1012 = vmatpush1.msra.mxu0 0.0
        %1013 = vmatprep.subr.mxu0 0.0
        %1014 = vmatpush1.msra.mxu0 0.0
        %1015 = vmatprep.subr.mxu0 0.0
        %1016 = vmatpush1.msra.mxu0 0.0
        %1017 = vmatprep.subr.mxu0 0.0
        %1018 = vmatpush1.msra.mxu0 0.0
        %1019 = vmatprep.subr.mxu0 0.0
        %1020 = vmatpush1.msra.mxu0 0.0
        %1021 = vmatprep.subr.mxu0 0.0
        %1022 = vmatpush1.msra.mxu0 0.0
        %1023 = vmatprep.subr.mxu0 0.0
        %1024 = vmatpush1.msra.mxu0 0.0
        %1025 = vmatprep.subr.mxu0 0.0
        %1026 = vmatpush1.msra.mxu0 0.0
        %1027 = vmatprep.subr.mxu0 0.0
        %1028 = vmatpush1.msra.mxu0 0.0
        %1029 = vmatprep.subr.mxu0 0.0
        %1030 = vmatpush1.msra.mxu0 0.0
        %1031 = vmatprep.subr.mxu0 0.0
        %1032 = vmatpush1.msra.mxu0 0.0
        %1033 = vmatprep.subr.mxu0 0.0
        %1034 = vmatpush1.msra.mxu0 0.0
        %1035 = vmatprep.subr.mxu0 0.0
        %1036 = vmatpush1.msra.mxu0 0.0
        %1037 = vmatprep.subr.mxu0 0.0
        %1038 = vmatpush1.msra.mxu0 0.0
        %1039 = vmatprep.subr.mxu0 0.0
        %1040 = vmatpush1.msra.mxu0 0.0
        %1041 = vmatprep.subr.mxu0 0.0
        %1042 = vmatpush1.msra.mxu0 0.0
        %1043 = vmatprep.subr.mxu0 0.0
        %1044 = vmatpush1.msra.mxu0 0.0
        %1045 = vmatprep.subr.mxu0 0.0
        %1046 = vmatpush1.msra.mxu0 0.0
        %1047 = vmatprep.subr.mxu0 0.0
        %1048 = vmatpush1.msra.mxu0 0.0
        %1049 = vmatprep.subr.mxu0 0.0
        %1050 = vmatpush1.msra.mxu0 0.0
        %1051 = vmatprep.subr.mxu0 0.0
        %1052 = vmatpush1.msra.mxu0 0.0
        %1053 = vmatprep.subr.mxu0 0.0
        %1054 = vmatpush1.msra.mxu0 0.0
        %1055 = vmatprep.subr.mxu0 0.0
        %1056 = vmatpush1.msra.mxu0 0.0
        %1057 = vmatprep.subr.mxu0 0.0
        %1058 = vmatpush1.msra.mxu0 0.0
        %1059 = vmatprep.subr.mxu0 0.0
        %1060 = vmatpush1.msra.mxu0 0.0
        %1061 = vmatprep.subr.mxu0 0.0
        %1062 = vmatpush1.msra.mxu0 0.0
        %1063 = vmatprep.subr.mxu0 0.0
        %1064 = vmatpush1.msra.mxu0 0.0
        %1065 = vmatprep.subr.mxu0 0.0
        %1066 = vmatpush1.msra.mxu0 0.0
        %1067 = vmatprep.subr.mxu0 0.0
        %1068 = vmatpush1.msra.mxu0 0.0
        %1069 = vmatprep.subr.mxu0 0.0
        %1070 = vmatpush1.msra.mxu0 0.0
        %1071 = vmatprep.mubr.f32.mxu0 0.0
        %1072 = vmatmul.mubr.f32.gmra.mrb[0].mxu0 %v1005
        %v1073 = vpop.f32.mrb[0].mxu0
        %v1074 = vadd.f32 0.0, %v1073
        %v1075 = vpop.f32.mrb[0].mxu0
        %1076 = vdwg.mxu0
        %v1077 = vadd.f32 %v719, %v1074
        %v1078 = vxor.u32 %v1077, 2147483648
        %v1079 = vmul.f32 %v1078, 1.442695
        %v1080 = vpow.pop %v1079
        %v1081 = vadd.f32 %v1080, 1.0
        %v1082 = vrcp.pop %v1081
        %v1083 = vmul.f32 1.0, %v1082
        %1084 = vmatprep.subr.mxu0 0.0
        %1085 = vmatpush1.msra.mxu0 %v991
        %1086 = vmatprep.subr.mxu0 0.0
        %1087 = vmatpush1.msra.mxu0 %v992
        %1088 = vmatprep.subr.mxu0 0.0
        %1089 = vmatpush1.msra.mxu0 0.0
        %1090 = vmatprep.subr.mxu0 0.0
        %1091 = vmatpush1.msra.mxu0 0.0
        %1092 = vmatprep.subr.mxu0 0.0
        %1093 = vmatpush1.msra.mxu0 0.0
        %1094 = vmatprep.subr.mxu0 0.0
        %1095 = vmatpush1.msra.mxu0 0.0
        %1096 = vmatprep.subr.mxu0 0.0
        %1097 = vmatpush1.msra.mxu0 0.0
        %1098 = vmatprep.subr.mxu0 0.0
        %1099 = vmatpush1.msra.mxu0 0.0
        %1100 = vmatprep.subr.mxu0 0.0
        %1101 = vmatpush1.msra.mxu0 0.0
        %1102 = vmatprep.subr.mxu0 0.0
        %1103 = vmatpush1.msra.mxu0 0.0
        %1104 = vmatprep.subr.mxu0 0.0
        %1105 = vmatpush1.msra.mxu0 0.0
        %1106 = vmatprep.subr.mxu0 0.0
        %1107 = vmatpush1.msra.mxu0 0.0
        %1108 = vmatprep.subr.mxu0 0.0
        %1109 = vmatpush1.msra.mxu0 0.0
        %1110 = vmatprep.subr.mxu0 0.0
        %1111 = vmatpush1.msra.mxu0 0.0
        %1112 = vmatprep.subr.mxu0 0.0
        %1113 = vmatpush1.msra.mxu0 0.0
        %1114 = vmatprep.subr.mxu0 0.0
        %1115 = vmatpush1.msra.mxu0 0.0
        %1116 = vmatprep.subr.mxu0 0.0
        %1117 = vmatpush1.msra.mxu0 0.0
        %1118 = vmatprep.subr.mxu0 0.0
        %1119 = vmatpush1.msra.mxu0 0.0
        %1120 = vmatprep.subr.mxu0 0.0
        %1121 = vmatpush1.msra.mxu0 0.0
        %1122 = vmatprep.subr.mxu0 0.0
        %1123 = vmatpush1.msra.mxu0 0.0
        %1124 = vmatprep.subr.mxu0 0.0
        %1125 = vmatpush1.msra.mxu0 0.0
        %1126 = vmatprep.subr.mxu0 0.0
        %1127 = vmatpush1.msra.mxu0 0.0
        %1128 = vmatprep.subr.mxu0 0.0
        %1129 = vmatpush1.msra.mxu0 0.0
        %1130 = vmatprep.subr.mxu0 0.0
        %1131 = vmatpush1.msra.mxu0 0.0
        %1132 = vmatprep.subr.mxu0 0.0
        %1133 = vmatpush1.msra.mxu0 0.0
        %1134 = vmatprep.subr.mxu0 0.0
        %1135 = vmatpush1.msra.mxu0 0.0
        %1136 = vmatprep.subr.mxu0 0.0
        %1137 = vmatpush1.msra.mxu0 0.0
        %1138 = vmatprep.subr.mxu0 0.0
        %1139 = vmatpush1.msra.mxu0 0.0
        %1140 = vmatprep.subr.mxu0 0.0
        %1141 = vmatpush1.msra.mxu0 0.0
        %1142 = vmatprep.subr.mxu0 0.0
        %1143 = vmatpush1.msra.mxu0 0.0
        %1144 = vmatprep.subr.mxu0 0.0
        %1145 = vmatpush1.msra.mxu0 0.0
        %1146 = vmatprep.subr.mxu0 0.0
        %1147 = vmatpush1.msra.mxu0 0.0
        %1148 = vmatprep.mubr.f32.mxu0 0.0
        %1149 = vmatmul.mubr.f32.gmra.mrb[0].mxu0 %v1005
        %v1150 = vpop.f32.mrb[0].mxu0
        %v1151 = vadd.f32 0.0, %v1150
        %v1152 = vpop.f32.mrb[0].mxu0
        %1153 = vdwg.mxu0
        %v1154 = vadd.f32 %v835, %v1151
        %v1155 = vxor.u32 %v1154, 2147483648
        %v1156 = vmul.f32 %v1155, 1.442695
        %v1157 = vpow.pop %v1156
        %v1158 = vadd.f32 %v1157, 1.0
        %v1159 = vrcp.pop %v1158
        %v1160 = vmul.f32 1.0, %v1159
        %1161 = vmatprep.subr.mxu0 0.0
        %1162 = vmatpush1.msra.mxu0 %v993
        %1163 = vmatprep.subr.mxu0 0.0
        %1164 = vmatpush1.msra.mxu0 %v994
        %1165 = vmatprep.subr.mxu0 0.0
        %1166 = vmatpush1.msra.mxu0 0.0
        %1167 = vmatprep.subr.mxu0 0.0
        %1168 = vmatpush1.msra.mxu0 0.0
        %1169 = vmatprep.subr.mxu0 0.0
        %1170 = vmatpush1.msra.mxu0 0.0
        %1171 = vmatprep.subr.mxu0 0.0
        %1172 = vmatpush1.msra.mxu0 0.0
        %1173 = vmatprep.subr.mxu0 0.0
        %1174 = vmatpush1.msra.mxu0 0.0
        %1175 = vmatprep.subr.mxu0 0.0
        %1176 = vmatpush1.msra.mxu0 0.0
        %1177 = vmatprep.subr.mxu0 0.0
        %1178 = vmatpush1.msra.mxu0 0.0
        %1179 = vmatprep.subr.mxu0 0.0
        %1180 = vmatpush1.msra.mxu0 0.0
        %1181 = vmatprep.subr.mxu0 0.0
        %1182 = vmatpush1.msra.mxu0 0.0
        %1183 = vmatprep.subr.mxu0 0.0
        %1184 = vmatpush1.msra.mxu0 0.0
        %1185 = vmatprep.subr.mxu0 0.0
        %1186 = vmatpush1.msra.mxu0 0.0
        %1187 = vmatprep.subr.mxu0 0.0
        %1188 = vmatpush1.msra.mxu0 0.0
        %1189 = vmatprep.subr.mxu0 0.0
        %1190 = vmatpush1.msra.mxu0 0.0
        %1191 = vmatprep.subr.mxu0 0.0
        %1192 = vmatpush1.msra.mxu0 0.0
        %1193 = vmatprep.subr.mxu0 0.0
        %1194 = vmatpush1.msra.mxu0 0.0
        %1195 = vmatprep.subr.mxu0 0.0
        %1196 = vmatpush1.msra.mxu0 0.0
        %1197 = vmatprep.subr.mxu0 0.0
        %1198 = vmatpush1.msra.mxu0 0.0
        %1199 = vmatprep.subr.mxu0 0.0
        %1200 = vmatpush1.msra.mxu0 0.0
        %1201 = vmatprep.subr.mxu0 0.0
        %1202 = vmatpush1.msra.mxu0 0.0
        %1203 = vmatprep.subr.mxu0 0.0
        %1204 = vmatpush1.msra.mxu0 0.0
        %1205 = vmatprep.subr.mxu0 0.0
        %1206 = vmatpush1.msra.mxu0 0.0
        %1207 = vmatprep.subr.mxu0 0.0
        %1208 = vmatpush1.msra.mxu0 0.0
        %1209 = vmatprep.subr.mxu0 0.0
        %1210 = vmatpush1.msra.mxu0 0.0
        %1211 = vmatprep.subr.mxu0 0.0
        %1212 = vmatpush1.msra.mxu0 0.0
        %1213 = vmatprep.subr.mxu0 0.0
        %1214 = vmatpush1.msra.mxu0 0.0
        %1215 = vmatprep.subr.mxu0 0.0
        %1216 = vmatpush1.msra.mxu0 0.0
        %1217 = vmatprep.subr.mxu0 0.0
        %1218 = vmatpush1.msra.mxu0 0.0
        %1219 = vmatprep.subr.mxu0 0.0
        %1220 = vmatpush1.msra.mxu0 0.0
        %1221 = vmatprep.subr.mxu0 0.0
        %1222 = vmatpush1.msra.mxu0 0.0
        %1223 = vmatprep.subr.mxu0 0.0
        %1224 = vmatpush1.msra.mxu0 0.0
        %1225 = vmatprep.mubr.f32.mxu0 0.0
        %1226 = vmatmul.mubr.f32.gmra.mrb[0].mxu0 %v1005
        %v1227 = vpop.f32.mrb[0].mxu0
        %v1228 = vadd.f32 %v1000, %v1227
        %v1229 = vpop.f32.mrb[0].mxu0
        %1230 = vdwg.mxu0
        %v1231 = vmul.f32 %v1083, %v1228
        %v1232 = vadd.f32 %v951, %v1231
        %v1233 = vtanh.pop %v1232
        %v1234 = vsub.f32 1.0, %v1160
        %v1235 = vmul.f32 %v1234, %v1233
        %v1236 = vmul.f32 %v1160, %v1002
        %v1237 = vadd.f32 %v1235, %v1236
        %v1239 = vsel %vm1003, %v1237, 0
        %1241 = vmatprep.subr.mxu0 0.0
        %1242 = vmatpush1.msra.mxu0 %v989
        %1243 = vmatprep.subr.mxu0 0.0
        %1244 = vmatpush1.msra.mxu0 %v990
        %1245 = vmatprep.subr.mxu0 0.0
        %1246 = vmatpush1.msra.mxu0 0.0
        %1247 = vmatprep.subr.mxu0 0.0
        %1248 = vmatpush1.msra.mxu0 0.0
        %1249 = vmatprep.subr.mxu0 0.0
        %1250 = vmatpush1.msra.mxu0 0.0
        %1251 = vmatprep.subr.mxu0 0.0
        %1252 = vmatpush1.msra.mxu0 0.0
        %1253 = vmatprep.subr.mxu0 0.0
        %1254 = vmatpush1.msra.mxu0 0.0
        %1255 = vmatprep.subr.mxu0 0.0
        %1256 = vmatpush1.msra.mxu0 0.0
        %1257 = vmatprep.subr.mxu0 0.0
        %1258 = vmatpush1.msra.mxu0 0.0
        %1259 = vmatprep.subr.mxu0 0.0
        %1260 = vmatpush1.msra.mxu0 0.0
        %1261 = vmatprep.subr.mxu0 0.0
        %1262 = vmatpush1.msra.mxu0 0.0
        %1263 = vmatprep.subr.mxu0 0.0
        %1264 = vmatpush1.msra.mxu0 0.0
        %1265 = vmatprep.subr.mxu0 0.0
        %1266 = vmatpush1.msra.mxu0 0.0
        %1267 = vmatprep.subr.mxu0 0.0
        %1268 = vmatpush1.msra.mxu0 0.0
        %1269 = vmatprep.subr.mxu0 0.0
        %1270 = vmatpush1.msra.mxu0 0.0
        %1271 = vmatprep.subr.mxu0 0.0
        %1272 = vmatpush1.msra.mxu0 0.0
        %1273 = vmatprep.subr.mxu0 0.0
        %1274 = vmatpush1.msra.mxu0 0.0
        %1275 = vmatprep.subr.mxu0 0.0
        %1276 = vmatpush1.msra.mxu0 0.0
        %1277 = vmatprep.subr.mxu0 0.0
        %1278 = vmatpush1.msra.mxu0 0.0
        %1279 = vmatprep.subr.mxu0 0.0
        %1280 = vmatpush1.msra.mxu0 0.0
        %1281 = vmatprep.subr.mxu0 0.0
        %1282 = vmatpush1.msra.mxu0 0.0
        %1283 = vmatprep.subr.mxu0 0.0
        %1284 = vmatpush1.msra.mxu0 0.0
        %1285 = vmatprep.subr.mxu0 0.0
        %1286 = vmatpush1.msra.mxu0 0.0
        %1287 = vmatprep.subr.mxu0 0.0
        %1288 = vmatpush1.msra.mxu0 0.0
        %1289 = vmatprep.subr.mxu0 0.0
        %1290 = vmatpush1.msra.mxu0 0.0
        %1291 = vmatprep.subr.mxu0 0.0
        %1292 = vmatpush1.msra.mxu0 0.0
        %1293 = vmatprep.subr.mxu0 0.0
        %1294 = vmatpush1.msra.mxu0 0.0
        %1295 = vmatprep.subr.mxu0 0.0
        %1296 = vmatpush1.msra.mxu0 0.0
        %1297 = vmatprep.subr.mxu0 0.0
        %1298 = vmatpush1.msra.mxu0 0.0
        %1299 = vmatprep.subr.mxu0 0.0
        %1300 = vmatpush1.msra.mxu0 0.0
        %1301 = vmatprep.subr.mxu0 0.0
        %1302 = vmatpush1.msra.mxu0 0.0
        %1303 = vmatprep.subr.mxu0 0.0
        %1304 = vmatpush1.msra.mxu0 0.0
        %1305 = vmatprep.mubr.f32.mxu0 0.0
        %1306 = vmatmul.mubr.f32.gmra.mrb[0].mxu0 %v1239
        %v1307 = vpop.f32.mrb[0].mxu0
        %v1308 = vadd.f32 0.0, %v1307
        %v1309 = vpop.f32.mrb[0].mxu0
        %1310 = vdwg.mxu0
        %v1311 = vadd.f32 %v724, %v1308
        %v1312 = vxor.u32 %v1311, 2147483648
        %v1313 = vmul.f32 %v1312, 1.442695
        %v1314 = vpow.pop %v1313
        %v1315 = vadd.f32 %v1314, 1.0
        %v1316 = vrcp.pop %v1315
        %v1317 = vmul.f32 1.0, %v1316
        %1318 = vmatprep.subr.mxu0 0.0
        %1319 = vmatpush1.msra.mxu0 %v991
        %1320 = vmatprep.subr.mxu0 0.0
        %1321 = vmatpush1.msra.mxu0 %v992
        %1322 = vmatprep.subr.mxu0 0.0
        %1323 = vmatpush1.msra.mxu0 0.0
        %1324 = vmatprep.subr.mxu0 0.0
        %1325 = vmatpush1.msra.mxu0 0.0
        %1326 = vmatprep.subr.mxu0 0.0
        %1327 = vmatpush1.msra.mxu0 0.0
        %1328 = vmatprep.subr.mxu0 0.0
        %1329 = vmatpush1.msra.mxu0 0.0
        %1330 = vmatprep.subr.mxu0 0.0
        %1331 = vmatpush1.msra.mxu0 0.0
        %1332 = vmatprep.subr.mxu0 0.0
        %1333 = vmatpush1.msra.mxu0 0.0
        %1334 = vmatprep.subr.mxu0 0.0
        %1335 = vmatpush1.msra.mxu0 0.0
        %1336 = vmatprep.subr.mxu0 0.0
        %1337 = vmatpush1.msra.mxu0 0.0
        %1338 = vmatprep.subr.mxu0 0.0
        %1339 = vmatpush1.msra.mxu0 0.0
        %1340 = vmatprep.subr.mxu0 0.0
        %1341 = vmatpush1.msra.mxu0 0.0
        %1342 = vmatprep.subr.mxu0 0.0
        %1343 = vmatpush1.msra.mxu0 0.0
        %1344 = vmatprep.subr.mxu0 0.0
        %1345 = vmatpush1.msra.mxu0 0.0
        %1346 = vmatprep.subr.mxu0 0.0
        %1347 = vmatpush1.msra.mxu0 0.0
        %1348 = vmatprep.subr.mxu0 0.0
        %1349 = vmatpush1.msra.mxu0 0.0
        %1350 = vmatprep.subr.mxu0 0.0
        %1351 = vmatpush1.msra.mxu0 0.0
        %1352 = vmatprep.subr.mxu0 0.0
        %1353 = vmatpush1.msra.mxu0 0.0
        %1354 = vmatprep.subr.mxu0 0.0
        %1355 = vmatpush1.msra.mxu0 0.0
        %1356 = vmatprep.subr.mxu0 0.0
        %1357 = vmatpush1.msra.mxu0 0.0
        %1358 = vmatprep.subr.mxu0 0.0
        %1359 = vmatpush1.msra.mxu0 0.0
        %1360 = vmatprep.subr.mxu0 0.0
        %1361 = vmatpush1.msra.mxu0 0.0
        %1362 = vmatprep.subr.mxu0 0.0
        %1363 = vmatpush1.msra.mxu0 0.0
        %1364 = vmatprep.subr.mxu0 0.0
        %1365 = vmatpush1.msra.mxu0 0.0
        %1366 = vmatprep.subr.mxu0 0.0
        %1367 = vmatpush1.msra.mxu0 0.0
        %1368 = vmatprep.subr.mxu0 0.0
        %1369 = vmatpush1.msra.mxu0 0.0
        %1370 = vmatprep.subr.mxu0 0.0
        %1371 = vmatpush1.msra.mxu0 0.0
        %1372 = vmatprep.subr.mxu0 0.0
        %1373 = vmatpush1.msra.mxu0 0.0
        %1374 = vmatprep.subr.mxu0 0.0
        %1375 = vmatpush1.msra.mxu0 0.0
        %1376 = vmatprep.subr.mxu0 0.0
        %1377 = vmatpush1.msra.mxu0 0.0
        %1378 = vmatprep.subr.mxu0 0.0
        %1379 = vmatpush1.msra.mxu0 0.0
        %1380 = vmatprep.subr.mxu0 0.0
        %1381 = vmatpush1.msra.mxu0 0.0
        %1382 = vmatprep.mubr.f32.mxu0 0.0
        %1383 = vmatmul.mubr.f32.gmra.mrb[0].mxu0 %v1239
        %v1384 = vpop.f32.mrb[0].mxu0
        %v1385 = vadd.f32 0.0, %v1384
        %v1386 = vpop.f32.mrb[0].mxu0
        %1387 = vdwg.mxu0
        %v1388 = vadd.f32 %v840, %v1385
        %v1389 = vxor.u32 %v1388, 2147483648
        %v1390 = vmul.f32 %v1389, 1.442695
        %v1391 = vpow.pop %v1390
        %v1392 = vadd.f32 %v1391, 1.0
        %v1393 = vrcp.pop %v1392
        %v1394 = vmul.f32 1.0, %v1393
        %1395 = vmatprep.subr.mxu0 0.0
        %1396 = vmatpush1.msra.mxu0 %v993
        %1397 = vmatprep.subr.mxu0 0.0
        %1398 = vmatpush1.msra.mxu0 %v994
        %1399 = vmatprep.subr.mxu0 0.0
        %1400 = vmatpush1.msra.mxu0 0.0
        %1401 = vmatprep.subr.mxu0 0.0
        %1402 = vmatpush1.msra.mxu0 0.0
        %1403 = vmatprep.subr.mxu0 0.0
        %1404 = vmatpush1.msra.mxu0 0.0
        %1405 = vmatprep.subr.mxu0 0.0
        %1406 = vmatpush1.msra.mxu0 0.0
        %1407 = vmatprep.subr.mxu0 0.0
        %1408 = vmatpush1.msra.mxu0 0.0
        %1409 = vmatprep.subr.mxu0 0.0
        %1410 = vmatpush1.msra.mxu0 0.0
        %1411 = vmatprep.subr.mxu0 0.0
        %1412 = vmatpush1.msra.mxu0 0.0
        %1413 = vmatprep.subr.mxu0 0.0
        %1414 = vmatpush1.msra.mxu0 0.0
        %1415 = vmatprep.subr.mxu0 0.0
        %1416 = vmatpush1.msra.mxu0 0.0
        %1417 = vmatprep.subr.mxu0 0.0
        %1418 = vmatpush1.msra.mxu0 0.0
        %1419 = vmatprep.subr.mxu0 0.0
        %1420 = vmatpush1.msra.mxu0 0.0
        %1421 = vmatprep.subr.mxu0 0.0
        %1422 = vmatpush1.msra.mxu0 0.0
        %1423 = vmatprep.subr.mxu0 0.0
        %1424 = vmatpush1.msra.mxu0 0.0
        %1425 = vmatprep.subr.mxu0 0.0
        %1426 = vmatpush1.msra.mxu0 0.0
        %1427 = vmatprep.subr.mxu0 0.0
        %1428 = vmatpush1.msra.mxu0 0.0
        %1429 = vmatprep.subr.mxu0 0.0
        %1430 = vmatpush1.msra.mxu0 0.0
        %1431 = vmatprep.subr.mxu0 0.0
        %1432 = vmatpush1.msra.mxu0 0.0
        %1433 = vmatprep.subr.mxu0 0.0
        %1434 = vmatpush1.msra.mxu0 0.0
        %1435 = vmatprep.subr.mxu0 0.0
        %1436 = vmatpush1.msra.mxu0 0.0
        %1437 = vmatprep.subr.mxu0 0.0
        %1438 = vmatpush1.msra.mxu0 0.0
        %1439 = vmatprep.subr.mxu0 0.0
        %1440 = vmatpush1.msra.mxu0 0.0
        %1441 = vmatprep.subr.mxu0 0.0
        %1442 = vmatpush1.msra.mxu0 0.0
        %1443 = vmatprep.subr.mxu0 0.0
        %1444 = vmatpush1.msra.mxu0 0.0
        %1445 = vmatprep.subr.mxu0 0.0
        %1446 = vmatpush1.msra.mxu0 0.0
        %1447 = vmatprep.subr.mxu0 0.0
        %1448 = vmatpush1.msra.mxu0 0.0
        %1449 = vmatprep.subr.mxu0 0.0
        %1450 = vmatpush1.msra.mxu0 0.0
        %1451 = vmatprep.subr.mxu0 0.0
        %1452 = vmatpush1.msra.mxu0 0.0
        %1453 = vmatprep.subr.mxu0 0.0
        %1454 = vmatpush1.msra.mxu0 0.0
        %1455 = vmatprep.subr.mxu0 0.0
        %1456 = vmatpush1.msra.mxu0 0.0
        %1457 = vmatprep.subr.mxu0 0.0
        %1458 = vmatpush1.msra.mxu0 0.0
        %1459 = vmatprep.mubr.f32.mxu0 0.0
        %1460 = vmatmul.mubr.f32.gmra.mrb[0].mxu0 %v1239
        %v1461 = vpop.f32.mrb[0].mxu0
        %v1462 = vadd.f32 %v1000, %v1461
        %v1463 = vpop.f32.mrb[0].mxu0
        %1464 = vdwg.mxu0
        %v1465 = vmul.f32 %v1317, %v1462
        %v1466 = vadd.f32 %v956, %v1465
        %v1467 = vtanh.pop %v1466
        %v1468 = vsub.f32 1.0, %v1394
        %v1469 = vmul.f32 %v1468, %v1467
        %v1470 = vmul.f32 %v1394, %v1237
        %v1471 = vadd.f32 %v1469, %v1470
        %v1473 = vsel %vm1003, %v1471, 0
        %1475 = vmatprep.subr.mxu0 0.0
        %1476 = vmatpush1.msra.mxu0 %v989
        %1477 = vmatprep.subr.mxu0 0.0
        %1478 = vmatpush1.msra.mxu0 %v990
        %1479 = vmatprep.subr.mxu0 0.0
        %1480 = vmatpush1.msra.mxu0 0.0
        %1481 = vmatprep.subr.mxu0 0.0
        %1482 = vmatpush1.msra.mxu0 0.0
        %1483 = vmatprep.subr.mxu0 0.0
        %1484 = vmatpush1.msra.mxu0 0.0
        %1485 = vmatprep.subr.mxu0 0.0
        %1486 = vmatpush1.msra.mxu0 0.0
        %1487 = vmatprep.subr.mxu0 0.0
        %1488 = vmatpush1.msra.mxu0 0.0
        %1489 = vmatprep.subr.mxu0 0.0
        %1490 = vmatpush1.msra.mxu0 0.0
        %1491 = vmatprep.subr.mxu0 0.0
        %1492 = vmatpush1.msra.mxu0 0.0
        %1493 = vmatprep.subr.mxu0 0.0
        %1494 = vmatpush1.msra.mxu0 0.0
        %1495 = vmatprep.subr.mxu0 0.0
        %1496 = vmatpush1.msra.mxu0 0.0
        %1497 = vmatprep.subr.mxu0 0.0
        %1498 = vmatpush1.msra.mxu0 0.0
        %1499 = vmatprep.subr.mxu0 0.0
        %1500 = vmatpush1.msra.mxu0 0.0
        %1501 = vmatprep.subr.mxu0 0.0
        %1502 = vmatpush1.msra.mxu0 0.0
        %1503 = vmatprep.subr.mxu0 0.0
        %1504 = vmatpush1.msra.mxu0 0.0
        %1505 = vmatprep.subr.mxu0 0.0
        %1506 = vmatpush1.msra.mxu0 0.0
        %1507 = vmatprep.subr.mxu0 0.0
        %1508 = vmatpush1.msra.mxu0 0.0
        %1509 = vmatprep.subr.mxu0 0.0
        %1510 = vmatpush1.msra.mxu0 0.0
        %1511 = vmatprep.subr.mxu0 0.0
        %1512 = vmatpush1.msra.mxu0 0.0
        %1513 = vmatprep.subr.mxu0 0.0
        %1514 = vmatpush1.msra.mxu0 0.0
        %1515 = vmatprep.subr.mxu0 0.0
        %1516 = vmatpush1.msra.mxu0 0.0
        %1517 = vmatprep.subr.mxu0 0.0
        %1518 = vmatpush1.msra.mxu0 0.0
        %1519 = vmatprep.subr.mxu0 0.0
        %1520 = vmatpush1.msra.mxu0 0.0
        %1521 = vmatprep.subr.mxu0 0.0
        %1522 = vmatpush1.msra.mxu0 0.0
        %1523 = vmatprep.subr.mxu0 0.0
        %1524 = vmatpush1.msra.mxu0 0.0
        %1525 = vmatprep.subr.mxu0 0.0
        %1526 = vmatpush1.msra.mxu0 0.0
        %1527 = vmatprep.subr.mxu0 0.0
        %1528 = vmatpush1.msra.mxu0 0.0
        %1529 = vmatprep.subr.mxu0 0.0
        %1530 = vmatpush1.msra.mxu0 0.0
        %1531 = vmatprep.subr.mxu0 0.0
        %1532 = vmatpush1.msra.mxu0 0.0
        %1533 = vmatprep.subr.mxu0 0.0
        %1534 = vmatpush1.msra.mxu0 0.0
        %1535 = vmatprep.subr.mxu0 0.0
        %1536 = vmatpush1.msra.mxu0 0.0
        %1537 = vmatprep.subr.mxu0 0.0
        %1538 = vmatpush1.msra.mxu0 0.0
        %1539 = vmatprep.mubr.f32.mxu0 0.0
        %1540 = vmatmul.mubr.f32.gmra.mrb[0].mxu0 %v1473
        %v1541 = vpop.f32.mrb[0].mxu0
        %v1542 = vadd.f32 0.0, %v1541
        %v1543 = vpop.f32.mrb[0].mxu0
        %1544 = vdwg.mxu0
        %v1545 = vadd.f32 %v729, %v1542
        %v1546 = vxor.u32 %v1545, 2147483648
        %v1547 = vmul.f32 %v1546, 1.442695
        %v1548 = vpow.pop %v1547
        %v1549 = vadd.f32 %v1548, 1.0
        %v1550 = vrcp.pop %v1549
        %v1551 = vmul.f32 1.0, %v1550
        %1552 = vmatprep.subr.mxu0 0.0
        %1553 = vmatpush1.msra.mxu0 %v991
        %1554 = vmatprep.subr.mxu0 0.0
        %1555 = vmatpush1.msra.mxu0 %v992
        %1556 = vmatprep.subr.mxu0 0.0
        %1557 = vmatpush1.msra.mxu0 0.0
        %1558 = vmatprep.subr.mxu0 0.0
        %1559 = vmatpush1.msra.mxu0 0.0
        %1560 = vmatprep.subr.mxu0 0.0
        %1561 = vmatpush1.msra.mxu0 0.0
        %1562 = vmatprep.subr.mxu0 0.0
        %1563 = vmatpush1.msra.mxu0 0.0
        %1564 = vmatprep.subr.mxu0 0.0
        %1565 = vmatpush1.msra.mxu0 0.0
        %1566 = vmatprep.subr.mxu0 0.0
        %1567 = vmatpush1.msra.mxu0 0.0
        %1568 = vmatprep.subr.mxu0 0.0
        %1569 = vmatpush1.msra.mxu0 0.0
        %1570 = vmatprep.subr.mxu0 0.0
        %1571 = vmatpush1.msra.mxu0 0.0
        %1572 = vmatprep.subr.mxu0 0.0
        %1573 = vmatpush1.msra.mxu0 0.0
        %1574 = vmatprep.subr.mxu0 0.0
        %1575 = vmatpush1.msra.mxu0 0.0
        %1576 = vmatprep.subr.mxu0 0.0
        %1577 = vmatpush1.msra.mxu0 0.0
        %1578 = vmatprep.subr.mxu0 0.0
        %1579 = vmatpush1.msra.mxu0 0.0
        %1580 = vmatprep.subr.mxu0 0.0
        %1581 = vmatpush1.msra.mxu0 0.0
        %1582 = vmatprep.subr.mxu0 0.0
        %1583 = vmatpush1.msra.mxu0 0.0
        %1584 = vmatprep.subr.mxu0 0.0
        %1585 = vmatpush1.msra.mxu0 0.0
        %1586 = vmatprep.subr.mxu0 0.0
        %1587 = vmatpush1.msra.mxu0 0.0
        %1588 = vmatprep.subr.mxu0 0.0
        %1589 = vmatpush1.msra.mxu0 0.0
        %1590 = vmatprep.subr.mxu0 0.0
        %1591 = vmatpush1.msra.mxu0 0.0
        %1592 = vmatprep.subr.mxu0 0.0
        %1593 = vmatpush1.msra.mxu0 0.0
        %1594 = vmatprep.subr.mxu0 0.0
        %1595 = vmatpush1.msra.mxu0 0.0
        %1596 = vmatprep.subr.mxu0 0.0
        %1597 = vmatpush1.msra.mxu0 0.0
        %1598 = vmatprep.subr.mxu0 0.0
        %1599 = vmatpush1.msra.mxu0 0.0
        %1600 = vmatprep.subr.mxu0 0.0
        %1601 = vmatpush1.msra.mxu0 0.0
        %1602 = vmatprep.subr.mxu0 0.0
        %1603 = vmatpush1.msra.mxu0 0.0
        %1604 = vmatprep.subr.mxu0 0.0
        %1605 = vmatpush1.msra.mxu0 0.0
        %1606 = vmatprep.subr.mxu0 0.0
        %1607 = vmatpush1.msra.mxu0 0.0
        %1608 = vmatprep.subr.mxu0 0.0
        %1609 = vmatpush1.msra.mxu0 0.0
        %1610 = vmatprep.subr.mxu0 0.0
        %1611 = vmatpush1.msra.mxu0 0.0
        %1612 = vmatprep.subr.mxu0 0.0
        %1613 = vmatpush1.msra.mxu0 0.0
        %1614 = vmatprep.subr.mxu0 0.0
        %1615 = vmatpush1.msra.mxu0 0.0
        %1616 = vmatprep.mubr.f32.mxu0 0.0
        %1617 = vmatmul.mubr.f32.gmra.mrb[0].mxu0 %v1473
        %v1618 = vpop.f32.mrb[0].mxu0
        %v1619 = vadd.f32 0.0, %v1618
        %v1620 = vpop.f32.mrb[0].mxu0
        %1621 = vdwg.mxu0
        %v1622 = vadd.f32 %v845, %v1619
        %v1623 = vxor.u32 %v1622, 2147483648
        %v1624 = vmul.f32 %v1623, 1.442695
        %v1625 = vpow.pop %v1624
        %v1626 = vadd.f32 %v1625, 1.0
        %v1627 = vrcp.pop %v1626
        %v1628 = vmul.f32 1.0, %v1627
        %1629 = vmatprep.subr.mxu0 0.0
        %1630 = vmatpush1.msra.mxu0 %v993
        %1631 = vmatprep.subr.mxu0 0.0
        %1632 = vmatpush1.msra.mxu0 %v994
        %1633 = vmatprep.subr.mxu0 0.0
        %1634 = vmatpush1.msra.mxu0 0.0
        %1635 = vmatprep.subr.mxu0 0.0
        %1636 = vmatpush1.msra.mxu0 0.0
        %1637 = vmatprep.subr.mxu0 0.0
        %1638 = vmatpush1.msra.mxu0 0.0
        %1639 = vmatprep.subr.mxu0 0.0
        %1640 = vmatpush1.msra.mxu0 0.0
        %1641 = vmatprep.subr.mxu0 0.0
        %1642 = vmatpush1.msra.mxu0 0.0
        %1643 = vmatprep.subr.mxu0 0.0
        %1644 = vmatpush1.msra.mxu0 0.0
        %1645 = vmatprep.subr.mxu0 0.0
        %1646 = vmatpush1.msra.mxu0 0.0
        %1647 = vmatprep.subr.mxu0 0.0
        %1648 = vmatpush1.msra.mxu0 0.0
        %1649 = vmatprep.subr.mxu0 0.0
        %1650 = vmatpush1.msra.mxu0 0.0
        %1651 = vmatprep.subr.mxu0 0.0
        %1652 = vmatpush1.msra.mxu0 0.0
        %1653 = vmatprep.subr.mxu0 0.0
        %1654 = vmatpush1.msra.mxu0 0.0
        %1655 = vmatprep.subr.mxu0 0.0
        %1656 = vmatpush1.msra.mxu0 0.0
        %1657 = vmatprep.subr.mxu0 0.0
        %1658 = vmatpush1.msra.mxu0 0.0
        %1659 = vmatprep.subr.mxu0 0.0
        %1660 = vmatpush1.msra.mxu0 0.0
        %1661 = vmatprep.subr.mxu0 0.0
        %1662 = vmatpush1.msra.mxu0 0.0
        %1663 = vmatprep.subr.mxu0 0.0
        %1664 = vmatpush1.msra.mxu0 0.0
        %1665 = vmatprep.subr.mxu0 0.0
        %1666 = vmatpush1.msra.mxu0 0.0
        %1667 = vmatprep.subr.mxu0 0.0
        %1668 = vmatpush1.msra.mxu0 0.0
        %1669 = vmatprep.subr.mxu0 0.0
        %1670 = vmatpush1.msra.mxu0 0.0
        %1671 = vmatprep.subr.mxu0 0.0
        %1672 = vmatpush1.msra.mxu0 0.0
        %1673 = vmatprep.subr.mxu0 0.0
        %1674 = vmatpush1.msra.mxu0 0.0
        %1675 = vmatprep.subr.mxu0 0.0
        %1676 = vmatpush1.msra.mxu0 0.0
        %1677 = vmatprep.subr.mxu0 0.0
        %1678 = vmatpush1.msra.mxu0 0.0
        %1679 = vmatprep.subr.mxu0 0.0
        %1680 = vmatpush1.msra.mxu0 0.0
        %1681 = vmatprep.subr.mxu0 0.0
        %1682 = vmatpush1.msra.mxu0 0.0
        %1683 = vmatprep.subr.mxu0 0.0
        %1684 = vmatpush1.msra.mxu0 0.0
        %1685 = vmatprep.subr.mxu0 0.0
        %1686 = vmatpush1.msra.mxu0 0.0
        %1687 = vmatprep.subr.mxu0 0.0
        %1688 = vmatpush1.msra.mxu0 0.0
        %1689 = vmatprep.subr.mxu0 0.0
        %1690 = vmatpush1.msra.mxu0 0.0
        %1691 = vmatprep.subr.mxu0 0.0
        %1692 = vmatpush1.msra.mxu0 0.0
        %1693 = vmatprep.mubr.f32.mxu0 0.0
        %1694 = vmatmul.mubr.f32.gmra.mrb[0].mxu0 %v1473
        %v1695 = vpop.f32.mrb[0].mxu0
        %v1696 = vadd.f32 %v1000, %v1695
        %v1697 = vpop.f32.mrb[0].mxu0
        %1698 = vdwg.mxu0
        %v1699 = vmul.f32 %v1551, %v1696
        %v1700 = vadd.f32 %v961, %v1699
        %v1701 = vtanh.pop %v1700
        %v1702 = vsub.f32 1.0, %v1628
        %v1703 = vmul.f32 %v1702, %v1701
        %v1704 = vmul.f32 %v1628, %v1471
        %v1705 = vadd.f32 %v1703, %v1704
        %v1707 = vsel %vm1003, %v1705, 0
        %1709 = vmatprep.subr.mxu0 0.0
        %1710 = vmatpush1.msra.mxu0 %v989
        %1711 = vmatprep.subr.mxu0 0.0
        %1712 = vmatpush1.msra.mxu0 %v990
        %1713 = vmatprep.subr.mxu0 0.0
        %1714 = vmatpush1.msra.mxu0 0.0
        %1715 = vmatprep.subr.mxu0 0.0
        %1716 = vmatpush1.msra.mxu0 0.0
        %1717 = vmatprep.subr.mxu0 0.0
        %1718 = vmatpush1.msra.mxu0 0.0
        %1719 = vmatprep.subr.mxu0 0.0
        %1720 = vmatpush1.msra.mxu0 0.0
        %1721 = vmatprep.subr.mxu0 0.0
        %1722 = vmatpush1.msra.mxu0 0.0
        %1723 = vmatprep.subr.mxu0 0.0
        %1724 = vmatpush1.msra.mxu0 0.0
        %1725 = vmatprep.subr.mxu0 0.0
        %1726 = vmatpush1.msra.mxu0 0.0
        %1727 = vmatprep.subr.mxu0 0.0
        %1728 = vmatpush1.msra.mxu0 0.0
        %1729 = vmatprep.subr.mxu0 0.0
        %1730 = vmatpush1.msra.mxu0 0.0
        %1731 = vmatprep.subr.mxu0 0.0
        %1732 = vmatpush1.msra.mxu0 0.0
        %1733 = vmatprep.subr.mxu0 0.0
        %1734 = vmatpush1.msra.mxu0 0.0
        %1735 = vmatprep.subr.mxu0 0.0
        %1736 = vmatpush1.msra.mxu0 0.0
        %1737 = vmatprep.subr.mxu0 0.0
        %1738 = vmatpush1.msra.mxu0 0.0
        %1739 = vmatprep.subr.mxu0 0.0
        %1740 = vmatpush1.msra.mxu0 0.0
        %1741 = vmatprep.subr.mxu0 0.0
        %1742 = vmatpush1.msra.mxu0 0.0
        %1743 = vmatprep.subr.mxu0 0.0
        %1744 = vmatpush1.msra.mxu0 0.0
        %1745 = vmatprep.subr.mxu0 0.0
        %1746 = vmatpush1.msra.mxu0 0.0
        %1747 = vmatprep.subr.mxu0 0.0
        %1748 = vmatpush1.msra.mxu0 0.0
        %1749 = vmatprep.subr.mxu0 0.0
        %1750 = vmatpush1.msra.mxu0 0.0
        %1751 = vmatprep.subr.mxu0 0.0
        %1752 = vmatpush1.msra.mxu0 0.0
        %1753 = vmatprep.subr.mxu0 0.0
        %1754 = vmatpush1.msra.mxu0 0.0
        %1755 = vmatprep.subr.mxu0 0.0
        %1756 = vmatpush1.msra.mxu0 0.0
        %1757 = vmatprep.subr.mxu0 0.0
        %1758 = vmatpush1.msra.mxu0 0.0
        %1759 = vmatprep.subr.mxu0 0.0
        %1760 = vmatpush1.msra.mxu0 0.0
        %1761 = vmatprep.subr.mxu0 0.0
        %1762 = vmatpush1.msra.mxu0 0.0
        %1763 = vmatprep.subr.mxu0 0.0
        %1764 = vmatpush1.msra.mxu0 0.0
        %1765 = vmatprep.subr.mxu0 0.0
        %1766 = vmatpush1.msra.mxu0 0.0
        %1767 = vmatprep.subr.mxu0 0.0
        %1768 = vmatpush1.msra.mxu0 0.0
        %1769 = vmatprep.subr.mxu0 0.0
        %1770 = vmatpush1.msra.mxu0 0.0
        %1771 = vmatprep.subr.mxu0 0.0
        %1772 = vmatpush1.msra.mxu0 0.0
        %1773 = vmatprep.mubr.f32.mxu0 0.0
        %1774 = vmatmul.mubr.f32.gmra.mrb[0].mxu0 %v1707
        %v1775 = vpop.f32.mrb[0].mxu0
        %v1776 = vadd.f32 0.0, %v1775
        %v1777 = vpop.f32.mrb[0].mxu0
        %1778 = vdwg.mxu0
        %v1779 = vadd.f32 %v734, %v1776
        %v1780 = vxor.u32 %v1779, 2147483648
        %v1781 = vmul.f32 %v1780, 1.442695
        %v1782 = vpow.pop %v1781
        %v1783 = vadd.f32 %v1782, 1.0
        %v1784 = vrcp.pop %v1783
        %v1785 = vmul.f32 1.0, %v1784
        %1786 = vmatprep.subr.mxu0 0.0
        %1787 = vmatpush1.msra.mxu0 %v991
        %1788 = vmatprep.subr.mxu0 0.0
        %1789 = vmatpush1.msra.mxu0 %v992
        %1790 = vmatprep.subr.mxu0 0.0
        %1791 = vmatpush1.msra.mxu0 0.0
        %1792 = vmatprep.subr.mxu0 0.0
        %1793 = vmatpush1.msra.mxu0 0.0
        %1794 = vmatprep.subr.mxu0 0.0
        %1795 = vmatpush1.msra.mxu0 0.0
        %1796 = vmatprep.subr.mxu0 0.0
        %1797 = vmatpush1.msra.mxu0 0.0
        %1798 = vmatprep.subr.mxu0 0.0
        %1799 = vmatpush1.msra.mxu0 0.0
        %1800 = vmatprep.subr.mxu0 0.0
        %1801 = vmatpush1.msra.mxu0 0.0
        %1802 = vmatprep.subr.mxu0 0.0
        %1803 = vmatpush1.msra.mxu0 0.0
        %1804 = vmatprep.subr.mxu0 0.0
        %1805 = vmatpush1.msra.mxu0 0.0
        %1806 = vmatprep.subr.mxu0 0.0
        %1807 = vmatpush1.msra.mxu0 0.0
        %1808 = vmatprep.subr.mxu0 0.0
        %1809 = vmatpush1.msra.mxu0 0.0
        %1810 = vmatprep.subr.mxu0 0.0
        %1811 = vmatpush1.msra.mxu0 0.0
        %1812 = vmatprep.subr.mxu0 0.0
        %1813 = vmatpush1.msra.mxu0 0.0
        %1814 = vmatprep.subr.mxu0 0.0
        %1815 = vmatpush1.msra.mxu0 0.0
        %1816 = vmatprep.subr.mxu0 0.0
        %1817 = vmatpush1.msra.mxu0 0.0
        %1818 = vmatprep.subr.mxu0 0.0
        %1819 = vmatpush1.msra.mxu0 0.0
        %1820 = vmatprep.subr.mxu0 0.0
        %1821 = vmatpush1.msra.mxu0 0.0
        %1822 = vmatprep.subr.mxu0 0.0
        %1823 = vmatpush1.msra.mxu0 0.0
        %1824 = vmatprep.subr.mxu0 0.0
        %1825 = vmatpush1.msra.mxu0 0.0
        %1826 = vmatprep.subr.mxu0 0.0
        %1827 = vmatpush1.msra.mxu0 0.0
        %1828 = vmatprep.subr.mxu0 0.0
        %1829 = vmatpush1.msra.mxu0 0.0
        %1830 = vmatprep.subr.mxu0 0.0
        %1831 = vmatpush1.msra.mxu0 0.0
        %1832 = vmatprep.subr.mxu0 0.0
        %1833 = vmatpush1.msra.mxu0 0.0
        %1834 = vmatprep.subr.mxu0 0.0
        %1835 = vmatpush1.msra.mxu0 0.0
        %1836 = vmatprep.subr.mxu0 0.0
        %1837 = vmatpush1.msra.mxu0 0.0
        %1838 = vmatprep.subr.mxu0 0.0
        %1839 = vmatpush1.msra.mxu0 0.0
        %1840 = vmatprep.subr.mxu0 0.0
        %1841 = vmatpush1.msra.mxu0 0.0
        %1842 = vmatprep.subr.mxu0 0.0
        %1843 = vmatpush1.msra.mxu0 0.0
        %1844 = vmatprep.subr.mxu0 0.0
        %1845 = vmatpush1.msra.mxu0 0.0
        %1846 = vmatprep.subr.mxu0 0.0
        %1847 = vmatpush1.msra.mxu0 0.0
        %1848 = vmatprep.subr.mxu0 0.0
        %1849 = vmatpush1.msra.mxu0 0.0
        %1850 = vmatprep.mubr.f32.mxu0 0.0
        %1851 = vmatmul.mubr.f32.gmra.mrb[0].mxu0 %v1707
        %v1852 = vpop.f32.mrb[0].mxu0
        %v1853 = vadd.f32 0.0, %v1852
        %v1854 = vpop.f32.mrb[0].mxu0
        %1855 = vdwg.mxu0
        %v1856 = vadd.f32 %v850, %v1853
        %v1857 = vxor.u32 %v1856, 2147483648
        %v1858 = vmul.f32 %v1857, 1.442695
        %v1859 = vpow.pop %v1858
        %v1860 = vadd.f32 %v1859, 1.0
        %v1861 = vrcp.pop %v1860
        %v1862 = vmul.f32 1.0, %v1861
        %1863 = vmatprep.subr.mxu0 0.0
        %1864 = vmatpush1.msra.mxu0 %v993
        %1865 = vmatprep.subr.mxu0 0.0
        %1866 = vmatpush1.msra.mxu0 %v994
        %1867 = vmatprep.subr.mxu0 0.0
        %1868 = vmatpush1.msra.mxu0 0.0
        %1869 = vmatprep.subr.mxu0 0.0
        %1870 = vmatpush1.msra.mxu0 0.0
        %1871 = vmatprep.subr.mxu0 0.0
        %1872 = vmatpush1.msra.mxu0 0.0
        %1873 = vmatprep.subr.mxu0 0.0
        %1874 = vmatpush1.msra.mxu0 0.0
        %1875 = vmatprep.subr.mxu0 0.0
        %1876 = vmatpush1.msra.mxu0 0.0
        %1877 = vmatprep.subr.mxu0 0.0
        %1878 = vmatpush1.msra.mxu0 0.0
        %1879 = vmatprep.subr.mxu0 0.0
        %1880 = vmatpush1.msra.mxu0 0.0
        %1881 = vmatprep.subr.mxu0 0.0
        %1882 = vmatpush1.msra.mxu0 0.0
        %1883 = vmatprep.subr.mxu0 0.0
        %1884 = vmatpush1.msra.mxu0 0.0
        %1885 = vmatprep.subr.mxu0 0.0
        %1886 = vmatpush1.msra.mxu0 0.0
        %1887 = vmatprep.subr.mxu0 0.0
        %1888 = vmatpush1.msra.mxu0 0.0
        %1889 = vmatprep.subr.mxu0 0.0
        %1890 = vmatpush1.msra.mxu0 0.0
        %1891 = vmatprep.subr.mxu0 0.0
        %1892 = vmatpush1.msra.mxu0 0.0
        %1893 = vmatprep.subr.mxu0 0.0
        %1894 = vmatpush1.msra.mxu0 0.0
        %1895 = vmatprep.subr.mxu0 0.0
        %1896 = vmatpush1.msra.mxu0 0.0
        %1897 = vmatprep.subr.mxu0 0.0
        %1898 = vmatpush1.msra.mxu0 0.0
        %1899 = vmatprep.subr.mxu0 0.0
        %1900 = vmatpush1.msra.mxu0 0.0
        %1901 = vmatprep.subr.mxu0 0.0
        %1902 = vmatpush1.msra.mxu0 0.0
        %1903 = vmatprep.subr.mxu0 0.0
        %1904 = vmatpush1.msra.mxu0 0.0
        %1905 = vmatprep.subr.mxu0 0.0
        %1906 = vmatpush1.msra.mxu0 0.0
        %1907 = vmatprep.subr.mxu0 0.0
        %1908 = vmatpush1.msra.mxu0 0.0
        %1909 = vmatprep.subr.mxu0 0.0
        %1910 = vmatpush1.msra.mxu0 0.0
        %1911 = vmatprep.subr.mxu0 0.0
        %1912 = vmatpush1.msra.mxu0 0.0
        %1913 = vmatprep.subr.mxu0 0.0
        %1914 = vmatpush1.msra.mxu0 0.0
        %1915 = vmatprep.subr.mxu0 0.0
        %1916 = vmatpush1.msra.mxu0 0.0
        %1917 = vmatprep.subr.mxu0 0.0
        %1918 = vmatpush1.msra.mxu0 0.0
        %1919 = vmatprep.subr.mxu0 0.0
        %1920 = vmatpush1.msra.mxu0 0.0
        %1921 = vmatprep.subr.mxu0 0.0
        %1922 = vmatpush1.msra.mxu0 0.0
        %1923 = vmatprep.subr.mxu0 0.0
        %1924 = vmatpush1.msra.mxu0 0.0
        %1925 = vmatprep.subr.mxu0 0.0
        %1926 = vmatpush1.msra.mxu0 0.0
        %1927 = vmatprep.mubr.f32.mxu0 0.0
        %1928 = vmatmul.mubr.f32.gmra.mrb[0].mxu0 %v1707
        %v1929 = vpop.f32.mrb[0].mxu0
        %v1930 = vadd.f32 %v1000, %v1929
        %v1931 = vpop.f32.mrb[0].mxu0
        %1932 = vdwg.mxu0
        %v1933 = vmul.f32 %v1785, %v1930
        %v1934 = vadd.f32 %v966, %v1933
        %v1935 = vtanh.pop %v1934
        %v1936 = vsub.f32 1.0, %v1862
        %v1937 = vmul.f32 %v1936, %v1935
        %v1938 = vmul.f32 %v1862, %v1705
        %v1939 = vadd.f32 %v1937, %v1938
        %v1941 = vsel %vm1003, %v1939, 0
        %1943 = vmatprep.subr.mxu0 0.0
        %1944 = vmatpush1.msra.mxu0 %v989
        %1945 = vmatprep.subr.mxu0 0.0
        %1946 = vmatpush1.msra.mxu0 %v990
        %1947 = vmatprep.subr.mxu0 0.0
        %1948 = vmatpush1.msra.mxu0 0.0
        %1949 = vmatprep.subr.mxu0 0.0
        %1950 = vmatpush1.msra.mxu0 0.0
        %1951 = vmatprep.subr.mxu0 0.0
        %1952 = vmatpush1.msra.mxu0 0.0
        %1953 = vmatprep.subr.mxu0 0.0
        %1954 = vmatpush1.msra.mxu0 0.0
        %1955 = vmatprep.subr.mxu0 0.0
        %1956 = vmatpush1.msra.mxu0 0.0
        %1957 = vmatprep.subr.mxu0 0.0
        %1958 = vmatpush1.msra.mxu0 0.0
        %1959 = vmatprep.subr.mxu0 0.0
        %1960 = vmatpush1.msra.mxu0 0.0
        %1961 = vmatprep.subr.mxu0 0.0
        %1962 = vmatpush1.msra.mxu0 0.0
        %1963 = vmatprep.subr.mxu0 0.0
        %1964 = vmatpush1.msra.mxu0 0.0
        %1965 = vmatprep.subr.mxu0 0.0
        %1966 = vmatpush1.msra.mxu0 0.0
        %1967 = vmatprep.subr.mxu0 0.0
        %1968 = vmatpush1.msra.mxu0 0.0
        %1969 = vmatprep.subr.mxu0 0.0
        %1970 = vmatpush1.msra.mxu0 0.0
        %1971 = vmatprep.subr.mxu0 0.0
        %1972 = vmatpush1.msra.mxu0 0.0
        %1973 = vmatprep.subr.mxu0 0.0
        %1974 = vmatpush1.msra.mxu0 0.0
        %1975 = vmatprep.subr.mxu0 0.0
        %1976 = vmatpush1.msra.mxu0 0.0
        %1977 = vmatprep.subr.mxu0 0.0
        %1978 = vmatpush1.msra.mxu0 0.0
        %1979 = vmatprep.subr.mxu0 0.0
        %1980 = vmatpush1.msra.mxu0 0.0
        %1981 = vmatprep.subr.mxu0 0.0
        %1982 = vmatpush1.msra.mxu0 0.0
        %1983 = vmatprep.subr.mxu0 0.0
        %1984 = vmatpush1.msra.mxu0 0.0
        %1985 = vmatprep.subr.mxu0 0.0
        %1986 = vmatpush1.msra.mxu0 0.0
        %1987 = vmatprep.subr.mxu0 0.0
        %1988 = vmatpush1.msra.mxu0 0.0
        %1989 = vmatprep.subr.mxu0 0.0
        %1990 = vmatpush1.msra.mxu0 0.0
        %1991 = vmatprep.subr.mxu0 0.0
        %1992 = vmatpush1.msra.mxu0 0.0
        %1993 = vmatprep.subr.mxu0 0.0
        %1994 = vmatpush1.msra.mxu0 0.0
        %1995 = vmatprep.subr.mxu0 0.0
        %1996 = vmatpush1.msra.mxu0 0.0
        %1997 = vmatprep.subr.mxu0 0.0
        %1998 = vmatpush1.msra.mxu0 0.0
        %1999 = vmatprep.subr.mxu0 0.0
        %2000 = vmatpush1.msra.mxu0 0.0
        %2001 = vmatprep.subr.mxu0 0.0
        %2002 = vmatpush1.msra.mxu0 0.0
        %2003 = vmatprep.subr.mxu0 0.0
        %2004 = vmatpush1.msra.mxu0 0.0
        %2005 = vmatprep.subr.mxu0 0.0
        %2006 = vmatpush1.msra.mxu0 0.0
        %2007 = vmatprep.mubr.f32.mxu0 0.0
        %2008 = vmatmul.mubr.f32.gmra.mrb[0].mxu0 %v1941
        %v2009 = vpop.f32.mrb[0].mxu0
        %v2010 = vadd.f32 0.0, %v2009
        %v2011 = vpop.f32.mrb[0].mxu0
        %2012 = vdwg.mxu0
        %v2013 = vadd.f32 %v739, %v2010
        %v2014 = vxor.u32 %v2013, 2147483648
        %v2015 = vmul.f32 %v2014, 1.442695
        %v2016 = vpow.pop %v2015
        %v2017 = vadd.f32 %v2016, 1.0
        %v2018 = vrcp.pop %v2017
        %v2019 = vmul.f32 1.0, %v2018
        %2020 = vmatprep.subr.mxu0 0.0
        %2021 = vmatpush1.msra.mxu0 %v991
        %2022 = vmatprep.subr.mxu0 0.0
        %2023 = vmatpush1.msra.mxu0 %v992
        %2024 = vmatprep.subr.mxu0 0.0
        %2025 = vmatpush1.msra.mxu0 0.0
        %2026 = vmatprep.subr.mxu0 0.0
        %2027 = vmatpush1.msra.mxu0 0.0
        %2028 = vmatprep.subr.mxu0 0.0
        %2029 = vmatpush1.msra.mxu0 0.0
        %2030 = vmatprep.subr.mxu0 0.0
        %2031 = vmatpush1.msra.mxu0 0.0
        %2032 = vmatprep.subr.mxu0 0.0
        %2033 = vmatpush1.msra.mxu0 0.0
        %2034 = vmatprep.subr.mxu0 0.0
        %2035 = vmatpush1.msra.mxu0 0.0
        %2036 = vmatprep.subr.mxu0 0.0
        %2037 = vmatpush1.msra.mxu0 0.0
        %2038 = vmatprep.subr.mxu0 0.0
        %2039 = vmatpush1.msra.mxu0 0.0
        %2040 = vmatprep.subr.mxu0 0.0
        %2041 = vmatpush1.msra.mxu0 0.0
        %2042 = vmatprep.subr.mxu0 0.0
        %2043 = vmatpush1.msra.mxu0 0.0
        %2044 = vmatprep.subr.mxu0 0.0
        %2045 = vmatpush1.msra.mxu0 0.0
        %2046 = vmatprep.subr.mxu0 0.0
        %2047 = vmatpush1.msra.mxu0 0.0
        %2048 = vmatprep.subr.mxu0 0.0
        %2049 = vmatpush1.msra.mxu0 0.0
        %2050 = vmatprep.subr.mxu0 0.0
        %2051 = vmatpush1.msra.mxu0 0.0
        %2052 = vmatprep.subr.mxu0 0.0
        %2053 = vmatpush1.msra.mxu0 0.0
        %2054 = vmatprep.subr.mxu0 0.0
        %2055 = vmatpush1.msra.mxu0 0.0
        %2056 = vmatprep.subr.mxu0 0.0
        %2057 = vmatpush1.msra.mxu0 0.0
        %2058 = vmatprep.subr.mxu0 0.0
        %2059 = vmatpush1.msra.mxu0 0.0
        %2060 = vmatprep.subr.mxu0 0.0
        %2061 = vmatpush1.msra.mxu0 0.0
        %2062 = vmatprep.subr.mxu0 0.0
        %2063 = vmatpush1.msra.mxu0 0.0
        %2064 = vmatprep.subr.mxu0 0.0
        %2065 = vmatpush1.msra.mxu0 0.0
        %2066 = vmatprep.subr.mxu0 0.0
        %2067 = vmatpush1.msra.mxu0 0.0
        %2068 = vmatprep.subr.mxu0 0.0
        %2069 = vmatpush1.msra.mxu0 0.0
        %2070 = vmatprep.subr.mxu0 0.0
        %2071 = vmatpush1.msra.mxu0 0.0
        %2072 = vmatprep.subr.mxu0 0.0
        %2073 = vmatpush1.msra.mxu0 0.0
        %2074 = vmatprep.subr.mxu0 0.0
        %2075 = vmatpush1.msra.mxu0 0.0
        %2076 = vmatprep.subr.mxu0 0.0
        %2077 = vmatpush1.msra.mxu0 0.0
        %2078 = vmatprep.subr.mxu0 0.0
        %2079 = vmatpush1.msra.mxu0 0.0
        %2080 = vmatprep.subr.mxu0 0.0
        %2081 = vmatpush1.msra.mxu0 0.0
        %2082 = vmatprep.subr.mxu0 0.0
        %2083 = vmatpush1.msra.mxu0 0.0
        %2084 = vmatprep.mubr.f32.mxu0 0.0
        %2085 = vmatmul.mubr.f32.gmra.mrb[0].mxu0 %v1941
        %v2086 = vpop.f32.mrb[0].mxu0
        %v2087 = vadd.f32 0.0, %v2086
        %v2088 = vpop.f32.mrb[0].mxu0
        %2089 = vdwg.mxu0
        %v2090 = vadd.f32 %v855, %v2087
        %v2091 = vxor.u32 %v2090, 2147483648
        %v2092 = vmul.f32 %v2091, 1.442695
        %v2093 = vpow.pop %v2092
        %v2094 = vadd.f32 %v2093, 1.0
        %v2095 = vrcp.pop %v2094
        %v2096 = vmul.f32 1.0, %v2095
        %2097 = vmatprep.subr.mxu0 0.0
        %2098 = vmatpush1.msra.mxu0 %v993
        %2099 = vmatprep.subr.mxu0 0.0
        %2100 = vmatpush1.msra.mxu0 %v994
        %2101 = vmatprep.subr.mxu0 0.0
        %2102 = vmatpush1.msra.mxu0 0.0
        %2103 = vmatprep.subr.mxu0 0.0
        %2104 = vmatpush1.msra.mxu0 0.0
        %2105 = vmatprep.subr.mxu0 0.0
        %2106 = vmatpush1.msra.mxu0 0.0
        %2107 = vmatprep.subr.mxu0 0.0
        %2108 = vmatpush1.msra.mxu0 0.0
        %2109 = vmatprep.subr.mxu0 0.0
        %2110 = vmatpush1.msra.mxu0 0.0
        %2111 = vmatprep.subr.mxu0 0.0
        %2112 = vmatpush1.msra.mxu0 0.0
        %2113 = vmatprep.subr.mxu0 0.0
        %2114 = vmatpush1.msra.mxu0 0.0
        %2115 = vmatprep.subr.mxu0 0.0
        %2116 = vmatpush1.msra.mxu0 0.0
        %2117 = vmatprep.subr.mxu0 0.0
        %2118 = vmatpush1.msra.mxu0 0.0
        %2119 = vmatprep.subr.mxu0 0.0
        %2120 = vmatpush1.msra.mxu0 0.0
        %2121 = vmatprep.subr.mxu0 0.0
        %2122 = vmatpush1.msra.mxu0 0.0
        %2123 = vmatprep.subr.mxu0 0.0
        %2124 = vmatpush1.msra.mxu0 0.0
        %2125 = vmatprep.subr.mxu0 0.0
        %2126 = vmatpush1.msra.mxu0 0.0
        %2127 = vmatprep.subr.mxu0 0.0
        %2128 = vmatpush1.msra.mxu0 0.0
        %2129 = vmatprep.subr.mxu0 0.0
        %2130 = vmatpush1.msra.mxu0 0.0
        %2131 = vmatprep.subr.mxu0 0.0
        %2132 = vmatpush1.msra.mxu0 0.0
        %2133 = vmatprep.subr.mxu0 0.0
        %2134 = vmatpush1.msra.mxu0 0.0
        %2135 = vmatprep.subr.mxu0 0.0
        %2136 = vmatpush1.msra.mxu0 0.0
        %2137 = vmatprep.subr.mxu0 0.0
        %2138 = vmatpush1.msra.mxu0 0.0
        %2139 = vmatprep.subr.mxu0 0.0
        %2140 = vmatpush1.msra.mxu0 0.0
        %2141 = vmatprep.subr.mxu0 0.0
        %2142 = vmatpush1.msra.mxu0 0.0
        %2143 = vmatprep.subr.mxu0 0.0
        %2144 = vmatpush1.msra.mxu0 0.0
        %2145 = vmatprep.subr.mxu0 0.0
        %2146 = vmatpush1.msra.mxu0 0.0
        %2147 = vmatprep.subr.mxu0 0.0
        %2148 = vmatpush1.msra.mxu0 0.0
        %2149 = vmatprep.subr.mxu0 0.0
        %2150 = vmatpush1.msra.mxu0 0.0
        %2151 = vmatprep.subr.mxu0 0.0
        %2152 = vmatpush1.msra.mxu0 0.0
        %2153 = vmatprep.subr.mxu0 0.0
        %2154 = vmatpush1.msra.mxu0 0.0
        %2155 = vmatprep.subr.mxu0 0.0
        %2156 = vmatpush1.msra.mxu0 0.0
        %2157 = vmatprep.subr.mxu0 0.0
        %2158 = vmatpush1.msra.mxu0 0.0
        %2159 = vmatprep.subr.mxu0 0.0
        %2160 = vmatpush1.msra.mxu0 0.0
        %2161 = vmatprep.mubr.f32.mxu0 0.0
        %2162 = vmatmul.mubr.f32.gmra.mrb[0].mxu0 %v1941
        %v2163 = vpop.f32.mrb[0].mxu0
        %v2164 = vadd.f32 %v1000, %v2163
        %v2165 = vpop.f32.mrb[0].mxu0
        %2166 = vdwg.mxu0
        %v2167 = vmul.f32 %v2019, %v2164
        %v2168 = vadd.f32 %v971, %v2167
        %v2169 = vtanh.pop %v2168
        %v2170 = vsub.f32 1.0, %v2096
        %v2171 = vmul.f32 %v2170, %v2169
        %v2172 = vmul.f32 %v2096, %v1939
        %v2173 = vadd.f32 %v2171, %v2172
        %v2175 = vsel %vm1003, %v2173, 0
        %2177 = vmatprep.subr.mxu0 0.0
        %2178 = vmatpush1.msra.mxu0 %v989
        %2179 = vmatprep.subr.mxu0 0.0
        %2180 = vmatpush1.msra.mxu0 %v990
        %2181 = vmatprep.subr.mxu0 0.0
        %2182 = vmatpush1.msra.mxu0 0.0
        %2183 = vmatprep.subr.mxu0 0.0
        %2184 = vmatpush1.msra.mxu0 0.0
        %2185 = vmatprep.subr.mxu0 0.0
        %2186 = vmatpush1.msra.mxu0 0.0
        %2187 = vmatprep.subr.mxu0 0.0
        %2188 = vmatpush1.msra.mxu0 0.0
        %2189 = vmatprep.subr.mxu0 0.0
        %2190 = vmatpush1.msra.mxu0 0.0
        %2191 = vmatprep.subr.mxu0 0.0
        %2192 = vmatpush1.msra.mxu0 0.0
        %2193 = vmatprep.subr.mxu0 0.0
        %2194 = vmatpush1.msra.mxu0 0.0
        %2195 = vmatprep.subr.mxu0 0.0
        %2196 = vmatpush1.msra.mxu0 0.0
        %2197 = vmatprep.subr.mxu0 0.0
        %2198 = vmatpush1.msra.mxu0 0.0
        %2199 = vmatprep.subr.mxu0 0.0
        %2200 = vmatpush1.msra.mxu0 0.0
        %2201 = vmatprep.subr.mxu0 0.0
        %2202 = vmatpush1.msra.mxu0 0.0
        %2203 = vmatprep.subr.mxu0 0.0
        %2204 = vmatpush1.msra.mxu0 0.0
        %2205 = vmatprep.subr.mxu0 0.0
        %2206 = vmatpush1.msra.mxu0 0.0
        %2207 = vmatprep.subr.mxu0 0.0
        %2208 = vmatpush1.msra.mxu0 0.0
        %2209 = vmatprep.subr.mxu0 0.0
        %2210 = vmatpush1.msra.mxu0 0.0
        %2211 = vmatprep.subr.mxu0 0.0
        %2212 = vmatpush1.msra.mxu0 0.0
        %2213 = vmatprep.subr.mxu0 0.0
        %2214 = vmatpush1.msra.mxu0 0.0
        %2215 = vmatprep.subr.mxu0 0.0
        %2216 = vmatpush1.msra.mxu0 0.0
        %2217 = vmatprep.subr.mxu0 0.0
        %2218 = vmatpush1.msra.mxu0 0.0
        %2219 = vmatprep.subr.mxu0 0.0
        %2220 = vmatpush1.msra.mxu0 0.0
        %2221 = vmatprep.subr.mxu0 0.0
        %2222 = vmatpush1.msra.mxu0 0.0
        %2223 = vmatprep.subr.mxu0 0.0
        %2224 = vmatpush1.msra.mxu0 0.0
        %2225 = vmatprep.subr.mxu0 0.0
        %2226 = vmatpush1.msra.mxu0 0.0
        %2227 = vmatprep.subr.mxu0 0.0
        %2228 = vmatpush1.msra.mxu0 0.0
        %2229 = vmatprep.subr.mxu0 0.0
        %2230 = vmatpush1.msra.mxu0 0.0
        %2231 = vmatprep.subr.mxu0 0.0
        %2232 = vmatpush1.msra.mxu0 0.0
        %2233 = vmatprep.subr.mxu0 0.0
        %2234 = vmatpush1.msra.mxu0 0.0
        %2235 = vmatprep.subr.mxu0 0.0
        %2236 = vmatpush1.msra.mxu0 0.0
        %2237 = vmatprep.subr.mxu0 0.0
        %2238 = vmatpush1.msra.mxu0 0.0
        %2239 = vmatprep.subr.mxu0 0.0
        %2240 = vmatpush1.msra.mxu0 0.0
        %2241 = vmatprep.mubr.f32.mxu0 0.0
        %2242 = vmatmul.mubr.f32.gmra.mrb[0].mxu0 %v2175
        %v2243 = vpop.f32.mrb[0].mxu0
        %v2244 = vadd.f32 0.0, %v2243
        %v2245 = vpop.f32.mrb[0].mxu0
        %2246 = vdwg.mxu0
        %v2247 = vadd.f32 %v744, %v2244
        %v2248 = vxor.u32 %v2247, 2147483648
        %v2249 = vmul.f32 %v2248, 1.442695
        %v2250 = vpow.pop %v2249
        %v2251 = vadd.f32 %v2250, 1.0
        %v2252 = vrcp.pop %v2251
        %v2253 = vmul.f32 1.0, %v2252
        %2254 = vmatprep.subr.mxu0 0.0
        %2255 = vmatpush1.msra.mxu0 %v991
        %2256 = vmatprep.subr.mxu0 0.0
        %2257 = vmatpush1.msra.mxu0 %v992
        %2258 = vmatprep.subr.mxu0 0.0
        %2259 = vmatpush1.msra.mxu0 0.0
        %2260 = vmatprep.subr.mxu0 0.0
        %2261 = vmatpush1.msra.mxu0 0.0
        %2262 = vmatprep.subr.mxu0 0.0
        %2263 = vmatpush1.msra.mxu0 0.0
        %2264 = vmatprep.subr.mxu0 0.0
        %2265 = vmatpush1.msra.mxu0 0.0
        %2266 = vmatprep.subr.mxu0 0.0
        %2267 = vmatpush1.msra.mxu0 0.0
        %2268 = vmatprep.subr.mxu0 0.0
        %2269 = vmatpush1.msra.mxu0 0.0
        %2270 = vmatprep.subr.mxu0 0.0
        %2271 = vmatpush1.msra.mxu0 0.0
        %2272 = vmatprep.subr.mxu0 0.0
        %2273 = vmatpush1.msra.mxu0 0.0
        %2274 = vmatprep.subr.mxu0 0.0
        %2275 = vmatpush1.msra.mxu0 0.0
        %2276 = vmatprep.subr.mxu0 0.0
        %2277 = vmatpush1.msra.mxu0 0.0
        %2278 = vmatprep.subr.mxu0 0.0
        %2279 = vmatpush1.msra.mxu0 0.0
        %2280 = vmatprep.subr.mxu0 0.0
        %2281 = vmatpush1.msra.mxu0 0.0
        %2282 = vmatprep.subr.mxu0 0.0
        %2283 = vmatpush1.msra.mxu0 0.0
        %2284 = vmatprep.subr.mxu0 0.0
        %2285 = vmatpush1.msra.mxu0 0.0
        %2286 = vmatprep.subr.mxu0 0.0
        %2287 = vmatpush1.msra.mxu0 0.0
        %2288 = vmatprep.subr.mxu0 0.0
        %2289 = vmatpush1.msra.mxu0 0.0
        %2290 = vmatprep.subr.mxu0 0.0
        %2291 = vmatpush1.msra.mxu0 0.0
        %2292 = vmatprep.subr.mxu0 0.0
        %2293 = vmatpush1.msra.mxu0 0.0
        %2294 = vmatprep.subr.mxu0 0.0
        %2295 = vmatpush1.msra.mxu0 0.0
        %2296 = vmatprep.subr.mxu0 0.0
        %2297 = vmatpush1.msra.mxu0 0.0
        %2298 = vmatprep.subr.mxu0 0.0
        %2299 = vmatpush1.msra.mxu0 0.0
        %2300 = vmatprep.subr.mxu0 0.0
        %2301 = vmatpush1.msra.mxu0 0.0
        %2302 = vmatprep.subr.mxu0 0.0
        %2303 = vmatpush1.msra.mxu0 0.0
        %2304 = vmatprep.subr.mxu0 0.0
        %2305 = vmatpush1.msra.mxu0 0.0
        %2306 = vmatprep.subr.mxu0 0.0
        %2307 = vmatpush1.msra.mxu0 0.0
        %2308 = vmatprep.subr.mxu0 0.0
        %2309 = vmatpush1.msra.mxu0 0.0
        %2310 = vmatprep.subr.mxu0 0.0
        %2311 = vmatpush1.msra.mxu0 0.0
        %2312 = vmatprep.subr.mxu0 0.0
        %2313 = vmatpush1.msra.mxu0 0.0
        %2314 = vmatprep.subr.mxu0 0.0
        %2315 = vmatpush1.msra.mxu0 0.0
        %2316 = vmatprep.subr.mxu0 0.0
        %2317 = vmatpush1.msra.mxu0 0.0
        %2318 = vmatprep.mubr.f32.mxu0 0.0
        %2319 = vmatmul.mubr.f32.gmra.mrb[0].mxu0 %v2175
        %v2320 = vpop.f32.mrb[0].mxu0
        %v2321 = vadd.f32 0.0, %v2320
        %v2322 = vpop.f32.mrb[0].mxu0
        %2323 = vdwg.mxu0
        %v2324 = vadd.f32 %v860, %v2321
        %v2325 = vxor.u32 %v2324, 2147483648
        %v2326 = vmul.f32 %v2325, 1.442695
        %v2327 = vpow.pop %v2326
        %v2328 = vadd.f32 %v2327, 1.0
        %v2329 = vrcp.pop %v2328
        %v2330 = vmul.f32 1.0, %v2329
        %2331 = vmatprep.subr.mxu0 0.0
        %2332 = vmatpush1.msra.mxu0 %v993
        %2333 = vmatprep.subr.mxu0 0.0
        %2334 = vmatpush1.msra.mxu0 %v994
        %2335 = vmatprep.subr.mxu0 0.0
        %2336 = vmatpush1.msra.mxu0 0.0
        %2337 = vmatprep.subr.mxu0 0.0
        %2338 = vmatpush1.msra.mxu0 0.0
        %2339 = vmatprep.subr.mxu0 0.0
        %2340 = vmatpush1.msra.mxu0 0.0
        %2341 = vmatprep.subr.mxu0 0.0
        %2342 = vmatpush1.msra.mxu0 0.0
        %2343 = vmatprep.subr.mxu0 0.0
        %2344 = vmatpush1.msra.mxu0 0.0
        %2345 = vmatprep.subr.mxu0 0.0
        %2346 = vmatpush1.msra.mxu0 0.0
        %2347 = vmatprep.subr.mxu0 0.0
        %2348 = vmatpush1.msra.mxu0 0.0
        %2349 = vmatprep.subr.mxu0 0.0
        %2350 = vmatpush1.msra.mxu0 0.0
        %2351 = vmatprep.subr.mxu0 0.0
        %2352 = vmatpush1.msra.mxu0 0.0
        %2353 = vmatprep.subr.mxu0 0.0
        %2354 = vmatpush1.msra.mxu0 0.0
        %2355 = vmatprep.subr.mxu0 0.0
        %2356 = vmatpush1.msra.mxu0 0.0
        %2357 = vmatprep.subr.mxu0 0.0
        %2358 = vmatpush1.msra.mxu0 0.0
        %2359 = vmatprep.subr.mxu0 0.0
        %2360 = vmatpush1.msra.mxu0 0.0
        %2361 = vmatprep.subr.mxu0 0.0
        %2362 = vmatpush1.msra.mxu0 0.0
        %2363 = vmatprep.subr.mxu0 0.0
        %2364 = vmatpush1.msra.mxu0 0.0
        %2365 = vmatprep.subr.mxu0 0.0
        %2366 = vmatpush1.msra.mxu0 0.0
        %2367 = vmatprep.subr.mxu0 0.0
        %2368 = vmatpush1.msra.mxu0 0.0
        %2369 = vmatprep.subr.mxu0 0.0
        %2370 = vmatpush1.msra.mxu0 0.0
        %2371 = vmatprep.subr.mxu0 0.0
        %2372 = vmatpush1.msra.mxu0 0.0
        %2373 = vmatprep.subr.mxu0 0.0
        %2374 = vmatpush1.msra.mxu0 0.0
        %2375 = vmatprep.subr.mxu0 0.0
        %2376 = vmatpush1.msra.mxu0 0.0
        %2377 = vmatprep.subr.mxu0 0.0
        %2378 = vmatpush1.msra.mxu0 0.0
        %2379 = vmatprep.subr.mxu0 0.0
        %2380 = vmatpush1.msra.mxu0 0.0
        %2381 = vmatprep.subr.mxu0 0.0
        %2382 = vmatpush1.msra.mxu0 0.0
        %2383 = vmatprep.subr.mxu0 0.0
        %2384 = vmatpush1.msra.mxu0 0.0
        %2385 = vmatprep.subr.mxu0 0.0
        %2386 = vmatpush1.msra.mxu0 0.0
        %2387 = vmatprep.subr.mxu0 0.0
        %2388 = vmatpush1.msra.mxu0 0.0
        %2389 = vmatprep.subr.mxu0 0.0
        %2390 = vmatpush1.msra.mxu0 0.0
        %2391 = vmatprep.subr.mxu0 0.0
        %2392 = vmatpush1.msra.mxu0 0.0
        %2393 = vmatprep.subr.mxu0 0.0
        %2394 = vmatpush1.msra.mxu0 0.0
        %2395 = vmatprep.mubr.f32.mxu0 0.0
        %2396 = vmatmul.mubr.f32.gmra.mrb[0].mxu0 %v2175
        %v2397 = vpop.f32.mrb[0].mxu0
        %v2398 = vadd.f32 %v1000, %v2397
        %v2399 = vpop.f32.mrb[0].mxu0
        %2400 = vdwg.mxu0
        %v2401 = vmul.f32 %v2253, %v2398
        %v2402 = vadd.f32 %v976, %v2401
        %v2403 = vtanh.pop %v2402
        %v2404 = vsub.f32 1.0, %v2330
        %v2405 = vmul.f32 %v2404, %v2403
        %v2406 = vmul.f32 %v2330, %v2173
        %v2407 = vadd.f32 %v2405, %v2406
        %v2409 = vsel %vm1003, %v2407, 0
        %2411 = vmatprep.subr.mxu0 0.0
        %2412 = vmatpush1.msra.mxu0 %v989
        %2413 = vmatprep.subr.mxu0 0.0
        %2414 = vmatpush1.msra.mxu0 %v990
        %2415 = vmatprep.subr.mxu0 0.0
        %2416 = vmatpush1.msra.mxu0 0.0
        %2417 = vmatprep.subr.mxu0 0.0
        %2418 = vmatpush1.msra.mxu0 0.0
        %2419 = vmatprep.subr.mxu0 0.0
        %2420 = vmatpush1.msra.mxu0 0.0
        %2421 = vmatprep.subr.mxu0 0.0
        %2422 = vmatpush1.msra.mxu0 0.0
        %2423 = vmatprep.subr.mxu0 0.0
        %2424 = vmatpush1.msra.mxu0 0.0
        %2425 = vmatprep.subr.mxu0 0.0
        %2426 = vmatpush1.msra.mxu0 0.0
        %2427 = vmatprep.subr.mxu0 0.0
        %2428 = vmatpush1.msra.mxu0 0.0
        %2429 = vmatprep.subr.mxu0 0.0
        %2430 = vmatpush1.msra.mxu0 0.0
        %2431 = vmatprep.subr.mxu0 0.0
        %2432 = vmatpush1.msra.mxu0 0.0
        %2433 = vmatprep.subr.mxu0 0.0
        %2434 = vmatpush1.msra.mxu0 0.0
        %2435 = vmatprep.subr.mxu0 0.0
        %2436 = vmatpush1.msra.mxu0 0.0
        %2437 = vmatprep.subr.mxu0 0.0
        %2438 = vmatpush1.msra.mxu0 0.0
        %2439 = vmatprep.subr.mxu0 0.0
        %2440 = vmatpush1.msra.mxu0 0.0
        %2441 = vmatprep.subr.mxu0 0.0
        %2442 = vmatpush1.msra.mxu0 0.0
        %2443 = vmatprep.subr.mxu0 0.0
        %2444 = vmatpush1.msra.mxu0 0.0
        %2445 = vmatprep.subr.mxu0 0.0
        %2446 = vmatpush1.msra.mxu0 0.0
        %2447 = vmatprep.subr.mxu0 0.0
        %2448 = vmatpush1.msra.mxu0 0.0
        %2449 = vmatprep.subr.mxu0 0.0
        %2450 = vmatpush1.msra.mxu0 0.0
        %2451 = vmatprep.subr.mxu0 0.0
        %2452 = vmatpush1.msra.mxu0 0.0
        %2453 = vmatprep.subr.mxu0 0.0
        %2454 = vmatpush1.msra.mxu0 0.0
        %2455 = vmatprep.subr.mxu0 0.0
        %2456 = vmatpush1.msra.mxu0 0.0
        %2457 = vmatprep.subr.mxu0 0.0
        %2458 = vmatpush1.msra.mxu0 0.0
        %2459 = vmatprep.subr.mxu0 0.0
        %2460 = vmatpush1.msra.mxu0 0.0
        %2461 = vmatprep.subr.mxu0 0.0
        %2462 = vmatpush1.msra.mxu0 0.0
        %2463 = vmatprep.subr.mxu0 0.0
        %2464 = vmatpush1.msra.mxu0 0.0
        %2465 = vmatprep.subr.mxu0 0.0
        %2466 = vmatpush1.msra.mxu0 0.0
        %2467 = vmatprep.subr.mxu0 0.0
        %2468 = vmatpush1.msra.mxu0 0.0
        %2469 = vmatprep.subr.mxu0 0.0
        %2470 = vmatpush1.msra.mxu0 0.0
        %2471 = vmatprep.subr.mxu0 0.0
        %2472 = vmatpush1.msra.mxu0 0.0
        %2473 = vmatprep.subr.mxu0 0.0
        %2474 = vmatpush1.msra.mxu0 0.0
        %2475 = vmatprep.mubr.f32.mxu0 0.0
        %2476 = vmatmul.mubr.f32.gmra.mrb[0].mxu0 %v2409
        %v2477 = vpop.f32.mrb[0].mxu0
        %v2478 = vadd.f32 0.0, %v2477
        %v2479 = vpop.f32.mrb[0].mxu0
        %2480 = vdwg.mxu0
        %v2481 = vadd.f32 %v749, %v2478
        %v2482 = vxor.u32 %v2481, 2147483648
        %v2483 = vmul.f32 %v2482, 1.442695
        %v2484 = vpow.pop %v2483
        %v2485 = vadd.f32 %v2484, 1.0
        %v2486 = vrcp.pop %v2485
        %v2487 = vmul.f32 1.0, %v2486
        %2488 = vmatprep.subr.mxu0 0.0
        %2489 = vmatpush1.msra.mxu0 %v991
        %2490 = vmatprep.subr.mxu0 0.0
        %2491 = vmatpush1.msra.mxu0 %v992
        %2492 = vmatprep.subr.mxu0 0.0
        %2493 = vmatpush1.msra.mxu0 0.0
        %2494 = vmatprep.subr.mxu0 0.0
        %2495 = vmatpush1.msra.mxu0 0.0
        %2496 = vmatprep.subr.mxu0 0.0
        %2497 = vmatpush1.msra.mxu0 0.0
        %2498 = vmatprep.subr.mxu0 0.0
        %2499 = vmatpush1.msra.mxu0 0.0
        %2500 = vmatprep.subr.mxu0 0.0
        %2501 = vmatpush1.msra.mxu0 0.0
        %2502 = vmatprep.subr.mxu0 0.0
        %2503 = vmatpush1.msra.mxu0 0.0
        %2504 = vmatprep.subr.mxu0 0.0
        %2505 = vmatpush1.msra.mxu0 0.0
        %2506 = vmatprep.subr.mxu0 0.0
        %2507 = vmatpush1.msra.mxu0 0.0
        %2508 = vmatprep.subr.mxu0 0.0
        %2509 = vmatpush1.msra.mxu0 0.0
        %2510 = vmatprep.subr.mxu0 0.0
        %2511 = vmatpush1.msra.mxu0 0.0
        %2512 = vmatprep.subr.mxu0 0.0
        %2513 = vmatpush1.msra.mxu0 0.0
        %2514 = vmatprep.subr.mxu0 0.0
        %2515 = vmatpush1.msra.mxu0 0.0
        %2516 = vmatprep.subr.mxu0 0.0
        %2517 = vmatpush1.msra.mxu0 0.0
        %2518 = vmatprep.subr.mxu0 0.0
        %2519 = vmatpush1.msra.mxu0 0.0
        %2520 = vmatprep.subr.mxu0 0.0
        %2521 = vmatpush1.msra.mxu0 0.0
        %2522 = vmatprep.subr.mxu0 0.0
        %2523 = vmatpush1.msra.mxu0 0.0
        %2524 = vmatprep.subr.mxu0 0.0
        %2525 = vmatpush1.msra.mxu0 0.0
        %2526 = vmatprep.subr.mxu0 0.0
        %2527 = vmatpush1.msra.mxu0 0.0
        %2528 = vmatprep.subr.mxu0 0.0
        %2529 = vmatpush1.msra.mxu0 0.0
        %2530 = vmatprep.subr.mxu0 0.0
        %2531 = vmatpush1.msra.mxu0 0.0
        %2532 = vmatprep.subr.mxu0 0.0
        %2533 = vmatpush1.msra.mxu0 0.0
        %2534 = vmatprep.subr.mxu0 0.0
        %2535 = vmatpush1.msra.mxu0 0.0
        %2536 = vmatprep.subr.mxu0 0.0
        %2537 = vmatpush1.msra.mxu0 0.0
        %2538 = vmatprep.subr.mxu0 0.0
        %2539 = vmatpush1.msra.mxu0 0.0
        %2540 = vmatprep.subr.mxu0 0.0
        %2541 = vmatpush1.msra.mxu0 0.0
        %2542 = vmatprep.subr.mxu0 0.0
        %2543 = vmatpush1.msra.mxu0 0.0
        %2544 = vmatprep.subr.mxu0 0.0
        %2545 = vmatpush1.msra.mxu0 0.0
        %2546 = vmatprep.subr.mxu0 0.0
        %2547 = vmatpush1.msra.mxu0 0.0
        %2548 = vmatprep.subr.mxu0 0.0
        %2549 = vmatpush1.msra.mxu0 0.0
        %2550 = vmatprep.subr.mxu0 0.0
        %2551 = vmatpush1.msra.mxu0 0.0
        %2552 = vmatprep.mubr.f32.mxu0 0.0
        %2553 = vmatmul.mubr.f32.gmra.mrb[0].mxu0 %v2409
        %v2554 = vpop.f32.mrb[0].mxu0
        %v2555 = vadd.f32 0.0, %v2554
        %v2556 = vpop.f32.mrb[0].mxu0
        %2557 = vdwg.mxu0
        %v2558 = vadd.f32 %v865, %v2555
        %v2559 = vxor.u32 %v2558, 2147483648
        %v2560 = vmul.f32 %v2559, 1.442695
        %v2561 = vpow.pop %v2560
        %v2562 = vadd.f32 %v2561, 1.0
        %v2563 = vrcp.pop %v2562
        %v2564 = vmul.f32 1.0, %v2563
        %2565 = vmatprep.subr.mxu0 0.0
        %2566 = vmatpush1.msra.mxu0 %v993
        %2567 = vmatprep.subr.mxu0 0.0
        %2568 = vmatpush1.msra.mxu0 %v994
        %2569 = vmatprep.subr.mxu0 0.0
        %2570 = vmatpush1.msra.mxu0 0.0
        %2571 = vmatprep.subr.mxu0 0.0
        %2572 = vmatpush1.msra.mxu0 0.0
        %2573 = vmatprep.subr.mxu0 0.0
        %2574 = vmatpush1.msra.mxu0 0.0
        %2575 = vmatprep.subr.mxu0 0.0
        %2576 = vmatpush1.msra.mxu0 0.0
        %2577 = vmatprep.subr.mxu0 0.0
        %2578 = vmatpush1.msra.mxu0 0.0
        %2579 = vmatprep.subr.mxu0 0.0
        %2580 = vmatpush1.msra.mxu0 0.0
        %2581 = vmatprep.subr.mxu0 0.0
        %2582 = vmatpush1.msra.mxu0 0.0
        %2583 = vmatprep.subr.mxu0 0.0
        %2584 = vmatpush1.msra.mxu0 0.0
        %2585 = vmatprep.subr.mxu0 0.0
        %2586 = vmatpush1.msra.mxu0 0.0
        %2587 = vmatprep.subr.mxu0 0.0
        %2588 = vmatpush1.msra.mxu0 0.0
        %2589 = vmatprep.subr.mxu0 0.0
        %2590 = vmatpush1.msra.mxu0 0.0
        %2591 = vmatprep.subr.mxu0 0.0
        %2592 = vmatpush1.msra.mxu0 0.0
        %2593 = vmatprep.subr.mxu0 0.0
        %2594 = vmatpush1.msra.mxu0 0.0
        %2595 = vmatprep.subr.mxu0 0.0
        %2596 = vmatpush1.msra.mxu0 0.0
        %2597 = vmatprep.subr.mxu0 0.0
        %2598 = vmatpush1.msra.mxu0 0.0
        %2599 = vmatprep.subr.mxu0 0.0
        %2600 = vmatpush1.msra.mxu0 0.0
        %2601 = vmatprep.subr.mxu0 0.0
        %2602 = vmatpush1.msra.mxu0 0.0
        %2603 = vmatprep.subr.mxu0 0.0
        %2604 = vmatpush1.msra.mxu0 0.0
        %2605 = vmatprep.subr.mxu0 0.0
        %2606 = vmatpush1.msra.mxu0 0.0
        %2607 = vmatprep.subr.mxu0 0.0
        %2608 = vmatpush1.msra.mxu0 0.0
        %2609 = vmatprep.subr.mxu0 0.0
        %2610 = vmatpush1.msra.mxu0 0.0
        %2611 = vmatprep.subr.mxu0 0.0
        %2612 = vmatpush1.msra.mxu0 0.0
        %2613 = vmatprep.subr.mxu0 0.0
        %2614 = vmatpush1.msra.mxu0 0.0
        %2615 = vmatprep.subr.mxu0 0.0
        %2616 = vmatpush1.msra.mxu0 0.0
        %2617 = vmatprep.subr.mxu0 0.0
        %2618 = vmatpush1.msra.mxu0 0.0
        %2619 = vmatprep.subr.mxu0 0.0
        %2620 = vmatpush1.msra.mxu0 0.0
        %2621 = vmatprep.subr.mxu0 0.0
        %2622 = vmatpush1.msra.mxu0 0.0
        %2623 = vmatprep.subr.mxu0 0.0
        %2624 = vmatpush1.msra.mxu0 0.0
        %2625 = vmatprep.subr.mxu0 0.0
        %2626 = vmatpush1.msra.mxu0 0.0
        %2627 = vmatprep.subr.mxu0 0.0
        %2628 = vmatpush1.msra.mxu0 0.0
        %2629 = vmatprep.mubr.f32.mxu0 0.0
        %2630 = vmatmul.mubr.f32.gmra.mrb[0].mxu0 %v2409
        %v2631 = vpop.f32.mrb[0].mxu0
        %v2632 = vadd.f32 %v1000, %v2631
        %v2633 = vpop.f32.mrb[0].mxu0
        %2634 = vdwg.mxu0
        %v2635 = vmul.f32 %v2487, %v2632
        %v2636 = vadd.f32 %v981, %v2635
        %v2637 = vtanh.pop %v2636
        %v2638 = vsub.f32 1.0, %v2564
        %v2639 = vmul.f32 %v2638, %v2637
        %v2640 = vmul.f32 %v2564, %v2407
        %v2641 = vadd.f32 %v2639, %v2640
        %v2643 = vsel %vm1003, %v2641, 0
        %2645 = vmatprep.subr.mxu0 0.0
        %2646 = vmatpush1.msra.mxu0 %v989
        %2647 = vmatprep.subr.mxu0 0.0
        %2648 = vmatpush1.msra.mxu0 %v990
        %2649 = vmatprep.subr.mxu0 0.0
        %2650 = vmatpush1.msra.mxu0 0.0
        %2651 = vmatprep.subr.mxu0 0.0
        %2652 = vmatpush1.msra.mxu0 0.0
        %2653 = vmatprep.subr.mxu0 0.0
        %2654 = vmatpush1.msra.mxu0 0.0
        %2655 = vmatprep.subr.mxu0 0.0
        %2656 = vmatpush1.msra.mxu0 0.0
        %2657 = vmatprep.subr.mxu0 0.0
        %2658 = vmatpush1.msra.mxu0 0.0
        %2659 = vmatprep.subr.mxu0 0.0
        %2660 = vmatpush1.msra.mxu0 0.0
        %2661 = vmatprep.subr.mxu0 0.0
        %2662 = vmatpush1.msra.mxu0 0.0
        %2663 = vmatprep.subr.mxu0 0.0
        %2664 = vmatpush1.msra.mxu0 0.0
        %2665 = vmatprep.subr.mxu0 0.0
        %2666 = vmatpush1.msra.mxu0 0.0
        %2667 = vmatprep.subr.mxu0 0.0
        %2668 = vmatpush1.msra.mxu0 0.0
        %2669 = vmatprep.subr.mxu0 0.0
        %2670 = vmatpush1.msra.mxu0 0.0
        %2671 = vmatprep.subr.mxu0 0.0
        %2672 = vmatpush1.msra.mxu0 0.0
        %2673 = vmatprep.subr.mxu0 0.0
        %2674 = vmatpush1.msra.mxu0 0.0
        %2675 = vmatprep.subr.mxu0 0.0
        %2676 = vmatpush1.msra.mxu0 0.0
        %2677 = vmatprep.subr.mxu0 0.0
        %2678 = vmatpush1.msra.mxu0 0.0
        %2679 = vmatprep.subr.mxu0 0.0
        %2680 = vmatpush1.msra.mxu0 0.0
        %2681 = vmatprep.subr.mxu0 0.0
        %2682 = vmatpush1.msra.mxu0 0.0
        %2683 = vmatprep.subr.mxu0 0.0
        %2684 = vmatpush1.msra.mxu0 0.0
        %2685 = vmatprep.subr.mxu0 0.0
        %2686 = vmatpush1.msra.mxu0 0.0
        %2687 = vmatprep.subr.mxu0 0.0
        %2688 = vmatpush1.msra.mxu0 0.0
        %2689 = vmatprep.subr.mxu0 0.0
        %2690 = vmatpush1.msra.mxu0 0.0
        %2691 = vmatprep.subr.mxu0 0.0
        %2692 = vmatpush1.msra.mxu0 0.0
        %2693 = vmatprep.subr.mxu0 0.0
        %2694 = vmatpush1.msra.mxu0 0.0
        %2695 = vmatprep.subr.mxu0 0.0
        %2696 = vmatpush1.msra.mxu0 0.0
        %2697 = vmatprep.subr.mxu0 0.0
        %2698 = vmatpush1.msra.mxu0 0.0
        %2699 = vmatprep.subr.mxu0 0.0
        %2700 = vmatpush1.msra.mxu0 0.0
        %2701 = vmatprep.subr.mxu0 0.0
        %2702 = vmatpush1.msra.mxu0 0.0
        %2703 = vmatprep.subr.mxu0 0.0
        %2704 = vmatpush1.msra.mxu0 0.0
        %2705 = vmatprep.subr.mxu0 0.0
        %2706 = vmatpush1.msra.mxu0 0.0
        %2707 = vmatprep.subr.mxu0 0.0
        %2708 = vmatpush1.msra.mxu0 0.0
        %2709 = vmatprep.mubr.f32.mxu0 0.0
        %2710 = vmatmul.mubr.f32.gmra.mrb[0].mxu0 %v2643
        %v2711 = vpop.f32.mrb[0].mxu0
        %v2712 = vadd.f32 0.0, %v2711
        %v2713 = vpop.f32.mrb[0].mxu0
        %2714 = vdwg.mxu0
        %v2715 = vadd.f32 %v754, %v2712
        %v2716 = vxor.u32 %v2715, 2147483648
        %v2717 = vmul.f32 %v2716, 1.442695
        %v2718 = vpow.pop %v2717
        %v2719 = vadd.f32 %v2718, 1.0
        %v2720 = vrcp.pop %v2719
        %v2721 = vmul.f32 1.0, %v2720
        %2722 = vmatprep.subr.mxu0 0.0
        %2723 = vmatpush1.msra.mxu0 %v991
        %2724 = vmatprep.subr.mxu0 0.0
        %2725 = vmatpush1.msra.mxu0 %v992
        %2726 = vmatprep.subr.mxu0 0.0
        %2727 = vmatpush1.msra.mxu0 0.0
        %2728 = vmatprep.subr.mxu0 0.0
        %2729 = vmatpush1.msra.mxu0 0.0
        %2730 = vmatprep.subr.mxu0 0.0
        %2731 = vmatpush1.msra.mxu0 0.0
        %2732 = vmatprep.subr.mxu0 0.0
        %2733 = vmatpush1.msra.mxu0 0.0
        %2734 = vmatprep.subr.mxu0 0.0
        %2735 = vmatpush1.msra.mxu0 0.0
        %2736 = vmatprep.subr.mxu0 0.0
        %2737 = vmatpush1.msra.mxu0 0.0
        %2738 = vmatprep.subr.mxu0 0.0
        %2739 = vmatpush1.msra.mxu0 0.0
        %2740 = vmatprep.subr.mxu0 0.0
        %2741 = vmatpush1.msra.mxu0 0.0
        %2742 = vmatprep.subr.mxu0 0.0
        %2743 = vmatpush1.msra.mxu0 0.0
        %2744 = vmatprep.subr.mxu0 0.0
        %2745 = vmatpush1.msra.mxu0 0.0
        %2746 = vmatprep.subr.mxu0 0.0
        %2747 = vmatpush1.msra.mxu0 0.0
        %2748 = vmatprep.subr.mxu0 0.0
        %2749 = vmatpush1.msra.mxu0 0.0
        %2750 = vmatprep.subr.mxu0 0.0
        %2751 = vmatpush1.msra.mxu0 0.0
        %2752 = vmatprep.subr.mxu0 0.0
        %2753 = vmatpush1.msra.mxu0 0.0
        %2754 = vmatprep.subr.mxu0 0.0
        %2755 = vmatpush1.msra.mxu0 0.0
        %2756 = vmatprep.subr.mxu0 0.0
        %2757 = vmatpush1.msra.mxu0 0.0
        %2758 = vmatprep.subr.mxu0 0.0
        %2759 = vmatpush1.msra.mxu0 0.0
        %2760 = vmatprep.subr.mxu0 0.0
        %2761 = vmatpush1.msra.mxu0 0.0
        %2762 = vmatprep.subr.mxu0 0.0
        %2763 = vmatpush1.msra.mxu0 0.0
        %2764 = vmatprep.subr.mxu0 0.0
        %2765 = vmatpush1.msra.mxu0 0.0
        %2766 = vmatprep.subr.mxu0 0.0
        %2767 = vmatpush1.msra.mxu0 0.0
        %2768 = vmatprep.subr.mxu0 0.0
        %2769 = vmatpush1.msra.mxu0 0.0
        %2770 = vmatprep.subr.mxu0 0.0
        %2771 = vmatpush1.msra.mxu0 0.0
        %2772 = vmatprep.subr.mxu0 0.0
        %2773 = vmatpush1.msra.mxu0 0.0
        %2774 = vmatprep.subr.mxu0 0.0
        %2775 = vmatpush1.msra.mxu0 0.0
        %2776 = vmatprep.subr.mxu0 0.0
        %2777 = vmatpush1.msra.mxu0 0.0
        %2778 = vmatprep.subr.mxu0 0.0
        %2779 = vmatpush1.msra.mxu0 0.0
        %2780 = vmatprep.subr.mxu0 0.0
        %2781 = vmatpush1.msra.mxu0 0.0
        %2782 = vmatprep.subr.mxu0 0.0
        %2783 = vmatpush1.msra.mxu0 0.0
        %2784 = vmatprep.subr.mxu0 0.0
        %2785 = vmatpush1.msra.mxu0 0.0
        %2786 = vmatprep.mubr.f32.mxu0 0.0
        %2787 = vmatmul.mubr.f32.gmra.mrb[0].mxu0 %v2643
        %v2788 = vpop.f32.mrb[0].mxu0
        %v2789 = vadd.f32 0.0, %v2788
        %v2790 = vpop.f32.mrb[0].mxu0
        %2791 = vdwg.mxu0
        %v2792 = vadd.f32 %v870, %v2789
        %v2793 = vxor.u32 %v2792, 2147483648
        %v2794 = vmul.f32 %v2793, 1.442695
        %v2795 = vpow.pop %v2794
        %v2796 = vadd.f32 %v2795, 1.0
        %v2797 = vrcp.pop %v2796
        %v2798 = vmul.f32 1.0, %v2797
        %2799 = vmatprep.subr.mxu0 0.0
        %2800 = vmatpush1.msra.mxu0 %v993
        %2801 = vmatprep.subr.mxu0 0.0
        %2802 = vmatpush1.msra.mxu0 %v994
        %2803 = vmatprep.subr.mxu0 0.0
        %2804 = vmatpush1.msra.mxu0 0.0
        %2805 = vmatprep.subr.mxu0 0.0
        %2806 = vmatpush1.msra.mxu0 0.0
        %2807 = vmatprep.subr.mxu0 0.0
        %2808 = vmatpush1.msra.mxu0 0.0
        %2809 = vmatprep.subr.mxu0 0.0
        %2810 = vmatpush1.msra.mxu0 0.0
        %2811 = vmatprep.subr.mxu0 0.0
        %2812 = vmatpush1.msra.mxu0 0.0
        %2813 = vmatprep.subr.mxu0 0.0
        %2814 = vmatpush1.msra.mxu0 0.0
        %2815 = vmatprep.subr.mxu0 0.0
        %2816 = vmatpush1.msra.mxu0 0.0
        %2817 = vmatprep.subr.mxu0 0.0
        %2818 = vmatpush1.msra.mxu0 0.0
        %2819 = vmatprep.subr.mxu0 0.0
        %2820 = vmatpush1.msra.mxu0 0.0
        %2821 = vmatprep.subr.mxu0 0.0
        %2822 = vmatpush1.msra.mxu0 0.0
        %2823 = vmatprep.subr.mxu0 0.0
        %2824 = vmatpush1.msra.mxu0 0.0
        %2825 = vmatprep.subr.mxu0 0.0
        %2826 = vmatpush1.msra.mxu0 0.0
        %2827 = vmatprep.subr.mxu0 0.0
        %2828 = vmatpush1.msra.mxu0 0.0
        %2829 = vmatprep.subr.mxu0 0.0
        %2830 = vmatpush1.msra.mxu0 0.0
        %2831 = vmatprep.subr.mxu0 0.0
        %2832 = vmatpush1.msra.mxu0 0.0
        %2833 = vmatprep.subr.mxu0 0.0
        %2834 = vmatpush1.msra.mxu0 0.0
        %2835 = vmatprep.subr.mxu0 0.0
        %2836 = vmatpush1.msra.mxu0 0.0
        %2837 = vmatprep.subr.mxu0 0.0
        %2838 = vmatpush1.msra.mxu0 0.0
        %2839 = vmatprep.subr.mxu0 0.0
        %2840 = vmatpush1.msra.mxu0 0.0
        %2841 = vmatprep.subr.mxu0 0.0
        %2842 = vmatpush1.msra.mxu0 0.0
        %2843 = vmatprep.subr.mxu0 0.0
        %2844 = vmatpush1.msra.mxu0 0.0
        %2845 = vmatprep.subr.mxu0 0.0
        %2846 = vmatpush1.msra.mxu0 0.0
        %2847 = vmatprep.subr.mxu0 0.0
        %2848 = vmatpush1.msra.mxu0 0.0
        %2849 = vmatprep.subr.mxu0 0.0
        %2850 = vmatpush1.msra.mxu0 0.0
        %2851 = vmatprep.subr.mxu0 0.0
        %2852 = vmatpush1.msra.mxu0 0.0
        %2853 = vmatprep.subr.mxu0 0.0
        %2854 = vmatpush1.msra.mxu0 0.0
        %2855 = vmatprep.subr.mxu0 0.0
        %2856 = vmatpush1.msra.mxu0 0.0
        %2857 = vmatprep.subr.mxu0 0.0
        %2858 = vmatpush1.msra.mxu0 0.0
        %2859 = vmatprep.subr.mxu0 0.0
        %2860 = vmatpush1.msra.mxu0 0.0
        %2861 = vmatprep.subr.mxu0 0.0
        %2862 = vmatpush1.msra.mxu0 0.0
        %2863 = vmatprep.mubr.f32.mxu0 0.0
        %2864 = vmatmul.mubr.f32.gmra.mrb[0].mxu0 %v2643
        %v2865 = vpop.f32.mrb[0].mxu0
        %v2866 = vadd.f32 %v1000, %v2865
        %v2867 = vpop.f32.mrb[0].mxu0
        %2868 = vdwg.mxu0
        %v2869 = vmul.f32 %v2721, %v2866
        %v2870 = vadd.f32 %v986, %v2869
        %v2871 = vtanh.pop %v2870
        %v2872 = vsub.f32 1.0, %v2798
        %v2873 = vmul.f32 %v2872, %v2871
        %v2874 = vmul.f32 %v2798, %v2641
        %v2875 = vadd.f32 %v2873, %v2874
        %2876 = vst.msk [vmem:[#allocation2] sm:$0xff] %vm1003, %v2875
        %v2877 = vsel %vm1003, %v1237, 0.0
        %2878 = vadd.xlane.f32.xlu0 %v2877
        %v2879 = vpop.xlane.xlu0 %2878
        %v2880 = vsel %vm1003, %v1471, 0.0
        %2881 = vadd.xlane.f32.xlu0 %v2880
        %v2882 = vpop.xlane.xlu0 %2881
        %v2883 = vsel %vm1003, %v1705, 0.0
        %2884 = vadd.xlane.f32.xlu0 %v2883
        %v2885 = vpop.xlane.xlu0 %2884
        %v2886 = vsel %vm1003, %v1939, 0.0
        %2887 = vadd.xlane.f32.xlu0 %v2886
        %v2888 = vpop.xlane.xlu0 %2887
        %v2889 = vsel %vm1003, %v2173, 0.0
        %2890 = vadd.xlane.f32.xlu0 %v2889
        %v2891 = vpop.xlane.xlu0 %2890
        %v2892 = vsel %vm1003, %v2407, 0.0
        %2893 = vadd.xlane.f32.xlu0 %v2892
        %v2894 = vpop.xlane.xlu0 %2893
        %v2895 = vsel %vm1003, %v2641, 0.0
        %2896 = vadd.xlane.f32.xlu0 %v2895
        %v2897 = vpop.xlane.xlu0 %2896
        %v2898 = vsel %vm1003, %v2875, 0.0
        %2899 = vadd.xlane.f32.xlu0 %v2898
        %v2900 = vpop.xlane.xlu0 %2899
        %v2901 = vrcp.pop 16.0
        %v2902 = vmul.f32 %v2879, %v2901
        %v2903 = vmul.f32 %v2882, %v2901
        %v2904 = vmul.f32 %v2885, %v2901
        %v2905 = vmul.f32 %v2888, %v2901
        %v2906 = vmul.f32 %v2891, %v2901
        %v2907 = vmul.f32 %v2894, %v2901
        %v2908 = vmul.f32 %v2897, %v2901
        %v2909 = vmul.f32 %v2900, %v2901
        %v2910 = vsub.f32 %v1237, %v2902
        %v2911 = vsub.f32 %v1471, %v2903
        %v2912 = vsub.f32 %v1705, %v2904
        %v2913 = vsub.f32 %v1939, %v2905
        %v2914 = vsub.f32 %v2173, %v2906
        %v2915 = vsub.f32 %v2407, %v2907
        %v2916 = vsub.f32 %v2641, %v2908
        %v2917 = vsub.f32 %v2875, %v2909
        %v2918 = vmul.f32 %v2910, %v2910
        %v2919 = vmul.f32 %v2911, %v2911
        %v2920 = vmul.f32 %v2912, %v2912
        %v2921 = vmul.f32 %v2913, %v2913
        %v2922 = vmul.f32 %v2914, %v2914
        %v2923 = vmul.f32 %v2915, %v2915
        %v2924 = vmul.f32 %v2916, %v2916
        %v2925 = vmul.f32 %v2917, %v2917
        %v2926 = vsel %vm1003, %v2918, 0.0
        %2927 = vadd.xlane.f32.xlu0 %v2926
        %v2928 = vpop.xlane.xlu0 %2927
        %v2929 = vsel %vm1003, %v2919, 0.0
        %2930 = vadd.xlane.f32.xlu0 %v2929
        %v2931 = vpop.xlane.xlu0 %2930
        %v2932 = vsel %vm1003, %v2920, 0.0
        %2933 = vadd.xlane.f32.xlu0 %v2932
        %v2934 = vpop.xlane.xlu0 %2933
        %v2935 = vsel %vm1003, %v2921, 0.0
        %2936 = vadd.xlane.f32.xlu0 %v2935
        %v2937 = vpop.xlane.xlu0 %2936
        %v2938 = vsel %vm1003, %v2922, 0.0
        %2939 = vadd.xlane.f32.xlu0 %v2938
        %v2940 = vpop.xlane.xlu0 %2939
        %v2941 = vsel %vm1003, %v2923, 0.0
        %2942 = vadd.xlane.f32.xlu0 %v2941
        %v2943 = vpop.xlane.xlu0 %2942
        %v2944 = vsel %vm1003, %v2924, 0.0
        %2945 = vadd.xlane.f32.xlu0 %v2944
        %v2946 = vpop.xlane.xlu0 %2945
        %v2947 = vsel %vm1003, %v2925, 0.0
        %2948 = vadd.xlane.f32.xlu0 %v2947
        %v2949 = vpop.xlane.xlu0 %2948
        %v2950 = vmul.f32 %v2928, %v2901
        %v2951 = vmul.f32 %v2931, %v2901
        %v2952 = vmul.f32 %v2934, %v2901
        %v2953 = vmul.f32 %v2937, %v2901
        %v2954 = vmul.f32 %v2940, %v2901
        %v2955 = vmul.f32 %v2943, %v2901
        %v2956 = vmul.f32 %v2946, %v2901
        %v2957 = vmul.f32 %v2949, %v2901
        %v2958 = vadd.f32 %v2950, 1e-05
        %v2959 = vadd.f32 %v2951, 1e-05
        %v2960 = vadd.f32 %v2952, 1e-05
        %v2961 = vadd.f32 %v2953, 1e-05
        %v2962 = vadd.f32 %v2954, 1e-05
        %v2963 = vadd.f32 %v2955, 1e-05
        %v2964 = vadd.f32 %v2956, 1e-05
        %v2965 = vadd.f32 %v2957, 1e-05
        %v2966 = vrsqrt.pop %v2958
        %v2967 = vrsqrt.pop %v2959
        %v2968 = vrsqrt.pop %v2960
        %v2969 = vrsqrt.pop %v2961
        %v2970 = vrsqrt.pop %v2962
        %v2971 = vrsqrt.pop %v2963
        %v2972 = vrsqrt.pop %v2964
        %v2973 = vrsqrt.pop %v2965
        %v2974 = vmul.f32 %v2910, %v2966
        %v2975 = vmul.f32 %v2911, %v2967
        %v2976 = vmul.f32 %v2912, %v2968
        %v2977 = vmul.f32 %v2913, %v2969
        %v2978 = vmul.f32 %v2914, %v2970
        %v2979 = vmul.f32 %v2915, %v2971
        %v2980 = vmul.f32 %v2916, %v2972
        %v2981 = vmul.f32 %v2917, %v2973
        %v2982 = vld [vmem:[%s11] sm:$0x1]
        %v2984 = vlaneseq
        %v2985 = vshrl.u32 %v2984, 7
        %v2986 = vsub.s32 0, %v2985
        %v2987 = vrot.slane %v2982, %v2986
        %v2989 = vmul.f32 %v2974, %v2987
        %v2990 = vmul.f32 %v2975, %v2987
        %v2991 = vmul.f32 %v2976, %v2987
        %v2992 = vmul.f32 %v2977, %v2987
        %v2993 = vmul.f32 %v2978, %v2987
        %v2994 = vmul.f32 %v2979, %v2987
        %v2995 = vmul.f32 %v2980, %v2987
        %v2996 = vmul.f32 %v2981, %v2987
        %v2997 = vld [vmem:[%s12] sm:$0x1]
        %v2999 = vlaneseq
        %v3000 = vshrl.u32 %v2999, 7
        %v3001 = vsub.s32 0, %v3000
        %v3002 = vrot.slane %v2997, %v3001
        %v3004 = vadd.f32 %v2989, %v3002
        %v3005 = vadd.f32 %v2990, %v3002
        %v3006 = vadd.f32 %v2991, %v3002
        %v3007 = vadd.f32 %v2992, %v3002
        %v3008 = vadd.f32 %v2993, %v3002
        %v3009 = vadd.f32 %v2994, %v3002
        %v3010 = vadd.f32 %v2995, %v3002
        %v3011 = vadd.f32 %v2996, %v3002
        %3012 = vst.msk [vmem:[%s486] sm:$0xff] %vm1003, %v3004
        %3013 = vst.msk [vmem:[%s486 + $0x8] sm:$0xff] %vm1003, %v3005
        %3014 = vst.msk [vmem:[%s486 + $0x10] sm:$0xff] %vm1003, %v3006
        %3015 = vst.msk [vmem:[%s486 + $0x18] sm:$0xff] %vm1003, %v3007
        %3016 = vst.msk [vmem:[%s486 + $0x20] sm:$0xff] %vm1003, %v3008
        %3017 = vst.msk [vmem:[%s486 + $0x28] sm:$0xff] %vm1003, %v3009
        %3018 = vst.msk [vmem:[%s486 + $0x30] sm:$0xff] %vm1003, %v3010
        %3019 = vst.msk [vmem:[%s486 + $0x38] sm:$0xff] %vm1003, %v3011
        %s3020 = sand.u32 %s331, 1
        %s3021 = scalar_lea.sflag [#allocation5], %s3020
        %s3022 = sand.u32 %s331, 1
        %s3023 = smul.addr %s3022, 64
        %s3024 = scalar_lea.vmem [#allocation8], %s3023
        // Predicated region
        $region85: #{tpu_custom_call.1} parent=71 // pred_check
          %p3025 = pneg %p341
        $region86: #{tpu_custom_call.1} parent=71 // pred_check_branch
          %3027 = sbr.rel (%p3025) target = $region88
        $region87: #{tpu_custom_call.1} parent=71 // pred_region
          %s3028 = smul.u32 8, %s34
          %s3030 = ssub.s32 1024, 1024
          %3031 = vsyncadd %s3021, %s3030
          %s3032 = sadd.s32 %s33, %s3028
          %s3033 = smul.addr %s3032, 128
          %s3034 = scalar_lea.hbm %s13, %s3033
          %s3035 = sshll.u32 %s3024, 4
          %s3036 = int_to_ptr.vmem [resolvable:$true] %s3035
          %3041 = dma.vmem_to_hbm [thread:$0]  %s3036, 1024, %s3034, %s3021, 128, 128, 8
        $region88: #{tpu_custom_call.1} parent=71 // pred_fallthru
          _
      $region72: #{tpu_custom_call.1} parent=5 // pred_fallthru
        _
      %p3042 = scmp.le.s32.totalorder 2, %s24
      // Predicated region
      $region89: #{tpu_custom_call.1} parent=5 // pred_check
        %p3043 = pneg %p3042
      $region90: #{tpu_custom_call.1} parent=5 // pred_check_branch
        %3045 = sbr.rel (%p3043) target = $region92
      $region91: #{tpu_custom_call.1} parent=5 // pred_region
        %s3046 = ssub.s32 %s24, 2
        // Predicated region
        $region93: #{tpu_custom_call.1} parent=91 // pred_check
          %p3047 = pneg %p347
        $region94: #{tpu_custom_call.1} parent=91 // pred_check_branch
          %3049 = sbr.rel (%p3047) target = $region96
        $region95: #{tpu_custom_call.1} parent=91 // pred_region
          %s3050 = sand.u32 %s332, 1
          %s3051 = scalar_lea.sflag [#allocation5], %s3050
          %s3052 = sand.u32 %s332, 1
          %s3053 = smul.addr %s3052, 64
          %s3054 = scalar_lea.vmem [#allocation8], %s3053
          %3055 = dma.done %s3051, 1024
        $region96: #{tpu_custom_call.1} parent=91 // pred_fallthru
          _
      $region92: #{tpu_custom_call.1} parent=5 // pred_fallthru
        _
    $region6: #{tpu_custom_call.1} parent=1 // loop_footer
      %s28 = sadd.s32 1, %s24
    $region7: #{tpu_custom_call.1} parent=1 // loop_footer_branch
      %23 = sbr.rel target = $region3
    $region8: #{tpu_custom_call.1} parent=1 // loop_exit
      _
    %3056 = vsyncpa [#allocation4], 1
    %s3057 = scalar_lea.sflag [#allocation4], 1
    %3058 = vsyncpa %s3057, 1
    %3059 = vsyncpa [#allocation7], 1
    %3060 = vsyncpa [#allocation5], 1
    %s3061 = scalar_lea.sflag [#allocation5], 1
    %3062 = vsyncpa %s3061, 1

</llo_original>
